<compile_context>
chip_gen: v7x
topology: tpu7x:2x2x1
jax: 0.10.0
libtpu: 0.0.40
codegen_flags: <defaults>
</compile_context>

<pallas_src>
import jax
import jax.numpy as jnp
from jax.experimental import pallas as pl
from jax.experimental.pallas import tpu as pltpu

D = 128            # token_dim (reduced from 768 for the small demo)
L = 16             # tokens per sequence
B = 16             # batch (sequences)
SEQ_PER_STEP = 8   # sequences fused per grid step -> M = SEQ_PER_STEP*L = 128 rows
VOCAB = 64         # reduced from 4000
N_CLASSES = 8      # reduced from 30
N_CONV = 4
HEAD_PAD = 128     # lane-dense head output width (sliced to N_CLASSES outside)
LN_EPS = 1e-5
BN_EPS = 1e-5


# ----------------------------------------------------------------------------
# Single fused kernel: SEQ_PER_STEP sequences (rows = SEQ_PER_STEP*L) per step.
# ----------------------------------------------------------------------------
def _textcnn_fused_kernel(mu_ref, sig_ref, sw_ref, sb_ref, g_ref, be_ref,
                          w1m_ref, w1s_ref, b1_ref, w2_ref, b2_ref,
                          wc_ref, bns_ref, bnb_ref, hw_ref, hb_ref, o_ref):
    bf = jnp.bfloat16
    rows = mu_ref.shape[0]                # SEQ_PER_STEP * L
    S = rows // L

    # --- sigma_embedding (Linear(1->D)) + LayerNorm, f32 elementwise --------
    sig = sig_ref[...] * sw_ref[...] + sb_ref[...]              # (rows, D)
    mean = jnp.mean(sig, axis=-1, keepdims=True)
    var = jnp.mean((sig - mean) ** 2, axis=-1, keepdims=True)
    sig = (sig - mean) * jax.lax.rsqrt(var + LN_EPS) * g_ref[...] + be_ref[...]

    # --- intermediate_layer: cat(mu, sig) @ W1.T == mu@W1m + sig@W1s --------
    h = (jnp.dot(mu_ref[...], w1m_ref[...], preferred_element_type=jnp.float32)
         + jnp.dot(sig.astype(bf), w1s_ref[...], preferred_element_type=jnp.float32)
         + b1_ref[...])
    h = jnp.maximum(h, 0.0)                                     # ReLU (dropout = id)
    x = (jnp.dot(h.astype(bf), w2_ref[...], preferred_element_type=jnp.float32)
         + b2_ref[...])                                         # (rows, D) f32

    # --- per-sequence boundary masks (computed once, reused by every layer) -
    # (built from unrolled comparisons: no integer div/rem on the VPU)
    lidx = jax.lax.broadcasted_iota(jnp.int32, (rows, 1), 0)
    is_first = lidx == 0
    is_last = lidx == (L - 1)
    for s in range(1, S):
        is_first = jnp.logical_or(is_first, lidx == s * L)
        is_last = jnp.logical_or(is_last, lidx == s * L + L - 1)

    # --- conv layers 1..3: k=3 'same' conv as roll-taps + one K=3D matmul ---
    for i in range(N_CONV - 1):
        # pltpu.roll == jnp.roll semantics; shift of rows-1 == shift of -1.
        prev = jnp.where(is_first, 0.0, pltpu.roll(x, 1, axis=0))
        nxt = jnp.where(is_last, 0.0, pltpu.roll(x, rows - 1, axis=0))
        col = jnp.concatenate([prev.astype(bf), x.astype(bf), nxt.astype(bf)],
                              axis=1)                           # (rows, 3D) bf16
        y = jnp.dot(col, wc_ref[i], preferred_element_type=jnp.float32)
        y = y * bns_ref[i] + bnb_ref[i]                         # folded BN (eval)
        x = jnp.maximum(y, 0.0)                                 # ReLU

    # --- last Conv+BN fused with AdaptiveAvgPool1d(1) (mean over L commutes) -
    #   pooled prev tap   = (sum over l != L-1 of x) / L
    #   pooled center tap = (sum over all l   of x) / L
    #   pooled next tap   = (sum over l != 0  of x) / L
    x_nl = jnp.where(is_last, 0.0, x)
    x_nf = jnp.where(is_first, 0.0, x)
    col_last = jnp.concatenate([x_nl.astype(bf), x.astype(bf), x_nf.astype(bf)],
                               axis=1)                          # (rows, 3D) bf16
    # 0/1 per-sequence pooling matrix (S, rows): one small MXU matmul performs
    # the segmented sums of all three taps at once.
    r_io = jax.lax.broadcasted_iota(jnp.int32, (S, rows), 1)
    s_io = jax.lax.broadcasted_iota(jnp.int32, (S, rows), 0)
    start = s_io * L
    pool_mat = jnp.logical_and(r_io >= start, r_io < start + L).astype(bf)
    pcol = (jnp.dot(pool_mat, col_last, preferred_element_type=jnp.float32)
            * (1.0 / L))                                        # (S, 3D) f32
    pooled = (jnp.dot(pcol.astype(bf), wc_ref[N_CONV - 1],
                      preferred_element_type=jnp.float32)
              * bns_ref[N_CONV - 1] + bnb_ref[N_CONV - 1])      # (S, D) f32

    # --- head Linear, written as a lane-dense 128-wide slab ------------------
    o_ref[0] = (jnp.dot(pooled.astype(bf), hw_ref[...],
                        preferred_element_type=jnp.float32) + hb_ref[...])


# ----------------------------------------------------------------------------
# One-time (per checkpoint) weight repack into the kernel layout.
# ----------------------------------------------------------------------------
def prepack_params(p):
    bf = jnp.bfloat16
    hw = jnp.zeros((D, HEAD_PAD), jnp.float32).at[:, :N_CLASSES].set(p['head_w'])
    hb = jnp.zeros((1, HEAD_PAD), jnp.float32).at[:, :N_CLASSES].set(p['head_b'])
    return {
        'emb': p['emb'].astype(bf),               # stays in HBM; gathered per call
        'sigma_w': p['sigma_w'], 'sigma_b': p['sigma_b'],
        'ln_g': p['ln_g'], 'ln_b': p['ln_b'],
        'w1_mu': p['w1_mu'].astype(bf), 'w1_sig': p['w1_sig'].astype(bf),
        'b1': p['b1'], 'w2': p['w2'].astype(bf), 'b2': p['b2'],
        # (n_conv, 3, D, D) taps -> (n_conv, 3D, D) im2col weights, bf16
        'conv_w': jnp.stack([w.reshape(3 * D, D) for w in p['conv_w']]).astype(bf),
        'bn_scale': jnp.stack(p['bn_scale']), 'bn_shift': jnp.stack(p['bn_shift']),
        'head_w': hw.astype(bf), 'head_b': hb,
    }


# ----------------------------------------------------------------------------
# Forward wrapper: tiny XLA embedding gather + ONE pallas_call.
# ----------------------------------------------------------------------------
def textcnn_forward(mus, sigmas, packed):
    Bx, Lx = mus.shape
    assert Lx == L and Bx % SEQ_PER_STEP == 0
    nchunks = Bx // SEQ_PER_STEP
    rows = SEQ_PER_STEP * Lx

    # nn.Embedding: real row gather (XLA, table stays in HBM) instead of a
    # one-hot (L,V)@(V,D) matmul inside the kernel.
    idx = jnp.clip(jnp.round(mus).astype(jnp.int32), 0, VOCAB - 1)
    mu = jnp.take(packed['emb'], idx.reshape(Bx * Lx), axis=0)   # (B*L, D) bf16
    sig = sigmas.astype(jnp.float32).reshape(Bx * Lx, 1)

    weights = (packed['sigma_w'], packed['sigma_b'], packed['ln_g'], packed['ln_b'],
               packed['w1_mu'], packed['w1_sig'], packed['b1'],
               packed['w2'], packed['b2'],
               packed['conv_w'], packed['bn_scale'], packed['bn_shift'],
               packed['head_w'], packed['head_b'])

    def cspec(shape):
        # Grid-invariant VMEM-resident weight block.
        # TODO(synk): at production sizes (D=768) add pipeline_mode=pl.Buffered(1)
        # so these constants are not double-buffered on v7x (64 MiB VMEM).
        return pl.BlockSpec(shape, lambda c: (0,) * len(shape))

    # Advisory cost hint for the XLA scheduler.
    flops = (Bx * Lx * 6 * D * D                       # MLP (w1_mu, w1_sig, w2)
             + Bx * Lx * (N_CONV - 1) * 6 * D * D      # conv layers 1..3 (K=3D)
             + nchunks * 2 * SEQ_PER_STEP * rows * 3 * D   # pooling matmul
             + Bx * 6 * D * D                          # last conv on pooled rows
             + Bx * 2 * D * HEAD_PAD)                  # head
    bytes_accessed = (sum(int(a.size) * a.dtype.itemsize for a in weights)
                      + int(mu.size) * 2 + int(sig.size) * 4
                      + Bx * HEAD_PAD * 4)
    cost = pl.CostEstimate(flops=int(flops), transcendentals=int(Bx * Lx),
                           bytes_accessed=int(bytes_accessed))

    out = pl.pallas_call(
        _textcnn_fused_kernel,
        out_shape=jax.ShapeDtypeStruct((nchunks, SEQ_PER_STEP, HEAD_PAD),
                                       jnp.float32),
        grid=(nchunks,),
        in_specs=[
            pl.BlockSpec((rows, D), lambda c: (c, 0)),       # gathered embeddings
            pl.BlockSpec((rows, 1), lambda c: (c, 0)),       # sigmas
            cspec((1, D)), cspec((1, D)),                    # sigma_w, sigma_b
            cspec((1, D)), cspec((1, D)),                    # ln_g, ln_b
            cspec((D, D)), cspec((D, D)), cspec((1, D)),     # w1_mu, w1_sig, b1
            cspec((D, D)), cspec((1, D)),                    # w2, b2
            cspec((N_CONV, 3 * D, D)),                       # conv im2col weights
            cspec((N_CONV, 1, D)), cspec((N_CONV, 1, D)),    # bn scale/shift
            cspec((D, HEAD_PAD)), cspec((1, HEAD_PAD)),      # head w/b (lane-padded)
        ],
        out_specs=pl.BlockSpec((1, SEQ_PER_STEP, HEAD_PAD), lambda c: (c, 0, 0)),
        compiler_params=pltpu.CompilerParams(
            dimension_semantics=("parallel",),
            vmem_limit_bytes=64 * 1024 * 1024),
        cost_estimate=cost,
    )(mu, sig, *weights)
    return out.reshape(Bx, HEAD_PAD)[:, :N_CLASSES]


# ----------------------------------------------------------------------------
# Pure-JAX f32 reference (same math, unfused) for correctness checking.
# ----------------------------------------------------------------------------
def reference_forward(mus, sigmas, p):
    Bx, Lx = mus.shape
    idx = jnp.clip(jnp.round(mus).astype(jnp.int32), 0, VOCAB - 1)
    mu = p['emb'][idx]                                          # (B, L, D)
    sig = sigmas[..., None] * p['sigma_w'] + p['sigma_b']
    mean = sig.mean(-1, keepdims=True)
    var = ((sig - mean) ** 2).mean(-1, keepdims=True)
    sig = (sig - mean) * jax.lax.rsqrt(var + LN_EPS) * p['ln_g'] + p['ln_b']
    h = jnp.maximum(mu @ p['w1_mu'] + sig @ p['w1_sig'] + p['b1'], 0.0)
    x = h @ p['w2'] + p['b2']                                   # (B, L, D)
    for i in range(N_CONV):
        xpad = jnp.pad(x, ((0, 0), (1, 1), (0, 0)))
        y = sum(jnp.einsum('bld,de->ble', xpad[:, k:k + Lx, :],
                           p['conv_w'][i][k]) for k in range(3))
        y = y * p['bn_scale'][i] + p['bn_shift'][i]
        x = jnp.maximum(y, 0.0) if i < N_CONV - 1 else y
    pooled = x.mean(axis=1)                                     # (B, D)
    return pooled @ p['head_w'] + p['head_b']


# ----------------------------------------------------------------------------
# Deterministic parameter init (synthetic; no checkpoint loading)
# ----------------------------------------------------------------------------
def init_params(key):
    ks = jax.random.split(key, 12)
    p = {}
    emb = 0.02 * jax.random.normal(ks[0], (VOCAB, D), jnp.float32)
    p['emb'] = emb.at[0].set(0.0)                 # padding_idx=0 -> zero row
    p['sigma_w'] = 0.02 * jax.random.normal(ks[1], (1, D), jnp.float32)
    p['sigma_b'] = 0.02 * jax.random.normal(ks[2], (1, D), jnp.float32)
    p['ln_g'] = jnp.ones((1, D), jnp.float32)
    p['ln_b'] = jnp.zeros((1, D), jnp.float32)
    p['w1_mu'] = 0.02 * jax.random.normal(ks[3], (D, D), jnp.float32)
    p['w1_sig'] = 0.02 * jax.random.normal(ks[4], (D, D), jnp.float32)
    p['b1'] = jnp.zeros((1, D), jnp.float32)
    p['w2'] = 0.02 * jax.random.normal(ks[5], (D, D), jnp.float32)
    p['b2'] = jnp.zeros((1, D), jnp.float32)
    conv_w, bn_scale, bn_shift = [], [], []
    for i in range(N_CONV):
        kw, kg, kb, km, kv = jax.random.split(ks[6 + i], 5)
        conv_w.append(0.05 * jax.random.normal(kw, (3, D, D), jnp.float32))
        gamma = 1.0 + 0.1 * jax.random.normal(kg, (D,), jnp.float32)
        beta = 0.1 * jax.random.normal(kb, (D,), jnp.float32)
        rmean = 0.1 * jax.random.normal(km, (D,), jnp.float32)
        rvar = jax.random.uniform(kv, (D,), jnp.float32, 0.5, 1.5)
        scale = gamma * jax.lax.rsqrt(rvar + BN_EPS)
        shift = beta - rmean * scale
        bn_scale.append(scale.reshape(1, D))
        bn_shift.append(shift.reshape(1, D))
    p['conv_w'] = conv_w
    p['bn_scale'] = bn_scale
    p['bn_shift'] = bn_shift
    p['head_w'] = 0.02 * jax.random.normal(ks[10], (D, N_CLASSES), jnp.float32)
    p['head_b'] = jnp.zeros((1, N_CLASSES), jnp.float32)
    return p


if __name__ == "__main__":
    key = jax.random.PRNGKey(0)
    kp, km, ksg = jax.random.split(key, 3)
    params = init_params(kp)
    packed = prepack_params(params)           # ONCE per checkpoint (review #1)

    # x['mus'] : float token ids (rounded+clipped), x['sigmas'] : floats
    mus = jax.random.uniform(km, (B, L), jnp.float32, 0.0, float(VOCAB - 1))
    sigmas = jax.random.normal(ksg, (B, L), jnp.float32)

    fwd = jax.jit(textcnn_forward)
    out = jax.block_until_ready(fwd(mus, sigmas, packed))
    ref = reference_forward(mus, sigmas, params)

    assert out.shape == (B, N_CLASSES), out.shape
    assert bool(jnp.all(jnp.isfinite(out)))
    err = float(jnp.max(jnp.abs(out - ref)))
    # bf16 MXU operands with f32 accumulation vs the f32 reference -> loose tol.
    assert bool(jnp.allclose(out, ref, atol=5e-2, rtol=5e-2)), err
    print("KERNEL_OK")
</pallas_src>

<mosaic_0001>
module attributes {stable_mosaic.version = 11 : i64} {
  func.func @_textcnn_fused_kernel(%arg0: i32, %arg1: memref<128x128xbf16, #tpu.memory_space<vmem>>, %arg2: memref<128x1xf32, #tpu.memory_space<vmem>>, %arg3: memref<1x128xf32, #tpu.memory_space<vmem>>, %arg4: memref<1x128xf32, #tpu.memory_space<vmem>>, %arg5: memref<1x128xf32, #tpu.memory_space<vmem>>, %arg6: memref<1x128xf32, #tpu.memory_space<vmem>>, %arg7: memref<128x128xbf16, #tpu.memory_space<vmem>>, %arg8: memref<128x128xbf16, #tpu.memory_space<vmem>>, %arg9: memref<1x128xf32, #tpu.memory_space<vmem>>, %arg10: memref<128x128xbf16, #tpu.memory_space<vmem>>, %arg11: memref<1x128xf32, #tpu.memory_space<vmem>>, %arg12: memref<4x384x128xbf16, #tpu.memory_space<vmem>>, %arg13: memref<4x1x128xf32, #tpu.memory_space<vmem>>, %arg14: memref<4x1x128xf32, #tpu.memory_space<vmem>>, %arg15: memref<128x128xbf16, #tpu.memory_space<vmem>>, %arg16: memref<1x128xf32, #tpu.memory_space<vmem>>, %arg17: memref<1x8x128xf32, #tpu.memory_space<vmem>>) attributes {dimension_semantics = [#tpu.dimension_semantics<parallel>], iteration_bounds = array<i64: 2>, scalar_prefetch = 0 : i64, scratch_operands = 0 : i64, tpu.core_type = #tpu.core_type<tc>, window_params = [{transform_indices = @transform_0, window_bounds = array<i64: 128, 128>}, {transform_indices = @transform_1, window_bounds = array<i64: 128, 1>}, {pipeline_mode = #tpu.pipeline_mode<synchronous>, transform_indices = @transform_2, window_bounds = array<i64: 1, 128>}, {pipeline_mode = #tpu.pipeline_mode<synchronous>, transform_indices = @transform_3, window_bounds = array<i64: 1, 128>}, {pipeline_mode = #tpu.pipeline_mode<synchronous>, transform_indices = @transform_4, window_bounds = array<i64: 1, 128>}, {pipeline_mode = #tpu.pipeline_mode<synchronous>, transform_indices = @transform_5, window_bounds = array<i64: 1, 128>}, {pipeline_mode = #tpu.pipeline_mode<synchronous>, transform_indices = @transform_6, window_bounds = array<i64: 128, 128>}, {pipeline_mode = #tpu.pipeline_mode<synchronous>, transform_indices = @transform_7, window_bounds = array<i64: 128, 128>}, {pipeline_mode = #tpu.pipeline_mode<synchronous>, transform_indices = @transform_8, window_bounds = array<i64: 1, 128>}, {pipeline_mode = #tpu.pipeline_mode<synchronous>, transform_indices = @transform_9, window_bounds = array<i64: 128, 128>}, {pipeline_mode = #tpu.pipeline_mode<synchronous>, transform_indices = @transform_10, window_bounds = array<i64: 1, 128>}, {pipeline_mode = #tpu.pipeline_mode<synchronous>, transform_indices = @transform_11, window_bounds = array<i64: 4, 384, 128>}, {pipeline_mode = #tpu.pipeline_mode<synchronous>, transform_indices = @transform_12, window_bounds = array<i64: 4, 1, 128>}, {pipeline_mode = #tpu.pipeline_mode<synchronous>, transform_indices = @transform_13, window_bounds = array<i64: 4, 1, 128>}, {pipeline_mode = #tpu.pipeline_mode<synchronous>, transform_indices = @transform_14, window_bounds = array<i64: 128, 128>}, {pipeline_mode = #tpu.pipeline_mode<synchronous>, transform_indices = @transform_15, window_bounds = array<i64: 1, 128>}, {transform_indices = @transform_16, window_bounds = array<i64: 1, 8, 128>}]} {
    %c0 = arith.constant 0 : index
    %c0_0 = arith.constant 0 : index
    %0 = vector.load %arg2[%c0, %c0_0] : memref<128x1xf32, #tpu.memory_space<vmem>>, vector<128x1xf32>
    %c0_1 = arith.constant 0 : index
    %c0_2 = arith.constant 0 : index
    %1 = vector.load %arg3[%c0_1, %c0_2] : memref<1x128xf32, #tpu.memory_space<vmem>>, vector<1x128xf32>
    %2 = vector.broadcast %0 : vector<128x1xf32> to vector<128x128xf32>
    %3 = vector.broadcast %1 : vector<1x128xf32> to vector<128x128xf32>
    %4 = arith.mulf %2, %3 : vector<128x128xf32>
    %c0_3 = arith.constant 0 : index
    %c0_4 = arith.constant 0 : index
    %5 = vector.load %arg4[%c0_3, %c0_4] : memref<1x128xf32, #tpu.memory_space<vmem>>, vector<1x128xf32>
    %6 = vector.broadcast %5 : vector<1x128xf32> to vector<128x128xf32>
    %7 = arith.addf %4, %6 : vector<128x128xf32>
    %cst = arith.constant dense<0.000000e+00> : vector<128xf32>
    %8 = vector.multi_reduction <add>, %7, %cst [1] : vector<128x128xf32> to vector<128xf32>
    %9 = vector.shape_cast %8 : vector<128xf32> to vector<128x1xf32>
    %cst_5 = arith.constant 1.280000e+02 : f32
    %10 = vector.broadcast %cst_5 : f32 to vector<128x1xf32>
    %11 = arith.divf %9, %10 : vector<128x1xf32>
    %12 = vector.broadcast %11 : vector<128x1xf32> to vector<128x128xf32>
    %13 = arith.subf %7, %12 : vector<128x128xf32>
    %14 = arith.mulf %13, %13 : vector<128x128xf32>
    %cst_6 = arith.constant dense<0.000000e+00> : vector<128xf32>
    %15 = vector.multi_reduction <add>, %14, %cst_6 [1] : vector<128x128xf32> to vector<128xf32>
    %16 = vector.shape_cast %15 : vector<128xf32> to vector<128x1xf32>
    %cst_7 = arith.constant 1.280000e+02 : f32
    %17 = vector.broadcast %cst_7 : f32 to vector<128x1xf32>
    %18 = arith.divf %16, %17 : vector<128x1xf32>
    %19 = vector.broadcast %11 : vector<128x1xf32> to vector<128x128xf32>
    %20 = arith.subf %7, %19 : vector<128x128xf32>
    %cst_8 = arith.constant 9.99999974E-6 : f32
    %21 = vector.broadcast %cst_8 : f32 to vector<128x1xf32>
    %22 = arith.addf %18, %21 : vector<128x1xf32>
    %23 = math.rsqrt %22 : vector<128x1xf32>
    %24 = vector.broadcast %23 : vector<128x1xf32> to vector<128x128xf32>
    %25 = arith.mulf %20, %24 : vector<128x128xf32>
    %c0_9 = arith.constant 0 : index
    %c0_10 = arith.constant 0 : index
    %26 = vector.load %arg5[%c0_9, %c0_10] : memref<1x128xf32, #tpu.memory_space<vmem>>, vector<1x128xf32>
    %27 = vector.broadcast %26 : vector<1x128xf32> to vector<128x128xf32>
    %28 = arith.mulf %25, %27 : vector<128x128xf32>
    %c0_11 = arith.constant 0 : index
    %c0_12 = arith.constant 0 : index
    %29 = vector.load %arg6[%c0_11, %c0_12] : memref<1x128xf32, #tpu.memory_space<vmem>>, vector<1x128xf32>
    %30 = vector.broadcast %29 : vector<1x128xf32> to vector<128x128xf32>
    %31 = arith.addf %28, %30 : vector<128x128xf32>
    %c0_13 = arith.constant 0 : index
    %c0_14 = arith.constant 0 : index
    %32 = vector.load %arg1[%c0_13, %c0_14] : memref<128x128xbf16, #tpu.memory_space<vmem>>, vector<128x128xbf16>
    %c0_15 = arith.constant 0 : index
    %c0_16 = arith.constant 0 : index
    %33 = vector.load %arg7[%c0_15, %c0_16] : memref<128x128xbf16, #tpu.memory_space<vmem>>, vector<128x128xbf16>
    %cst_17 = arith.constant dense<0.000000e+00> : vector<128x128xf32>
    %34 = tpu.matmul %32, %33, %cst_17 {dimension_numbers = #tpu.dot_dimension_numbers<[1], [0], [0], [1], [0, 0, 1, 1], [], []>} : vector<128x128xbf16>, vector<128x128xbf16>, vector<128x128xf32> -> vector<128x128xf32>
    %35 = arith.truncf %31 : vector<128x128xf32> to vector<128x128xbf16>
    %c0_18 = arith.constant 0 : index
    %c0_19 = arith.constant 0 : index
    %36 = vector.load %arg8[%c0_18, %c0_19] : memref<128x128xbf16, #tpu.memory_space<vmem>>, vector<128x128xbf16>
    %cst_20 = arith.constant dense<0.000000e+00> : vector<128x128xf32>
    %37 = tpu.matmul %35, %36, %cst_20 {dimension_numbers = #tpu.dot_dimension_numbers<[1], [0], [0], [1], [0, 0, 1, 1], [], []>} : vector<128x128xbf16>, vector<128x128xbf16>, vector<128x128xf32> -> vector<128x128xf32>
    %38 = arith.addf %34, %37 : vector<128x128xf32>
    %c0_21 = arith.constant 0 : index
    %c0_22 = arith.constant 0 : index
    %39 = vector.load %arg9[%c0_21, %c0_22] : memref<1x128xf32, #tpu.memory_space<vmem>>, vector<1x128xf32>
    %40 = vector.broadcast %39 : vector<1x128xf32> to vector<128x128xf32>
    %41 = arith.addf %38, %40 : vector<128x128xf32>
    %cst_23 = arith.constant 0.000000e+00 : f32
    %42 = vector.broadcast %cst_23 : f32 to vector<128x128xf32>
    %43 = arith.maximumf %41, %42 : vector<128x128xf32>
    %44 = arith.truncf %43 : vector<128x128xf32> to vector<128x128xbf16>
    %c0_24 = arith.constant 0 : index
    %c0_25 = arith.constant 0 : index
    %45 = vector.load %arg10[%c0_24, %c0_25] : memref<128x128xbf16, #tpu.memory_space<vmem>>, vector<128x128xbf16>
    %cst_26 = arith.constant dense<0.000000e+00> : vector<128x128xf32>
    %46 = tpu.matmul %44, %45, %cst_26 {dimension_numbers = #tpu.dot_dimension_numbers<[1], [0], [0], [1], [0, 0, 1, 1], [], []>} : vector<128x128xbf16>, vector<128x128xbf16>, vector<128x128xf32> -> vector<128x128xf32>
    %c0_27 = arith.constant 0 : index
    %c0_28 = arith.constant 0 : index
    %47 = vector.load %arg11[%c0_27, %c0_28] : memref<1x128xf32, #tpu.memory_space<vmem>>, vector<1x128xf32>
    %48 = vector.broadcast %47 : vector<1x128xf32> to vector<128x128xf32>
    %49 = arith.addf %46, %48 : vector<128x128xf32>
    %50 = tpu.iota {dimensions = array<i32: 0>} : vector<128x1xi32>
    %c0_i32 = arith.constant 0 : i32
    %51 = vector.broadcast %c0_i32 : i32 to vector<128x1xi32>
    %52 = arith.cmpi eq, %50, %51 : vector<128x1xi32>
    %c15_i32 = arith.constant 15 : i32
    %53 = vector.broadcast %c15_i32 : i32 to vector<128x1xi32>
    %54 = arith.cmpi eq, %50, %53 : vector<128x1xi32>
    %c16_i32 = arith.constant 16 : i32
    %55 = vector.broadcast %c16_i32 : i32 to vector<128x1xi32>
    %56 = arith.cmpi eq, %50, %55 : vector<128x1xi32>
    %57 = arith.ori %52, %56 : vector<128x1xi1>
    %c31_i32 = arith.constant 31 : i32
    %58 = vector.broadcast %c31_i32 : i32 to vector<128x1xi32>
    %59 = arith.cmpi eq, %50, %58 : vector<128x1xi32>
    %60 = arith.ori %54, %59 : vector<128x1xi1>
    %c32_i32 = arith.constant 32 : i32
    %61 = vector.broadcast %c32_i32 : i32 to vector<128x1xi32>
    %62 = arith.cmpi eq, %50, %61 : vector<128x1xi32>
    %63 = arith.ori %57, %62 : vector<128x1xi1>
    %c47_i32 = arith.constant 47 : i32
    %64 = vector.broadcast %c47_i32 : i32 to vector<128x1xi32>
    %65 = arith.cmpi eq, %50, %64 : vector<128x1xi32>
    %66 = arith.ori %60, %65 : vector<128x1xi1>
    %c48_i32 = arith.constant 48 : i32
    %67 = vector.broadcast %c48_i32 : i32 to vector<128x1xi32>
    %68 = arith.cmpi eq, %50, %67 : vector<128x1xi32>
    %69 = arith.ori %63, %68 : vector<128x1xi1>
    %c63_i32 = arith.constant 63 : i32
    %70 = vector.broadcast %c63_i32 : i32 to vector<128x1xi32>
    %71 = arith.cmpi eq, %50, %70 : vector<128x1xi32>
    %72 = arith.ori %66, %71 : vector<128x1xi1>
    %c64_i32 = arith.constant 64 : i32
    %73 = vector.broadcast %c64_i32 : i32 to vector<128x1xi32>
    %74 = arith.cmpi eq, %50, %73 : vector<128x1xi32>
    %75 = arith.ori %69, %74 : vector<128x1xi1>
    %c79_i32 = arith.constant 79 : i32
    %76 = vector.broadcast %c79_i32 : i32 to vector<128x1xi32>
    %77 = arith.cmpi eq, %50, %76 : vector<128x1xi32>
    %78 = arith.ori %72, %77 : vector<128x1xi1>
    %c80_i32 = arith.constant 80 : i32
    %79 = vector.broadcast %c80_i32 : i32 to vector<128x1xi32>
    %80 = arith.cmpi eq, %50, %79 : vector<128x1xi32>
    %81 = arith.ori %75, %80 : vector<128x1xi1>
    %c95_i32 = arith.constant 95 : i32
    %82 = vector.broadcast %c95_i32 : i32 to vector<128x1xi32>
    %83 = arith.cmpi eq, %50, %82 : vector<128x1xi32>
    %84 = arith.ori %78, %83 : vector<128x1xi1>
    %c96_i32 = arith.constant 96 : i32
    %85 = vector.broadcast %c96_i32 : i32 to vector<128x1xi32>
    %86 = arith.cmpi eq, %50, %85 : vector<128x1xi32>
    %87 = arith.ori %81, %86 : vector<128x1xi1>
    %c111_i32 = arith.constant 111 : i32
    %88 = vector.broadcast %c111_i32 : i32 to vector<128x1xi32>
    %89 = arith.cmpi eq, %50, %88 : vector<128x1xi32>
    %90 = arith.ori %84, %89 : vector<128x1xi1>
    %c112_i32 = arith.constant 112 : i32
    %91 = vector.broadcast %c112_i32 : i32 to vector<128x1xi32>
    %92 = arith.cmpi eq, %50, %91 : vector<128x1xi32>
    %93 = arith.ori %87, %92 : vector<128x1xi1>
    %c127_i32 = arith.constant 127 : i32
    %94 = vector.broadcast %c127_i32 : i32 to vector<128x1xi32>
    %95 = arith.cmpi eq, %50, %94 : vector<128x1xi32>
    %96 = arith.ori %90, %95 : vector<128x1xi1>
    %c1_i32 = arith.constant 1 : i32
    %97 = tpu.dynamic_rotate %49 by %c1_i32 dim 0 : vector<128x128xf32>, i32 -> vector<128x128xf32>
    %cst_29 = arith.constant 0.000000e+00 : f32
    %98 = vector.shape_cast %93 : vector<128x1xi1> to vector<128x1xi1>
    %99 = vector.broadcast %98 : vector<128x1xi1> to vector<128x128xi1>
    %100 = vector.broadcast %cst_29 : f32 to vector<128x128xf32>
    %101 = arith.select %99, %100, %97 : vector<128x128xi1>, vector<128x128xf32>
    %c127_i32_30 = arith.constant 127 : i32
    %102 = tpu.dynamic_rotate %49 by %c127_i32_30 dim 0 : vector<128x128xf32>, i32 -> vector<128x128xf32>
    %cst_31 = arith.constant 0.000000e+00 : f32
    %103 = vector.shape_cast %96 : vector<128x1xi1> to vector<128x1xi1>
    %104 = vector.broadcast %103 : vector<128x1xi1> to vector<128x128xi1>
    %105 = vector.broadcast %cst_31 : f32 to vector<128x128xf32>
    %106 = arith.select %104, %105, %102 : vector<128x128xi1>, vector<128x128xf32>
    %107 = arith.truncf %101 : vector<128x128xf32> to vector<128x128xbf16>
    %108 = arith.truncf %49 : vector<128x128xf32> to vector<128x128xbf16>
    %109 = arith.truncf %106 : vector<128x128xf32> to vector<128x128xbf16>
    %110 = tpu.concatenate %107, %108, %109 in 1 : vector<128x128xbf16>, vector<128x128xbf16>, vector<128x128xbf16> -> vector<128x384xbf16>
    %c0_32 = arith.constant 0 : index
    %c0_33 = arith.constant 0 : index
    %c0_34 = arith.constant 0 : index
    %111 = vector.load %arg12[%c0_32, %c0_33, %c0_34] : memref<4x384x128xbf16, #tpu.memory_space<vmem>>, vector<1x384x128xbf16>
    %112 = vector.shape_cast %111 : vector<1x384x128xbf16> to vector<384x128xbf16>
    %cst_35 = arith.constant dense<0.000000e+00> : vector<128x128xf32>
    %113 = tpu.matmul %110, %112, %cst_35 {dimension_numbers = #tpu.dot_dimension_numbers<[1], [0], [0], [1], [0, 0, 1, 1], [], []>} : vector<128x384xbf16>, vector<384x128xbf16>, vector<128x128xf32> -> vector<128x128xf32>
    %c0_36 = arith.constant 0 : index
    %c0_37 = arith.constant 0 : index
    %c0_38 = arith.constant 0 : index
    %114 = vector.load %arg13[%c0_36, %c0_37, %c0_38] : memref<4x1x128xf32, #tpu.memory_space<vmem>>, vector<1x1x128xf32>
    %115 = vector.shape_cast %114 : vector<1x1x128xf32> to vector<1x128xf32>
    %116 = vector.broadcast %115 : vector<1x128xf32> to vector<128x128xf32>
    %117 = arith.mulf %113, %116 : vector<128x128xf32>
    %c0_39 = arith.constant 0 : index
    %c0_40 = arith.constant 0 : index
    %c0_41 = arith.constant 0 : index
    %118 = vector.load %arg14[%c0_39, %c0_40, %c0_41] : memref<4x1x128xf32, #tpu.memory_space<vmem>>, vector<1x1x128xf32>
    %119 = vector.shape_cast %118 : vector<1x1x128xf32> to vector<1x128xf32>
    %120 = vector.broadcast %119 : vector<1x128xf32> to vector<128x128xf32>
    %121 = arith.addf %117, %120 : vector<128x128xf32>
    %cst_42 = arith.constant 0.000000e+00 : f32
    %122 = vector.broadcast %cst_42 : f32 to vector<128x128xf32>
    %123 = arith.maximumf %121, %122 : vector<128x128xf32>
    %c1_i32_43 = arith.constant 1 : i32
    %124 = tpu.dynamic_rotate %123 by %c1_i32_43 dim 0 : vector<128x128xf32>, i32 -> vector<128x128xf32>
    %cst_44 = arith.constant 0.000000e+00 : f32
    %125 = vector.shape_cast %93 : vector<128x1xi1> to vector<128x1xi1>
    %126 = vector.broadcast %125 : vector<128x1xi1> to vector<128x128xi1>
    %127 = vector.broadcast %cst_44 : f32 to vector<128x128xf32>
    %128 = arith.select %126, %127, %124 : vector<128x128xi1>, vector<128x128xf32>
    %c127_i32_45 = arith.constant 127 : i32
    %129 = tpu.dynamic_rotate %123 by %c127_i32_45 dim 0 : vector<128x128xf32>, i32 -> vector<128x128xf32>
    %cst_46 = arith.constant 0.000000e+00 : f32
    %130 = vector.shape_cast %96 : vector<128x1xi1> to vector<128x1xi1>
    %131 = vector.broadcast %130 : vector<128x1xi1> to vector<128x128xi1>
    %132 = vector.broadcast %cst_46 : f32 to vector<128x128xf32>
    %133 = arith.select %131, %132, %129 : vector<128x128xi1>, vector<128x128xf32>
    %134 = arith.truncf %128 : vector<128x128xf32> to vector<128x128xbf16>
    %135 = arith.truncf %123 : vector<128x128xf32> to vector<128x128xbf16>
    %136 = arith.truncf %133 : vector<128x128xf32> to vector<128x128xbf16>
    %137 = tpu.concatenate %134, %135, %136 in 1 : vector<128x128xbf16>, vector<128x128xbf16>, vector<128x128xbf16> -> vector<128x384xbf16>
    %c1 = arith.constant 1 : index
    %c0_47 = arith.constant 0 : index
    %c0_48 = arith.constant 0 : index
    %138 = vector.load %arg12[%c1, %c0_47, %c0_48] : memref<4x384x128xbf16, #tpu.memory_space<vmem>>, vector<1x384x128xbf16>
    %139 = vector.shape_cast %138 : vector<1x384x128xbf16> to vector<384x128xbf16>
    %cst_49 = arith.constant dense<0.000000e+00> : vector<128x128xf32>
    %140 = tpu.matmul %137, %139, %cst_49 {dimension_numbers = #tpu.dot_dimension_numbers<[1], [0], [0], [1], [0, 0, 1, 1], [], []>} : vector<128x384xbf16>, vector<384x128xbf16>, vector<128x128xf32> -> vector<128x128xf32>
    %c1_50 = arith.constant 1 : index
    %c0_51 = arith.constant 0 : index
    %c0_52 = arith.constant 0 : index
    %141 = vector.load %arg13[%c1_50, %c0_51, %c0_52] : memref<4x1x128xf32, #tpu.memory_space<vmem>>, vector<1x1x128xf32>
    %142 = vector.shape_cast %141 : vector<1x1x128xf32> to vector<1x128xf32>
    %143 = vector.broadcast %142 : vector<1x128xf32> to vector<128x128xf32>
    %144 = arith.mulf %140, %143 : vector<128x128xf32>
    %c1_53 = arith.constant 1 : index
    %c0_54 = arith.constant 0 : index
    %c0_55 = arith.constant 0 : index
    %145 = vector.load %arg14[%c1_53, %c0_54, %c0_55] : memref<4x1x128xf32, #tpu.memory_space<vmem>>, vector<1x1x128xf32>
    %146 = vector.shape_cast %145 : vector<1x1x128xf32> to vector<1x128xf32>
    %147 = vector.broadcast %146 : vector<1x128xf32> to vector<128x128xf32>
    %148 = arith.addf %144, %147 : vector<128x128xf32>
    %cst_56 = arith.constant 0.000000e+00 : f32
    %149 = vector.broadcast %cst_56 : f32 to vector<128x128xf32>
    %150 = arith.maximumf %148, %149 : vector<128x128xf32>
    %c1_i32_57 = arith.constant 1 : i32
    %151 = tpu.dynamic_rotate %150 by %c1_i32_57 dim 0 : vector<128x128xf32>, i32 -> vector<128x128xf32>
    %cst_58 = arith.constant 0.000000e+00 : f32
    %152 = vector.shape_cast %93 : vector<128x1xi1> to vector<128x1xi1>
    %153 = vector.broadcast %152 : vector<128x1xi1> to vector<128x128xi1>
    %154 = vector.broadcast %cst_58 : f32 to vector<128x128xf32>
    %155 = arith.select %153, %154, %151 : vector<128x128xi1>, vector<128x128xf32>
    %c127_i32_59 = arith.constant 127 : i32
    %156 = tpu.dynamic_rotate %150 by %c127_i32_59 dim 0 : vector<128x128xf32>, i32 -> vector<128x128xf32>
    %cst_60 = arith.constant 0.000000e+00 : f32
    %157 = vector.shape_cast %96 : vector<128x1xi1> to vector<128x1xi1>
    %158 = vector.broadcast %157 : vector<128x1xi1> to vector<128x128xi1>
    %159 = vector.broadcast %cst_60 : f32 to vector<128x128xf32>
    %160 = arith.select %158, %159, %156 : vector<128x128xi1>, vector<128x128xf32>
    %161 = arith.truncf %155 : vector<128x128xf32> to vector<128x128xbf16>
    %162 = arith.truncf %150 : vector<128x128xf32> to vector<128x128xbf16>
    %163 = arith.truncf %160 : vector<128x128xf32> to vector<128x128xbf16>
    %164 = tpu.concatenate %161, %162, %163 in 1 : vector<128x128xbf16>, vector<128x128xbf16>, vector<128x128xbf16> -> vector<128x384xbf16>
    %c2 = arith.constant 2 : index
    %c0_61 = arith.constant 0 : index
    %c0_62 = arith.constant 0 : index
    %165 = vector.load %arg12[%c2, %c0_61, %c0_62] : memref<4x384x128xbf16, #tpu.memory_space<vmem>>, vector<1x384x128xbf16>
    %166 = vector.shape_cast %165 : vector<1x384x128xbf16> to vector<384x128xbf16>
    %cst_63 = arith.constant dense<0.000000e+00> : vector<128x128xf32>
    %167 = tpu.matmul %164, %166, %cst_63 {dimension_numbers = #tpu.dot_dimension_numbers<[1], [0], [0], [1], [0, 0, 1, 1], [], []>} : vector<128x384xbf16>, vector<384x128xbf16>, vector<128x128xf32> -> vector<128x128xf32>
    %c2_64 = arith.constant 2 : index
    %c0_65 = arith.constant 0 : index
    %c0_66 = arith.constant 0 : index
    %168 = vector.load %arg13[%c2_64, %c0_65, %c0_66] : memref<4x1x128xf32, #tpu.memory_space<vmem>>, vector<1x1x128xf32>
    %169 = vector.shape_cast %168 : vector<1x1x128xf32> to vector<1x128xf32>
    %170 = vector.broadcast %169 : vector<1x128xf32> to vector<128x128xf32>
    %171 = arith.mulf %167, %170 : vector<128x128xf32>
    %c2_67 = arith.constant 2 : index
    %c0_68 = arith.constant 0 : index
    %c0_69 = arith.constant 0 : index
    %172 = vector.load %arg14[%c2_67, %c0_68, %c0_69] : memref<4x1x128xf32, #tpu.memory_space<vmem>>, vector<1x1x128xf32>
    %173 = vector.shape_cast %172 : vector<1x1x128xf32> to vector<1x128xf32>
    %174 = vector.broadcast %173 : vector<1x128xf32> to vector<128x128xf32>
    %175 = arith.addf %171, %174 : vector<128x128xf32>
    %cst_70 = arith.constant 0.000000e+00 : f32
    %176 = vector.broadcast %cst_70 : f32 to vector<128x128xf32>
    %177 = arith.maximumf %175, %176 : vector<128x128xf32>
    %cst_71 = arith.constant 0.000000e+00 : f32
    %178 = vector.shape_cast %96 : vector<128x1xi1> to vector<128x1xi1>
    %179 = vector.broadcast %178 : vector<128x1xi1> to vector<128x128xi1>
    %180 = vector.broadcast %cst_71 : f32 to vector<128x128xf32>
    %181 = arith.select %179, %180, %177 : vector<128x128xi1>, vector<128x128xf32>
    %cst_72 = arith.constant 0.000000e+00 : f32
    %182 = vector.shape_cast %93 : vector<128x1xi1> to vector<128x1xi1>
    %183 = vector.broadcast %182 : vector<128x1xi1> to vector<128x128xi1>
    %184 = vector.broadcast %cst_72 : f32 to vector<128x128xf32>
    %185 = arith.select %183, %184, %177 : vector<128x128xi1>, vector<128x128xf32>
    %186 = arith.truncf %181 : vector<128x128xf32> to vector<128x128xbf16>
    %187 = arith.truncf %177 : vector<128x128xf32> to vector<128x128xbf16>
    %188 = arith.truncf %185 : vector<128x128xf32> to vector<128x128xbf16>
    %189 = tpu.concatenate %186, %187, %188 in 1 : vector<128x128xbf16>, vector<128x128xbf16>, vector<128x128xbf16> -> vector<128x384xbf16>
    %190 = tpu.iota {dimensions = array<i32: 1>} : vector<8x128xi32>
    %191 = tpu.iota {dimensions = array<i32: 0>} : vector<8x128xi32>
    %c16_i32_73 = arith.constant 16 : i32
    %192 = vector.broadcast %c16_i32_73 : i32 to vector<8x128xi32>
    %193 = arith.muli %191, %192 : vector<8x128xi32>
    %194 = arith.cmpi sge, %190, %193 : vector<8x128xi32>
    %c16_i32_74 = arith.constant 16 : i32
    %195 = vector.broadcast %c16_i32_74 : i32 to vector<8x128xi32>
    %196 = arith.addi %193, %195 : vector<8x128xi32>
    %197 = arith.cmpi slt, %190, %196 : vector<8x128xi32>
    %198 = arith.andi %194, %197 : vector<8x128xi1>
    %199 = arith.extui %198 : vector<8x128xi1> to vector<8x128xi32>
    %200 = arith.sitofp %199 : vector<8x128xi32> to vector<8x128xf32>
    %201 = arith.truncf %200 : vector<8x128xf32> to vector<8x128xbf16>
    %cst_75 = arith.constant dense<0.000000e+00> : vector<8x384xf32>
    %202 = tpu.matmul %201, %189, %cst_75 {dimension_numbers = #tpu.dot_dimension_numbers<[1], [0], [0], [1], [0, 0, 1, 1], [], []>} : vector<8x128xbf16>, vector<128x384xbf16>, vector<8x384xf32> -> vector<8x384xf32>
    %cst_76 = arith.constant 6.250000e-02 : f32
    %203 = vector.broadcast %cst_76 : f32 to vector<8x384xf32>
    %204 = arith.mulf %202, %203 : vector<8x384xf32>
    %205 = arith.truncf %204 : vector<8x384xf32> to vector<8x384xbf16>
    %c3 = arith.constant 3 : index
    %c0_77 = arith.constant 0 : index
    %c0_78 = arith.constant 0 : index
    %206 = vector.load %arg12[%c3, %c0_77, %c0_78] : memref<4x384x128xbf16, #tpu.memory_space<vmem>>, vector<1x384x128xbf16>
    %207 = vector.shape_cast %206 : vector<1x384x128xbf16> to vector<384x128xbf16>
    %cst_79 = arith.constant dense<0.000000e+00> : vector<8x128xf32>
    %208 = tpu.matmul %205, %207, %cst_79 {dimension_numbers = #tpu.dot_dimension_numbers<[1], [0], [0], [1], [0, 0, 1, 1], [], []>} : vector<8x384xbf16>, vector<384x128xbf16>, vector<8x128xf32> -> vector<8x128xf32>
    %c3_80 = arith.constant 3 : index
    %c0_81 = arith.constant 0 : index
    %c0_82 = arith.constant 0 : index
    %209 = vector.load %arg13[%c3_80, %c0_81, %c0_82] : memref<4x1x128xf32, #tpu.memory_space<vmem>>, vector<1x1x128xf32>
    %210 = vector.shape_cast %209 : vector<1x1x128xf32> to vector<1x128xf32>
    %211 = vector.broadcast %210 : vector<1x128xf32> to vector<8x128xf32>
    %212 = arith.mulf %208, %211 : vector<8x128xf32>
    %c3_83 = arith.constant 3 : index
    %c0_84 = arith.constant 0 : index
    %c0_85 = arith.constant 0 : index
    %213 = vector.load %arg14[%c3_83, %c0_84, %c0_85] : memref<4x1x128xf32, #tpu.memory_space<vmem>>, vector<1x1x128xf32>
    %214 = vector.shape_cast %213 : vector<1x1x128xf32> to vector<1x128xf32>
    %215 = vector.broadcast %214 : vector<1x128xf32> to vector<8x128xf32>
    %216 = arith.addf %212, %215 : vector<8x128xf32>
    %217 = arith.truncf %216 : vector<8x128xf32> to vector<8x128xbf16>
    %c0_86 = arith.constant 0 : index
    %c0_87 = arith.constant 0 : index
    %218 = vector.load %arg15[%c0_86, %c0_87] : memref<128x128xbf16, #tpu.memory_space<vmem>>, vector<128x128xbf16>
    %cst_88 = arith.constant dense<0.000000e+00> : vector<8x128xf32>
    %219 = tpu.matmul %217, %218, %cst_88 {dimension_numbers = #tpu.dot_dimension_numbers<[1], [0], [0], [1], [0, 0, 1, 1], [], []>} : vector<8x128xbf16>, vector<128x128xbf16>, vector<8x128xf32> -> vector<8x128xf32>
    %c0_89 = arith.constant 0 : index
    %c0_90 = arith.constant 0 : index
    %220 = vector.load %arg16[%c0_89, %c0_90] : memref<1x128xf32, #tpu.memory_space<vmem>>, vector<1x128xf32>
    %221 = vector.broadcast %220 : vector<1x128xf32> to vector<8x128xf32>
    %222 = arith.addf %219, %221 : vector<8x128xf32>
    %c0_91 = arith.constant 0 : index
    %c0_92 = arith.constant 0 : index
    %c0_93 = arith.constant 0 : index
    %223 = vector.load %arg17[%c0_91, %c0_92, %c0_93] : memref<1x8x128xf32, #tpu.memory_space<vmem>>, vector<1x8x128xf32>
    %224 = vector.shape_cast %223 : vector<1x8x128xf32> to vector<8x128xf32>
    %225 = vector.shape_cast %222 : vector<8x128xf32> to vector<1x8x128xf32>
    tpu.vector_store %arg17[%c0_91, %c0_92, %c0_93], %225 {strides = array<i32>} : memref<1x8x128xf32, #tpu.memory_space<vmem>>, vector<1x8x128xf32>,
    return
  }
  func.func @transform_0(%arg0: i32) -> (i32, i32) {
    %c0_i32 = arith.constant 0 : i32
    %c0_i32_0 = arith.constant 0 : i32
    return %arg0, %c0_i32 : i32, i32
  }
  func.func @transform_1(%arg0: i32) -> (i32, i32) {
    %c0_i32 = arith.constant 0 : i32
    %c0_i32_0 = arith.constant 0 : i32
    return %arg0, %c0_i32 : i32, i32
  }
  func.func @transform_2(%arg0: i32) -> (i32, i32) {
    %c0_i32 = arith.constant 0 : i32
    %c0_i32_0 = arith.constant 0 : i32
    %c0_i32_1 = arith.constant 0 : i32
    return %c0_i32, %c0_i32_0 : i32, i32
  }
  func.func @transform_3(%arg0: i32) -> (i32, i32) {
    %c0_i32 = arith.constant 0 : i32
    %c0_i32_0 = arith.constant 0 : i32
    %c0_i32_1 = arith.constant 0 : i32
    return %c0_i32, %c0_i32_0 : i32, i32
  }
  func.func @transform_4(%arg0: i32) -> (i32, i32) {
    %c0_i32 = arith.constant 0 : i32
    %c0_i32_0 = arith.constant 0 : i32
    %c0_i32_1 = arith.constant 0 : i32
    return %c0_i32, %c0_i32_0 : i32, i32
  }
  func.func @transform_5(%arg0: i32) -> (i32, i32) {
    %c0_i32 = arith.constant 0 : i32
    %c0_i32_0 = arith.constant 0 : i32
    %c0_i32_1 = arith.constant 0 : i32
    return %c0_i32, %c0_i32_0 : i32, i32
  }
  func.func @transform_6(%arg0: i32) -> (i32, i32) {
    %c0_i32 = arith.constant 0 : i32
    %c0_i32_0 = arith.constant 0 : i32
    %c0_i32_1 = arith.constant 0 : i32
    return %c0_i32, %c0_i32_0 : i32, i32
  }
  func.func @transform_7(%arg0: i32) -> (i32, i32) {
    %c0_i32 = arith.constant 0 : i32
    %c0_i32_0 = arith.constant 0 : i32
    %c0_i32_1 = arith.constant 0 : i32
    return %c0_i32, %c0_i32_0 : i32, i32
  }
  func.func @transform_8(%arg0: i32) -> (i32, i32) {
    %c0_i32 = arith.constant 0 : i32
    %c0_i32_0 = arith.constant 0 : i32
    %c0_i32_1 = arith.constant 0 : i32
    return %c0_i32, %c0_i32_0 : i32, i32
  }
  func.func @transform_9(%arg0: i32) -> (i32, i32) {
    %c0_i32 = arith.constant 0 : i32
    %c0_i32_0 = arith.constant 0 : i32
    %c0_i32_1 = arith.constant 0 : i32
    return %c0_i32, %c0_i32_0 : i32, i32
  }
  func.func @transform_10(%arg0: i32) -> (i32, i32) {
    %c0_i32 = arith.constant 0 : i32
    %c0_i32_0 = arith.constant 0 : i32
    %c0_i32_1 = arith.constant 0 : i32
    return %c0_i32, %c0_i32_0 : i32, i32
  }
  func.func @transform_11(%arg0: i32) -> (i32, i32, i32) {
    %c0_i32 = arith.constant 0 : i32
    %c0_i32_0 = arith.constant 0 : i32
    %c0_i32_1 = arith.constant 0 : i32
    %c0_i32_2 = arith.constant 0 : i32
    return %c0_i32, %c0_i32_0, %c0_i32_1 : i32, i32, i32
  }
  func.func @transform_12(%arg0: i32) -> (i32, i32, i32) {
    %c0_i32 = arith.constant 0 : i32
    %c0_i32_0 = arith.constant 0 : i32
    %c0_i32_1 = arith.constant 0 : i32
    %c0_i32_2 = arith.constant 0 : i32
    return %c0_i32, %c0_i32_0, %c0_i32_1 : i32, i32, i32
  }
  func.func @transform_13(%arg0: i32) -> (i32, i32, i32) {
    %c0_i32 = arith.constant 0 : i32
    %c0_i32_0 = arith.constant 0 : i32
    %c0_i32_1 = arith.constant 0 : i32
    %c0_i32_2 = arith.constant 0 : i32
    return %c0_i32, %c0_i32_0, %c0_i32_1 : i32, i32, i32
  }
  func.func @transform_14(%arg0: i32) -> (i32, i32) {
    %c0_i32 = arith.constant 0 : i32
    %c0_i32_0 = arith.constant 0 : i32
    %c0_i32_1 = arith.constant 0 : i32
    return %c0_i32, %c0_i32_0 : i32, i32
  }
  func.func @transform_15(%arg0: i32) -> (i32, i32) {
    %c0_i32 = arith.constant 0 : i32
    %c0_i32_0 = arith.constant 0 : i32
    %c0_i32_1 = arith.constant 0 : i32
    return %c0_i32, %c0_i32_0 : i32, i32
  }
  func.func @transform_16(%arg0: i32) -> (i32, i32, i32) {
    %c0_i32 = arith.constant 0 : i32
    %c0_i32_0 = arith.constant 0 : i32
    %c0_i32_1 = arith.constant 0 : i32
    return %arg0, %c0_i32, %c0_i32_0 : i32, i32, i32
  }
}

</mosaic_0001>

<llo_original>
// kernel: textcnn_forward.1
$region0: #{textcnn_forward.1}
  #allocation0 [shape = 'u32[]', space=smem, size = 0x4, offset = 0x4, fixed_abs, tag = 'smem constant byte address 0x4 - core index']
  #allocation1 [shape = 'u32[144,128]{1,0:T(1,128)}', space=vmem, size = 0x12000, scoped, tag = 'internal scratch']
  %s0 = inlined_call_operand.hbm [shape: bf16[256,128], index: 0, kind: input, shape index: {}]
  %s1 = inlined_call_operand.hbm [shape: f32[256,1], index: 1, kind: input, shape index: {}]
  %s2 = inlined_call_operand.hbm [shape: f32[1,128], index: 2, kind: input, shape index: {}]
  %s3 = inlined_call_operand.hbm [shape: f32[1,128], index: 3, kind: input, shape index: {}]
  %s4 = inlined_call_operand.hbm [shape: f32[1,128], index: 4, kind: input, shape index: {}]
  %s5 = inlined_call_operand.hbm [shape: f32[1,128], index: 5, kind: input, shape index: {}]
  %s6 = inlined_call_operand.hbm [shape: bf16[128,128], index: 6, kind: input, shape index: {}]
  %s7 = inlined_call_operand.hbm [shape: bf16[128,128], index: 7, kind: input, shape index: {}]
  %s8 = inlined_call_operand.hbm [shape: f32[1,128], index: 8, kind: input, shape index: {}]
  %s9 = inlined_call_operand.hbm [shape: bf16[128,128], index: 9, kind: input, shape index: {}]
  %s10 = inlined_call_operand.hbm [shape: f32[1,128], index: 10, kind: input, shape index: {}]
  %s11 = inlined_call_operand.hbm [shape: bf16[4,384,128], index: 11, kind: input, shape index: {}]
  %s12 = inlined_call_operand.hbm [shape: f32[4,1,128], index: 12, kind: input, shape index: {}]
  %s13 = inlined_call_operand.hbm [shape: f32[4,1,128], index: 13, kind: input, shape index: {}]
  %s14 = inlined_call_operand.hbm [shape: bf16[128,128], index: 14, kind: input, shape index: {}]
  %s15 = inlined_call_operand.hbm [shape: f32[1,128], index: 15, kind: input, shape index: {}]
  %s16 = inlined_call_operand.hbm [shape: f32[2,8,128], index: 16, kind: output, shape index: {}]
  %s17 = sld [smem:[#allocation0]]
  $region161: #{textcnn_forward.1} parent=0
    _
  %s19 = ssub.s32 1, %s17
  %s20 = scalar_select 0, %s19, %s17
  $region1: #{textcnn_forward.1} parent=0
    #allocation2 [shape = 'u8[65536]{0}', space=vmem, size = 0x10000, scoped, tag = 'input window, operand 0']
    #allocation3 [shape = 's32[2]{0}', space=sflag, size = 0x8, scoped, tag = 'scoped memory for textcnn_forward.1']
    #allocation4 [shape = 's32[2]{0}', space=sflag, size = 0x8, scoped, tag = 'scoped memory for textcnn_forward.1']
    #allocation5 [shape = 'u8[131072]{0}', space=vmem, size = 0x20000, scoped, tag = 'input window, operand 1']
    #allocation6 [shape = 's32[2]{0}', space=sflag, size = 0x8, scoped, tag = 'scoped memory for textcnn_forward.1']
    #allocation7 [shape = 'u8[512]{0}', space=vmem, size = 0x400, scoped, tag = 'input window, operand 2, single buffered']
    #allocation8 [shape = 'u8[512]{0}', space=vmem, size = 0x400, scoped, tag = 'input window, operand 3, single buffered']
    #allocation9 [shape = 's32[1]{0}', space=sflag, size = 0x4, scoped, tag = 'scoped memory for textcnn_forward.1']
    #allocation10 [shape = 'u8[512]{0}', space=vmem, size = 0x400, scoped, tag = 'input window, operand 4, single buffered']
    #allocation11 [shape = 'u8[512]{0}', space=vmem, size = 0x400, scoped, tag = 'input window, operand 5, single buffered']
    #allocation12 [shape = 's32[1]{0}', space=sflag, size = 0x4, scoped, tag = 'scoped memory for textcnn_forward.1']
    #allocation13 [shape = 'u8[32768]{0}', space=vmem, size = 0x8000, scoped, tag = 'input window, operand 6, single buffered']
    #allocation14 [shape = 'u8[32768]{0}', space=vmem, size = 0x8000, scoped, tag = 'input window, operand 7, single buffered']
    #allocation15 [shape = 's32[1]{0}', space=sflag, size = 0x4, scoped, tag = 'scoped memory for textcnn_forward.1']
    #allocation16 [shape = 'u8[512]{0}', space=vmem, size = 0x400, scoped, tag = 'input window, operand 8, single buffered']
    #allocation17 [shape = 'u8[32768]{0}', space=vmem, size = 0x8000, scoped, tag = 'input window, operand 9, single buffered']
    #allocation18 [shape = 's32[1]{0}', space=sflag, size = 0x4, scoped, tag = 'scoped memory for textcnn_forward.1']
    #allocation19 [shape = 'u8[512]{0}', space=vmem, size = 0x400, scoped, tag = 'input window, operand 10, single buffered']
    #allocation20 [shape = 'u8[393216]{0}', space=vmem, size = 0x60000, scoped, tag = 'input window, operand 11, single buffered']
    #allocation21 [shape = 's32[1]{0}', space=sflag, size = 0x4, scoped, tag = 'scoped memory for textcnn_forward.1']
    #allocation22 [shape = 'u8[2048]{0}', space=vmem, size = 0x800, scoped, tag = 'input window, operand 12, single buffered']
    #allocation23 [shape = 'u8[2048]{0}', space=vmem, size = 0x800, scoped, tag = 'input window, operand 13, single buffered']
    #allocation24 [shape = 's32[1]{0}', space=sflag, size = 0x4, scoped, tag = 'scoped memory for textcnn_forward.1']
    #allocation25 [shape = 'u8[32768]{0}', space=vmem, size = 0x8000, scoped, tag = 'input window, operand 14, single buffered']
    #allocation26 [shape = 'u8[512]{0}', space=vmem, size = 0x400, scoped, tag = 'input window, operand 15, single buffered']
    #allocation27 [shape = 's32[1]{0}', space=sflag, size = 0x4, scoped, tag = 'scoped memory for textcnn_forward.1']
    #allocation28 [shape = 'u8[8192]{0}', space=vmem, size = 0x2000, scoped, tag = 'output window, operand 0']
    %21 = vsyncpa [#allocation3], 0
    %s22 = scalar_lea.sflag [#allocation3], 1
    %23 = vsyncpa %s22, 0
    %24 = vsyncpa [#allocation6], 0
    %s25 = scalar_lea.sflag [#allocation6], 1
    %26 = vsyncpa %s25, 0
    %27 = vsyncpa [#allocation9], 0
    %28 = vsyncpa [#allocation12], 0
    %29 = vsyncpa [#allocation15], 0
    %30 = vsyncpa [#allocation18], 0
    %31 = vsyncpa [#allocation21], 0
    %32 = vsyncpa [#allocation24], 0
    %33 = vsyncpa [#allocation27], 0
    %34 = vsyncpa [#allocation4], 0
    %s35 = scalar_lea.sflag [#allocation4], 1
    %36 = vsyncpa %s35, 0
    loop: start=0, step=1, limit=4
    $region2: #{textcnn_forward.1} parent=1 // loop_pre_header
      _
    $region3: #{textcnn_forward.1} parent=1 // loop_header
      %s38 = sphi 0, %s42
      %p39 = scmp.ge.s32.totalorder %s38, 4
      %s48 = sphi 0, %s50
      %s51 = sphi 0, %s48
      %s52 = sphi 0, %s51
      %s68 = sphi 0, %s52
      %s74 = sphi 0, %s76
      %s77 = sphi 0, %s74
      %s78 = sphi 0, %s77
      %s94 = sphi 0, %s78
      %s98 = sphi 0, %s98
      %s100 = sphi 0, %s98
      %s101 = sphi 0, %s100
      %s115 = sphi 0, %s101
      %s119 = sphi 0, %s119
      %s121 = sphi 0, %s119
      %s122 = sphi 0, %s121
      %s136 = sphi 0, %s122
      %s140 = sphi 0, %s140
      %s142 = sphi 0, %s140
      %s143 = sphi 0, %s142
      %s157 = sphi 0, %s143
      %s161 = sphi 0, %s161
      %s163 = sphi 0, %s161
      %s164 = sphi 0, %s163
      %s178 = sphi 0, %s164
      %s182 = sphi 0, %s182
      %s184 = sphi 0, %s182
      %s185 = sphi 0, %s184
      %s199 = sphi 0, %s185
      %s203 = sphi 0, %s203
      %s205 = sphi 0, %s203
      %s206 = sphi 0, %s205
      %s220 = sphi 0, %s206
      %s224 = sphi 0, %s224
      %s226 = sphi 0, %s224
      %s227 = sphi 0, %s226
      %s241 = sphi 0, %s227
      %s245 = sphi 0, %s245
      %s247 = sphi 0, %s245
      %s248 = sphi 0, %s247
      %s262 = sphi 0, %s248
      %s266 = sphi 0, %s266
      %s268 = sphi 0, %s266
      %s269 = sphi 0, %s268
      %s283 = sphi 0, %s269
      %s287 = sphi 0, %s287
      %s289 = sphi 0, %s287
      %s290 = sphi 0, %s289
      %s304 = sphi 0, %s290
      %s308 = sphi 0, %s308
      %s310 = sphi 0, %s308
      %s311 = sphi 0, %s310
      %s325 = sphi 0, %s311
      %s329 = sphi 0, %s329
      %s331 = sphi 0, %s329
      %s332 = sphi 0, %s331
      %s346 = sphi 0, %s332
      %s350 = sphi 0, %s350
      %s352 = sphi 0, %s350
      %s353 = sphi 0, %s352
      %s367 = sphi 0, %s353
      %s371 = sphi 0, %s371
      %s373 = sphi 0, %s371
      %s374 = sphi 0, %s373
      %s388 = sphi 0, %s374
      %s394 = sphi 0, %s396
      %s397 = sphi 0, %s394
      %s398 = sphi 0, %s397
      %s414 = sphi 0, %s398
    $region4: #{textcnn_forward.1} parent=1 // loop_header_branch
      %41 = sbr.rel (%p39) target = $region8
    $region5: #{textcnn_forward.1} parent=1 // loop_body
      %s43 = ssub.s32 %s38, 1
      %s44 = ssub.s32 %s38, 2
      %s45 = sadd.s32 %s38, 1
      %s46 = ssub.s32 %s38, %s45
      %p47 = scmp.eq.s32.totalorder %s46, 0
      %s49 = sadd.s32 %s48, 1
      %s50 = scalar_select %p47, %s48, %s49
      %p53 = pneg %p47
      %p54 = scmp.eq.s32.totalorder %s38, 1
      %p55 = por %p53, %p54
      %p56 = scmp.ne.s32.totalorder %s48, %s51
      %p57 = scmp.eq.s32.totalorder %s38, 0
      %p58 = por %p56, %p57
      %p59 = scmp.ne.s32.totalorder %s48, %s51
      %p60 = scmp.eq.s32.totalorder %s43, 1
      %p61 = por %p59, %p60
      %p62 = scmp.ne.s32.totalorder %s51, %s52
      %p63 = scmp.eq.s32.totalorder %s43, 0
      %p64 = por %p62, %p63
      %p65 = scmp.ne.s32.totalorder %s51, %s52
      %p66 = scmp.eq.s32.totalorder %s44, 1
      %p67 = por %p65, %p66
      %p69 = scmp.ne.s32.totalorder %s52, %s68
      %p70 = scmp.eq.s32.totalorder %s44, 0
      %p71 = por %p69, %p70
      %s72 = ssub.s32 %s38, %s45
      %p73 = scmp.eq.s32.totalorder %s72, 0
      %s75 = sadd.s32 %s74, 1
      %s76 = scalar_select %p73, %s74, %s75
      %p79 = pneg %p73
      %p80 = scmp.eq.s32.totalorder %s38, 1
      %p81 = por %p79, %p80
      %p82 = scmp.ne.s32.totalorder %s74, %s77
      %p83 = scmp.eq.s32.totalorder %s38, 0
      %p84 = por %p82, %p83
      %p85 = scmp.ne.s32.totalorder %s74, %s77
      %p86 = scmp.eq.s32.totalorder %s43, 1
      %p87 = por %p85, %p86
      %p88 = scmp.ne.s32.totalorder %s77, %s78
      %p89 = scmp.eq.s32.totalorder %s43, 0
      %p90 = por %p88, %p89
      %p91 = scmp.ne.s32.totalorder %s77, %s78
      %p92 = scmp.eq.s32.totalorder %s44, 1
      %p93 = por %p91, %p92
      %p95 = scmp.ne.s32.totalorder %s78, %s94
      %p96 = scmp.eq.s32.totalorder %s44, 0
      %p97 = por %p95, %p96
      %s99 = sadd.s32 %s98, 1
      %p102 = scmp.eq.s32.totalorder %s38, 1
      %p103 = scmp.ne.s32.totalorder %s98, %s100
      %p104 = scmp.eq.s32.totalorder %s38, 0
      %p105 = por %p103, %p104
      %p106 = scmp.ne.s32.totalorder %s98, %s100
      %p107 = scmp.eq.s32.totalorder %s43, 1
      %p108 = por %p106, %p107
      %p109 = scmp.ne.s32.totalorder %s100, %s101
      %p110 = scmp.eq.s32.totalorder %s43, 0
      %p111 = por %p109, %p110
      %p112 = scmp.ne.s32.totalorder %s100, %s101
      %p113 = scmp.eq.s32.totalorder %s44, 1
      %p114 = por %p112, %p113
      %p116 = scmp.ne.s32.totalorder %s101, %s115
      %p117 = scmp.eq.s32.totalorder %s44, 0
      %p118 = por %p116, %p117
      %s120 = sadd.s32 %s119, 1
      %p123 = scmp.eq.s32.totalorder %s38, 1
      %p124 = scmp.ne.s32.totalorder %s119, %s121
      %p125 = scmp.eq.s32.totalorder %s38, 0
      %p126 = por %p124, %p125
      %p127 = scmp.ne.s32.totalorder %s119, %s121
      %p128 = scmp.eq.s32.totalorder %s43, 1
      %p129 = por %p127, %p128
      %p130 = scmp.ne.s32.totalorder %s121, %s122
      %p131 = scmp.eq.s32.totalorder %s43, 0
      %p132 = por %p130, %p131
      %p133 = scmp.ne.s32.totalorder %s121, %s122
      %p134 = scmp.eq.s32.totalorder %s44, 1
      %p135 = por %p133, %p134
      %p137 = scmp.ne.s32.totalorder %s122, %s136
      %p138 = scmp.eq.s32.totalorder %s44, 0
      %p139 = por %p137, %p138
      %s141 = sadd.s32 %s140, 1
      %p144 = scmp.eq.s32.totalorder %s38, 1
      %p145 = scmp.ne.s32.totalorder %s140, %s142
      %p146 = scmp.eq.s32.totalorder %s38, 0
      %p147 = por %p145, %p146
      %p148 = scmp.ne.s32.totalorder %s140, %s142
      %p149 = scmp.eq.s32.totalorder %s43, 1
      %p150 = por %p148, %p149
      %p151 = scmp.ne.s32.totalorder %s142, %s143
      %p152 = scmp.eq.s32.totalorder %s43, 0
      %p153 = por %p151, %p152
      %p154 = scmp.ne.s32.totalorder %s142, %s143
      %p155 = scmp.eq.s32.totalorder %s44, 1
      %p156 = por %p154, %p155
      %p158 = scmp.ne.s32.totalorder %s143, %s157
      %p159 = scmp.eq.s32.totalorder %s44, 0
      %p160 = por %p158, %p159
      %s162 = sadd.s32 %s161, 1
      %p165 = scmp.eq.s32.totalorder %s38, 1
      %p166 = scmp.ne.s32.totalorder %s161, %s163
      %p167 = scmp.eq.s32.totalorder %s38, 0
      %p168 = por %p166, %p167
      %p169 = scmp.ne.s32.totalorder %s161, %s163
      %p170 = scmp.eq.s32.totalorder %s43, 1
      %p171 = por %p169, %p170
      %p172 = scmp.ne.s32.totalorder %s163, %s164
      %p173 = scmp.eq.s32.totalorder %s43, 0
      %p174 = por %p172, %p173
      %p175 = scmp.ne.s32.totalorder %s163, %s164
      %p176 = scmp.eq.s32.totalorder %s44, 1
      %p177 = por %p175, %p176
      %p179 = scmp.ne.s32.totalorder %s164, %s178
      %p180 = scmp.eq.s32.totalorder %s44, 0
      %p181 = por %p179, %p180
      %s183 = sadd.s32 %s182, 1
      %p186 = scmp.eq.s32.totalorder %s38, 1
      %p187 = scmp.ne.s32.totalorder %s182, %s184
      %p188 = scmp.eq.s32.totalorder %s38, 0
      %p189 = por %p187, %p188
      %p190 = scmp.ne.s32.totalorder %s182, %s184
      %p191 = scmp.eq.s32.totalorder %s43, 1
      %p192 = por %p190, %p191
      %p193 = scmp.ne.s32.totalorder %s184, %s185
      %p194 = scmp.eq.s32.totalorder %s43, 0
      %p195 = por %p193, %p194
      %p196 = scmp.ne.s32.totalorder %s184, %s185
      %p197 = scmp.eq.s32.totalorder %s44, 1
      %p198 = por %p196, %p197
      %p200 = scmp.ne.s32.totalorder %s185, %s199
      %p201 = scmp.eq.s32.totalorder %s44, 0
      %p202 = por %p200, %p201
      %s204 = sadd.s32 %s203, 1
      %p207 = scmp.eq.s32.totalorder %s38, 1
      %p208 = scmp.ne.s32.totalorder %s203, %s205
      %p209 = scmp.eq.s32.totalorder %s38, 0
      %p210 = por %p208, %p209
      %p211 = scmp.ne.s32.totalorder %s203, %s205
      %p212 = scmp.eq.s32.totalorder %s43, 1
      %p213 = por %p211, %p212
      %p214 = scmp.ne.s32.totalorder %s205, %s206
      %p215 = scmp.eq.s32.totalorder %s43, 0
      %p216 = por %p214, %p215
      %p217 = scmp.ne.s32.totalorder %s205, %s206
      %p218 = scmp.eq.s32.totalorder %s44, 1
      %p219 = por %p217, %p218
      %p221 = scmp.ne.s32.totalorder %s206, %s220
      %p222 = scmp.eq.s32.totalorder %s44, 0
      %p223 = por %p221, %p222
      %s225 = sadd.s32 %s224, 1
      %p228 = scmp.eq.s32.totalorder %s38, 1
      %p229 = scmp.ne.s32.totalorder %s224, %s226
      %p230 = scmp.eq.s32.totalorder %s38, 0
      %p231 = por %p229, %p230
      %p232 = scmp.ne.s32.totalorder %s224, %s226
      %p233 = scmp.eq.s32.totalorder %s43, 1
      %p234 = por %p232, %p233
      %p235 = scmp.ne.s32.totalorder %s226, %s227
      %p236 = scmp.eq.s32.totalorder %s43, 0
      %p237 = por %p235, %p236
      %p238 = scmp.ne.s32.totalorder %s226, %s227
      %p239 = scmp.eq.s32.totalorder %s44, 1
      %p240 = por %p238, %p239
      %p242 = scmp.ne.s32.totalorder %s227, %s241
      %p243 = scmp.eq.s32.totalorder %s44, 0
      %p244 = por %p242, %p243
      %s246 = sadd.s32 %s245, 1
      %p249 = scmp.eq.s32.totalorder %s38, 1
      %p250 = scmp.ne.s32.totalorder %s245, %s247
      %p251 = scmp.eq.s32.totalorder %s38, 0
      %p252 = por %p250, %p251
      %p253 = scmp.ne.s32.totalorder %s245, %s247
      %p254 = scmp.eq.s32.totalorder %s43, 1
      %p255 = por %p253, %p254
      %p256 = scmp.ne.s32.totalorder %s247, %s248
      %p257 = scmp.eq.s32.totalorder %s43, 0
      %p258 = por %p256, %p257
      %p259 = scmp.ne.s32.totalorder %s247, %s248
      %p260 = scmp.eq.s32.totalorder %s44, 1
      %p261 = por %p259, %p260
      %p263 = scmp.ne.s32.totalorder %s248, %s262
      %p264 = scmp.eq.s32.totalorder %s44, 0
      %p265 = por %p263, %p264
      %s267 = sadd.s32 %s266, 1
      %p270 = scmp.eq.s32.totalorder %s38, 1
      %p271 = scmp.ne.s32.totalorder %s266, %s268
      %p272 = scmp.eq.s32.totalorder %s38, 0
      %p273 = por %p271, %p272
      %p274 = scmp.ne.s32.totalorder %s266, %s268
      %p275 = scmp.eq.s32.totalorder %s43, 1
      %p276 = por %p274, %p275
      %p277 = scmp.ne.s32.totalorder %s268, %s269
      %p278 = scmp.eq.s32.totalorder %s43, 0
      %p279 = por %p277, %p278
      %p280 = scmp.ne.s32.totalorder %s268, %s269
      %p281 = scmp.eq.s32.totalorder %s44, 1
      %p282 = por %p280, %p281
      %p284 = scmp.ne.s32.totalorder %s269, %s283
      %p285 = scmp.eq.s32.totalorder %s44, 0
      %p286 = por %p284, %p285
      %s288 = sadd.s32 %s287, 1
      %p291 = scmp.eq.s32.totalorder %s38, 1
      %p292 = scmp.ne.s32.totalorder %s287, %s289
      %p293 = scmp.eq.s32.totalorder %s38, 0
      %p294 = por %p292, %p293
      %p295 = scmp.ne.s32.totalorder %s287, %s289
      %p296 = scmp.eq.s32.totalorder %s43, 1
      %p297 = por %p295, %p296
      %p298 = scmp.ne.s32.totalorder %s289, %s290
      %p299 = scmp.eq.s32.totalorder %s43, 0
      %p300 = por %p298, %p299
      %p301 = scmp.ne.s32.totalorder %s289, %s290
      %p302 = scmp.eq.s32.totalorder %s44, 1
      %p303 = por %p301, %p302
      %p305 = scmp.ne.s32.totalorder %s290, %s304
      %p306 = scmp.eq.s32.totalorder %s44, 0
      %p307 = por %p305, %p306
      %s309 = sadd.s32 %s308, 1
      %p312 = scmp.eq.s32.totalorder %s38, 1
      %p313 = scmp.ne.s32.totalorder %s308, %s310
      %p314 = scmp.eq.s32.totalorder %s38, 0
      %p315 = por %p313, %p314
      %p316 = scmp.ne.s32.totalorder %s308, %s310
      %p317 = scmp.eq.s32.totalorder %s43, 1
      %p318 = por %p316, %p317
      %p319 = scmp.ne.s32.totalorder %s310, %s311
      %p320 = scmp.eq.s32.totalorder %s43, 0
      %p321 = por %p319, %p320
      %p322 = scmp.ne.s32.totalorder %s310, %s311
      %p323 = scmp.eq.s32.totalorder %s44, 1
      %p324 = por %p322, %p323
      %p326 = scmp.ne.s32.totalorder %s311, %s325
      %p327 = scmp.eq.s32.totalorder %s44, 0
      %p328 = por %p326, %p327
      %s330 = sadd.s32 %s329, 1
      %p333 = scmp.eq.s32.totalorder %s38, 1
      %p334 = scmp.ne.s32.totalorder %s329, %s331
      %p335 = scmp.eq.s32.totalorder %s38, 0
      %p336 = por %p334, %p335
      %p337 = scmp.ne.s32.totalorder %s329, %s331
      %p338 = scmp.eq.s32.totalorder %s43, 1
      %p339 = por %p337, %p338
      %p340 = scmp.ne.s32.totalorder %s331, %s332
      %p341 = scmp.eq.s32.totalorder %s43, 0
      %p342 = por %p340, %p341
      %p343 = scmp.ne.s32.totalorder %s331, %s332
      %p344 = scmp.eq.s32.totalorder %s44, 1
      %p345 = por %p343, %p344
      %p347 = scmp.ne.s32.totalorder %s332, %s346
      %p348 = scmp.eq.s32.totalorder %s44, 0
      %p349 = por %p347, %p348
      %s351 = sadd.s32 %s350, 1
      %p354 = scmp.eq.s32.totalorder %s38, 1
      %p355 = scmp.ne.s32.totalorder %s350, %s352
      %p356 = scmp.eq.s32.totalorder %s38, 0
      %p357 = por %p355, %p356
      %p358 = scmp.ne.s32.totalorder %s350, %s352
      %p359 = scmp.eq.s32.totalorder %s43, 1
      %p360 = por %p358, %p359
      %p361 = scmp.ne.s32.totalorder %s352, %s353
      %p362 = scmp.eq.s32.totalorder %s43, 0
      %p363 = por %p361, %p362
      %p364 = scmp.ne.s32.totalorder %s352, %s353
      %p365 = scmp.eq.s32.totalorder %s44, 1
      %p366 = por %p364, %p365
      %p368 = scmp.ne.s32.totalorder %s353, %s367
      %p369 = scmp.eq.s32.totalorder %s44, 0
      %p370 = por %p368, %p369
      %s372 = sadd.s32 %s371, 1
      %p375 = scmp.eq.s32.totalorder %s38, 1
      %p376 = scmp.ne.s32.totalorder %s371, %s373
      %p377 = scmp.eq.s32.totalorder %s38, 0
      %p378 = por %p376, %p377
      %p379 = scmp.ne.s32.totalorder %s371, %s373
      %p380 = scmp.eq.s32.totalorder %s43, 1
      %p381 = por %p379, %p380
      %p382 = scmp.ne.s32.totalorder %s373, %s374
      %p383 = scmp.eq.s32.totalorder %s43, 0
      %p384 = por %p382, %p383
      %p385 = scmp.ne.s32.totalorder %s373, %s374
      %p386 = scmp.eq.s32.totalorder %s44, 1
      %p387 = por %p385, %p386
      %p389 = scmp.ne.s32.totalorder %s374, %s388
      %p390 = scmp.eq.s32.totalorder %s44, 0
      %p391 = por %p389, %p390
      %s392 = ssub.s32 %s38, %s45
      %p393 = scmp.eq.s32.totalorder %s392, 0
      %s395 = sadd.s32 %s394, 1
      %s396 = scalar_select %p393, %s394, %s395
      %p399 = pneg %p393
      %p400 = scmp.eq.s32.totalorder %s38, 1
      %p401 = por %p399, %p400
      %p402 = scmp.ne.s32.totalorder %s394, %s397
      %p403 = scmp.eq.s32.totalorder %s38, 0
      %p404 = por %p402, %p403
      %p405 = scmp.ne.s32.totalorder %s394, %s397
      %p406 = scmp.eq.s32.totalorder %s43, 1
      %p407 = por %p405, %p406
      %p408 = scmp.ne.s32.totalorder %s397, %s398
      %p409 = scmp.eq.s32.totalorder %s43, 0
      %p410 = por %p408, %p409
      %p411 = scmp.ne.s32.totalorder %s397, %s398
      %p412 = scmp.eq.s32.totalorder %s44, 1
      %p413 = por %p411, %p412
      %p415 = scmp.ne.s32.totalorder %s398, %s414
      %p416 = scmp.eq.s32.totalorder %s44, 0
      %p417 = por %p415, %p416
      %p418 = scmp.le.s32.totalorder 1, %s38
      %p419 = scmp.lt.s32.totalorder %s38, 3
      %p420 = pnand %p418, %p419
      %p421 = pneg %p420
      // Predicated region
      $region9: #{textcnn_forward.1} parent=5 // pred_check
        _
      $region10: #{textcnn_forward.1} parent=5 // pred_check_branch
        %423 = sbr.rel (%p420) target = $region12
      $region11: #{textcnn_forward.1} parent=5 // pred_region
        %s424 = ssub.s32 %s38, 1
        // Predicated region
        $region13: #{textcnn_forward.1} parent=11 // pred_check
          %p425 = pneg %p111
        $region14: #{textcnn_forward.1} parent=11 // pred_check_branch
          %427 = sbr.rel (%p425) target = $region16
        $region15: #{textcnn_forward.1} parent=11 // pred_region
          %s429 = ssub.s32 16, 16
          %430 = vsyncadd [#allocation6], %s429
          %s432 = sshll.u32 [#allocation7], 4
          %s433 = int_to_ptr.vmem [resolvable:$true] %s432
          %435 = dma.hbm_to_vmem [thread:$0]  %s2, 16, %s433, [#allocation6]
        $region16: #{textcnn_forward.1} parent=11 // pred_fallthru
          _
        // Predicated region
        $region17: #{textcnn_forward.1} parent=11 // pred_check
          %p436 = pneg %p132
        $region18: #{textcnn_forward.1} parent=11 // pred_check_branch
          %438 = sbr.rel (%p436) target = $region20
        $region19: #{textcnn_forward.1} parent=11 // pred_region
          %s440 = ssub.s32 16, 16
          %441 = vsyncadd [#allocation9], %s440
          %s443 = sshll.u32 [#allocation8], 4
          %s444 = int_to_ptr.vmem [resolvable:$true] %s443
          %446 = dma.hbm_to_vmem [thread:$0]  %s3, 16, %s444, [#allocation9]
        $region20: #{textcnn_forward.1} parent=11 // pred_fallthru
          _
        // Predicated region
        $region21: #{textcnn_forward.1} parent=11 // pred_check
          %p447 = pneg %p153
        $region22: #{textcnn_forward.1} parent=11 // pred_check_branch
          %449 = sbr.rel (%p447) target = $region24
        $region23: #{textcnn_forward.1} parent=11 // pred_region
          %s451 = ssub.s32 16, 16
          %452 = vsyncadd [#allocation9], %s451
          %s454 = sshll.u32 [#allocation10], 4
          %s455 = int_to_ptr.vmem [resolvable:$true] %s454
          %457 = dma.hbm_to_vmem [thread:$0]  %s4, 16, %s455, [#allocation9]
        $region24: #{textcnn_forward.1} parent=11 // pred_fallthru
          _
        // Predicated region
        $region25: #{textcnn_forward.1} parent=11 // pred_check
          %p458 = pneg %p174
        $region26: #{textcnn_forward.1} parent=11 // pred_check_branch
          %460 = sbr.rel (%p458) target = $region28
        $region27: #{textcnn_forward.1} parent=11 // pred_region
          %s462 = ssub.s32 16, 16
          %463 = vsyncadd [#allocation12], %s462
          %s465 = sshll.u32 [#allocation11], 4
          %s466 = int_to_ptr.vmem [resolvable:$true] %s465
          %468 = dma.hbm_to_vmem [thread:$0]  %s5, 16, %s466, [#allocation12]
        $region28: #{textcnn_forward.1} parent=11 // pred_fallthru
          _
        // Predicated region
        $region29: #{textcnn_forward.1} parent=11 // pred_check
          %p469 = pneg %p195
        $region30: #{textcnn_forward.1} parent=11 // pred_check_branch
          %471 = sbr.rel (%p469) target = $region32
        $region31: #{textcnn_forward.1} parent=11 // pred_region
          %s473 = ssub.s32 1024, 1024
          %474 = vsyncadd [#allocation12], %s473
          %s475 = sshll.u32 [#allocation13], 4
          %s476 = int_to_ptr.vmem [resolvable:$true] %s475
          %481 = dma.hbm_to_vmem [thread:$0]  %s6, 1024, %s476, [#allocation12], 64, 64, 4
        $region32: #{textcnn_forward.1} parent=11 // pred_fallthru
          _
        // Predicated region
        $region33: #{textcnn_forward.1} parent=11 // pred_check
          %p482 = pneg %p216
        $region34: #{textcnn_forward.1} parent=11 // pred_check_branch
          %484 = sbr.rel (%p482) target = $region36
        $region35: #{textcnn_forward.1} parent=11 // pred_region
          %s486 = ssub.s32 1024, 1024
          %487 = vsyncadd [#allocation15], %s486
          %s488 = sshll.u32 [#allocation14], 4
          %s489 = int_to_ptr.vmem [resolvable:$true] %s488
          %494 = dma.hbm_to_vmem [thread:$0]  %s7, 1024, %s489, [#allocation15], 64, 64, 4
        $region36: #{textcnn_forward.1} parent=11 // pred_fallthru
          _
        // Predicated region
        $region37: #{textcnn_forward.1} parent=11 // pred_check
          %p495 = pneg %p237
        $region38: #{textcnn_forward.1} parent=11 // pred_check_branch
          %497 = sbr.rel (%p495) target = $region40
        $region39: #{textcnn_forward.1} parent=11 // pred_region
          %s499 = ssub.s32 16, 16
          %500 = vsyncadd [#allocation15], %s499
          %s502 = sshll.u32 [#allocation16], 4
          %s503 = int_to_ptr.vmem [resolvable:$true] %s502
          %505 = dma.hbm_to_vmem [thread:$0]  %s8, 16, %s503, [#allocation15]
        $region40: #{textcnn_forward.1} parent=11 // pred_fallthru
          _
        // Predicated region
        $region41: #{textcnn_forward.1} parent=11 // pred_check
          %p506 = pneg %p258
        $region42: #{textcnn_forward.1} parent=11 // pred_check_branch
          %508 = sbr.rel (%p506) target = $region44
        $region43: #{textcnn_forward.1} parent=11 // pred_region
          %s510 = ssub.s32 1024, 1024
          %511 = vsyncadd [#allocation18], %s510
          %s512 = sshll.u32 [#allocation17], 4
          %s513 = int_to_ptr.vmem [resolvable:$true] %s512
          %518 = dma.hbm_to_vmem [thread:$0]  %s9, 1024, %s513, [#allocation18], 64, 64, 4
        $region44: #{textcnn_forward.1} parent=11 // pred_fallthru
          _
        // Predicated region
        $region45: #{textcnn_forward.1} parent=11 // pred_check
          %p519 = pneg %p279
        $region46: #{textcnn_forward.1} parent=11 // pred_check_branch
          %521 = sbr.rel (%p519) target = $region48
        $region47: #{textcnn_forward.1} parent=11 // pred_region
          %s523 = ssub.s32 16, 16
          %524 = vsyncadd [#allocation18], %s523
          %s526 = sshll.u32 [#allocation19], 4
          %s527 = int_to_ptr.vmem [resolvable:$true] %s526
          %529 = dma.hbm_to_vmem [thread:$0]  %s10, 16, %s527, [#allocation18]
        $region48: #{textcnn_forward.1} parent=11 // pred_fallthru
          _
        // Predicated region
        $region49: #{textcnn_forward.1} parent=11 // pred_check
          %p530 = pneg %p300
        $region50: #{textcnn_forward.1} parent=11 // pred_check_branch
          %532 = sbr.rel (%p530) target = $region52
        $region51: #{textcnn_forward.1} parent=11 // pred_region
          %s534 = ssub.s32 12288, 12288
          %535 = vsyncadd [#allocation21], %s534
          %s536 = sshll.u32 [#allocation20], 4
          %s537 = int_to_ptr.vmem [resolvable:$true] %s536
          %542 = dma.hbm_to_vmem [thread:$0]  %s11, 12288, %s537, [#allocation21], 64, 64, 4
        $region52: #{textcnn_forward.1} parent=11 // pred_fallthru
          _
        // Predicated region
        $region53: #{textcnn_forward.1} parent=11 // pred_check
          %p543 = pneg %p321
        $region54: #{textcnn_forward.1} parent=11 // pred_check_branch
          %545 = sbr.rel (%p543) target = $region56
        $region55: #{textcnn_forward.1} parent=11 // pred_region
          %s547 = ssub.s32 64, 64
          %548 = vsyncadd [#allocation21], %s547
          %s549 = sshll.u32 [#allocation22], 4
          %s550 = int_to_ptr.vmem [resolvable:$true] %s549
          %555 = dma.hbm_to_vmem [thread:$0]  %s12, 64, %s550, [#allocation21], 16, 16, 1
        $region56: #{textcnn_forward.1} parent=11 // pred_fallthru
          _
        // Predicated region
        $region57: #{textcnn_forward.1} parent=11 // pred_check
          %p556 = pneg %p342
        $region58: #{textcnn_forward.1} parent=11 // pred_check_branch
          %558 = sbr.rel (%p556) target = $region60
        $region59: #{textcnn_forward.1} parent=11 // pred_region
          %s560 = ssub.s32 64, 64
          %561 = vsyncadd [#allocation24], %s560
          %s562 = sshll.u32 [#allocation23], 4
          %s563 = int_to_ptr.vmem [resolvable:$true] %s562
          %568 = dma.hbm_to_vmem [thread:$0]  %s13, 64, %s563, [#allocation24], 16, 16, 1
        $region60: #{textcnn_forward.1} parent=11 // pred_fallthru
          _
        // Predicated region
        $region61: #{textcnn_forward.1} parent=11 // pred_check
          %p569 = pneg %p363
        $region62: #{textcnn_forward.1} parent=11 // pred_check_branch
          %571 = sbr.rel (%p569) target = $region64
        $region63: #{textcnn_forward.1} parent=11 // pred_region
          %s573 = ssub.s32 1024, 1024
          %574 = vsyncadd [#allocation24], %s573
          %s575 = sshll.u32 [#allocation25], 4
          %s576 = int_to_ptr.vmem [resolvable:$true] %s575
          %581 = dma.hbm_to_vmem [thread:$0]  %s14, 1024, %s576, [#allocation24], 64, 64, 4
        $region64: #{textcnn_forward.1} parent=11 // pred_fallthru
          _
        // Predicated region
        $region65: #{textcnn_forward.1} parent=11 // pred_check
          %p582 = pneg %p384
        $region66: #{textcnn_forward.1} parent=11 // pred_check_branch
          %584 = sbr.rel (%p582) target = $region68
        $region67: #{textcnn_forward.1} parent=11 // pred_region
          %s586 = ssub.s32 16, 16
          %587 = vsyncadd [#allocation27], %s586
          %s589 = sshll.u32 [#allocation26], 4
          %s590 = int_to_ptr.vmem [resolvable:$true] %s589
          %592 = dma.hbm_to_vmem [thread:$0]  %s15, 16, %s590, [#allocation27]
        $region68: #{textcnn_forward.1} parent=11 // pred_fallthru
          _
      $region12: #{textcnn_forward.1} parent=5 // pred_fallthru
        _
      %p593 = scmp.lt.s32.totalorder %s38, 2
      // Predicated region
      $region69: #{textcnn_forward.1} parent=5 // pred_check
        %p594 = pneg %p593
      $region70: #{textcnn_forward.1} parent=5 // pred_check_branch
        %596 = sbr.rel (%p594) target = $region72
      $region71: #{textcnn_forward.1} parent=5 // pred_region
        // Predicated region
        $region73: #{textcnn_forward.1} parent=71 // pred_check
          %p597 = pneg %p58
        $region74: #{textcnn_forward.1} parent=71 // pred_check_branch
          %599 = sbr.rel (%p597) target = $region76
        $region75: #{textcnn_forward.1} parent=71 // pred_region
          %s600 = sand.u32 %s48, 1
          %s601 = scalar_lea.sflag [#allocation3], %s600
          %s602 = sand.u32 %s48, 1
          %s603 = smul.addr %s602, 64
          %s604 = scalar_lea.vmem [#allocation2], %s603
          %s605 = smul.u32 16, %s38
          %s607 = ssub.s32 1024, 1024
          %608 = vsyncadd %s601, %s607
          %s609 = smul.addr %s605, 64
          %s610 = scalar_lea.hbm %s0, %s609
          %s611 = sshll.u32 %s604, 4
          %s612 = int_to_ptr.vmem [resolvable:$true] %s611
          %617 = dma.hbm_to_vmem [thread:$0]  %s610, 1024, %s612, %s601, 64, 64, 4
        $region76: #{textcnn_forward.1} parent=71 // pred_fallthru
          _
        // Predicated region
        $region77: #{textcnn_forward.1} parent=71 // pred_check
          %p618 = pneg %p84
        $region78: #{textcnn_forward.1} parent=71 // pred_check_branch
          %620 = sbr.rel (%p618) target = $region80
        $region79: #{textcnn_forward.1} parent=71 // pred_region
          %s621 = sand.u32 %s38, 1
          %s622 = scalar_lea.sflag [#allocation6], %s621
          %s623 = sand.u32 %s74, 1
          %s624 = smul.addr %s623, 128
          %s625 = scalar_lea.vmem [#allocation5], %s624
          %s626 = smul.u32 16, %s38
          %s628 = ssub.s32 2048, 2048
          %629 = vsyncadd %s622, %s628
          %s630 = smul.addr %s626, 128
          %s631 = scalar_lea.hbm %s1, %s630
          %s632 = sshll.u32 %s625, 4
          %s633 = int_to_ptr.vmem [resolvable:$true] %s632
          %638 = dma.hbm_to_vmem [thread:$0]  %s631, 2048, %s633, %s622, 128, 128, 8
        $region80: #{textcnn_forward.1} parent=71 // pred_fallthru
          _
      $region72: #{textcnn_forward.1} parent=5 // pred_fallthru
        _
      %p639 = scmp.le.s32.totalorder 1, %s38
      %p640 = scmp.lt.s32.totalorder %s38, 3
      %p641 = pnand %p639, %p640
      %p642 = pneg %p641
      // Predicated region
      $region81: #{textcnn_forward.1} parent=5 // pred_check
        _
      $region82: #{textcnn_forward.1} parent=5 // pred_check_branch
        %644 = sbr.rel (%p641) target = $region84
      $region83: #{textcnn_forward.1} parent=5 // pred_region
        %s645 = ssub.s32 %s38, 1
        %s646 = sand.u32 %s51, 1
        %s647 = scalar_lea.sflag [#allocation3], %s646
        %s648 = sand.u32 %s51, 1
        %s649 = smul.addr %s648, 64
        %s650 = scalar_lea.vmem [#allocation2], %s649
        // Predicated region
        $region85: #{textcnn_forward.1} parent=83 // pred_check
          %p651 = pneg %p64
        $region86: #{textcnn_forward.1} parent=83 // pred_check_branch
          %653 = sbr.rel (%p651) target = $region88
        $region87: #{textcnn_forward.1} parent=83 // pred_region
          %654 = dma.done %s647, 1024
        $region88: #{textcnn_forward.1} parent=83 // pred_fallthru
          _
        %s655 = sand.u32 %s43, 1
        %s656 = scalar_lea.sflag [#allocation6], %s655
        %s657 = sand.u32 %s77, 1
        %s658 = smul.addr %s657, 128
        %s659 = scalar_lea.vmem [#allocation5], %s658
        // Predicated region
        $region89: #{textcnn_forward.1} parent=83 // pred_check
          %p660 = pneg %p90
        $region90: #{textcnn_forward.1} parent=83 // pred_check_branch
          %662 = sbr.rel (%p660) target = $region92
        $region91: #{textcnn_forward.1} parent=83 // pred_region
          %663 = dma.done %s656, 2048
        $region92: #{textcnn_forward.1} parent=83 // pred_fallthru
          _
        // Predicated region
        $region93: #{textcnn_forward.1} parent=83 // pred_check
          %p664 = pneg %p111
        $region94: #{textcnn_forward.1} parent=83 // pred_check_branch
          %666 = sbr.rel (%p664) target = $region96
        $region95: #{textcnn_forward.1} parent=83 // pred_region
          %667 = dma.done [#allocation6], 16
        $region96: #{textcnn_forward.1} parent=83 // pred_fallthru
          _
        // Predicated region
        $region97: #{textcnn_forward.1} parent=83 // pred_check
          %p668 = pneg %p132
        $region98: #{textcnn_forward.1} parent=83 // pred_check_branch
          %670 = sbr.rel (%p668) target = $region100
        $region99: #{textcnn_forward.1} parent=83 // pred_region
          %671 = dma.done [#allocation9], 16
        $region100: #{textcnn_forward.1} parent=83 // pred_fallthru
          _
        // Predicated region
        $region101: #{textcnn_forward.1} parent=83 // pred_check
          %p672 = pneg %p153
        $region102: #{textcnn_forward.1} parent=83 // pred_check_branch
          %674 = sbr.rel (%p672) target = $region104
        $region103: #{textcnn_forward.1} parent=83 // pred_region
          %675 = dma.done [#allocation9], 16
        $region104: #{textcnn_forward.1} parent=83 // pred_fallthru
          _
        // Predicated region
        $region105: #{textcnn_forward.1} parent=83 // pred_check
          %p676 = pneg %p174
        $region106: #{textcnn_forward.1} parent=83 // pred_check_branch
          %678 = sbr.rel (%p676) target = $region108
        $region107: #{textcnn_forward.1} parent=83 // pred_region
          %679 = dma.done [#allocation12], 16
        $region108: #{textcnn_forward.1} parent=83 // pred_fallthru
          _
        // Predicated region
        $region109: #{textcnn_forward.1} parent=83 // pred_check
          %p680 = pneg %p195
        $region110: #{textcnn_forward.1} parent=83 // pred_check_branch
          %682 = sbr.rel (%p680) target = $region112
        $region111: #{textcnn_forward.1} parent=83 // pred_region
          %683 = dma.done [#allocation12], 1024
        $region112: #{textcnn_forward.1} parent=83 // pred_fallthru
          _
        // Predicated region
        $region113: #{textcnn_forward.1} parent=83 // pred_check
          %p684 = pneg %p216
        $region114: #{textcnn_forward.1} parent=83 // pred_check_branch
          %686 = sbr.rel (%p684) target = $region116
        $region115: #{textcnn_forward.1} parent=83 // pred_region
          %687 = dma.done [#allocation15], 1024
        $region116: #{textcnn_forward.1} parent=83 // pred_fallthru
          _
        // Predicated region
        $region117: #{textcnn_forward.1} parent=83 // pred_check
          %p688 = pneg %p237
        $region118: #{textcnn_forward.1} parent=83 // pred_check_branch
          %690 = sbr.rel (%p688) target = $region120
        $region119: #{textcnn_forward.1} parent=83 // pred_region
          %691 = dma.done [#allocation15], 16
        $region120: #{textcnn_forward.1} parent=83 // pred_fallthru
          _
        // Predicated region
        $region121: #{textcnn_forward.1} parent=83 // pred_check
          %p692 = pneg %p258
        $region122: #{textcnn_forward.1} parent=83 // pred_check_branch
          %694 = sbr.rel (%p692) target = $region124
        $region123: #{textcnn_forward.1} parent=83 // pred_region
          %695 = dma.done [#allocation18], 1024
        $region124: #{textcnn_forward.1} parent=83 // pred_fallthru
          _
        // Predicated region
        $region125: #{textcnn_forward.1} parent=83 // pred_check
          %p696 = pneg %p279
        $region126: #{textcnn_forward.1} parent=83 // pred_check_branch
          %698 = sbr.rel (%p696) target = $region128
        $region127: #{textcnn_forward.1} parent=83 // pred_region
          %699 = dma.done [#allocation18], 16
        $region128: #{textcnn_forward.1} parent=83 // pred_fallthru
          _
        // Predicated region
        $region129: #{textcnn_forward.1} parent=83 // pred_check
          %p700 = pneg %p300
        $region130: #{textcnn_forward.1} parent=83 // pred_check_branch
          %702 = sbr.rel (%p700) target = $region132
        $region131: #{textcnn_forward.1} parent=83 // pred_region
          %703 = dma.done [#allocation21], 12288
        $region132: #{textcnn_forward.1} parent=83 // pred_fallthru
          _
        // Predicated region
        $region133: #{textcnn_forward.1} parent=83 // pred_check
          %p704 = pneg %p321
        $region134: #{textcnn_forward.1} parent=83 // pred_check_branch
          %706 = sbr.rel (%p704) target = $region136
        $region135: #{textcnn_forward.1} parent=83 // pred_region
          %707 = dma.done [#allocation21], 64
        $region136: #{textcnn_forward.1} parent=83 // pred_fallthru
          _
        // Predicated region
        $region137: #{textcnn_forward.1} parent=83 // pred_check
          %p708 = pneg %p342
        $region138: #{textcnn_forward.1} parent=83 // pred_check_branch
          %710 = sbr.rel (%p708) target = $region140
        $region139: #{textcnn_forward.1} parent=83 // pred_region
          %711 = dma.done [#allocation24], 64
        $region140: #{textcnn_forward.1} parent=83 // pred_fallthru
          _
        // Predicated region
        $region141: #{textcnn_forward.1} parent=83 // pred_check
          %p712 = pneg %p363
        $region142: #{textcnn_forward.1} parent=83 // pred_check_branch
          %714 = sbr.rel (%p712) target = $region144
        $region143: #{textcnn_forward.1} parent=83 // pred_region
          %715 = dma.done [#allocation24], 1024
        $region144: #{textcnn_forward.1} parent=83 // pred_fallthru
          _
        // Predicated region
        $region145: #{textcnn_forward.1} parent=83 // pred_check
          %p716 = pneg %p384
        $region146: #{textcnn_forward.1} parent=83 // pred_check_branch
          %718 = sbr.rel (%p716) target = $region148
        $region147: #{textcnn_forward.1} parent=83 // pred_region
          %719 = dma.done [#allocation27], 16
        $region148: #{textcnn_forward.1} parent=83 // pred_fallthru
          _
        %s720 = sand.u32 %s51, 1
        %s721 = scalar_lea.sflag [#allocation3], %s720
        %s722 = sand.u32 %s51, 1
        %s723 = smul.addr %s722, 64
        %s724 = scalar_lea.vmem [#allocation2], %s723
        %p725 = pneg %p64
        %p726 = pneg %p61
        %s727 = sand.u32 %s43, 1
        %s728 = scalar_lea.sflag [#allocation6], %s727
        %s729 = sand.u32 %s77, 1
        %s730 = smul.addr %s729, 128
        %s731 = scalar_lea.vmem [#allocation5], %s730
        %p732 = pneg %p90
        %p733 = pneg %p87
        %p734 = pneg %p111
        %p735 = pneg %p108
        %p736 = pneg %p132
        %p737 = pneg %p129
        %p738 = pneg %p153
        %p739 = pneg %p150
        %p740 = pneg %p174
        %p741 = pneg %p171
        %p742 = pneg %p195
        %p743 = pneg %p192
        %p744 = pneg %p216
        %p745 = pneg %p213
        %p746 = pneg %p237
        %p747 = pneg %p234
        %p748 = pneg %p258
        %p749 = pneg %p255
        %p750 = pneg %p279
        %p751 = pneg %p276
        %p752 = pneg %p300
        %p753 = pneg %p297
        %p754 = pneg %p321
        %p755 = pneg %p318
        %p756 = pneg %p342
        %p757 = pneg %p339
        %p758 = pneg %p363
        %p759 = pneg %p360
        %p760 = pneg %p384
        %p761 = pneg %p381
        %p762 = pneg %p410
        %p763 = pneg %p407
        %s764 = sand.u32 %s397, 1
        %s765 = scalar_lea.sflag [#allocation4], %s764
        %s766 = sand.u32 %s397, 1
        %s767 = smul.addr %s766, 8
        %s768 = scalar_lea.vmem [#allocation28], %s767
        %s769 = smul.u32 16, %s43
        %s770 = smul.u32 16, %s43
        %v772 = vld [vmem:[%s659] sm:$0xff]
        %v773 = vld [vmem:[%s659 + $0x8] sm:$0xff]
        %v774 = vld [vmem:[%s659 + $0x10] sm:$0xff]
        %v775 = vld [vmem:[%s659 + $0x18] sm:$0xff]
        %v776 = vld [vmem:[%s659 + $0x20] sm:$0xff]
        %v777 = vld [vmem:[%s659 + $0x28] sm:$0xff]
        %v778 = vld [vmem:[%s659 + $0x30] sm:$0xff]
        %v779 = vld [vmem:[%s659 + $0x38] sm:$0xff]
        %v780 = vld [vmem:[%s659 + $0x40] sm:$0xff]
        %v781 = vld [vmem:[%s659 + $0x48] sm:$0xff]
        %v782 = vld [vmem:[%s659 + $0x50] sm:$0xff]
        %v783 = vld [vmem:[%s659 + $0x58] sm:$0xff]
        %v784 = vld [vmem:[%s659 + $0x60] sm:$0xff]
        %v785 = vld [vmem:[%s659 + $0x68] sm:$0xff]
        %v786 = vld [vmem:[%s659 + $0x70] sm:$0xff]
        %v787 = vld [vmem:[%s659 + $0x78] sm:$0xff]
        %v788 = vld [vmem:[#allocation7] sm:$0x1]
        %790 = vset.pattern.permute.xlu0 0
        %791 = vperm.xlu0 %790, %v772
        %v792 = vpop.permute.xlu0 %791
        %795 = vset.pattern.permute.xlu0 0
        %796 = vperm.xlu0 %795, %v773
        %v797 = vpop.permute.xlu0 %796
        %800 = vset.pattern.permute.xlu0 0
        %801 = vperm.xlu0 %800, %v774
        %v802 = vpop.permute.xlu0 %801
        %805 = vset.pattern.permute.xlu0 0
        %806 = vperm.xlu0 %805, %v775
        %v807 = vpop.permute.xlu0 %806
        %810 = vset.pattern.permute.xlu0 0
        %811 = vperm.xlu0 %810, %v776
        %v812 = vpop.permute.xlu0 %811
        %815 = vset.pattern.permute.xlu0 0
        %816 = vperm.xlu0 %815, %v777
        %v817 = vpop.permute.xlu0 %816
        %820 = vset.pattern.permute.xlu0 0
        %821 = vperm.xlu0 %820, %v778
        %v822 = vpop.permute.xlu0 %821
        %825 = vset.pattern.permute.xlu0 0
        %826 = vperm.xlu0 %825, %v779
        %v827 = vpop.permute.xlu0 %826
        %830 = vset.pattern.permute.xlu0 0
        %831 = vperm.xlu0 %830, %v780
        %v832 = vpop.permute.xlu0 %831
        %835 = vset.pattern.permute.xlu0 0
        %836 = vperm.xlu0 %835, %v781
        %v837 = vpop.permute.xlu0 %836
        %840 = vset.pattern.permute.xlu0 0
        %841 = vperm.xlu0 %840, %v782
        %v842 = vpop.permute.xlu0 %841
        %845 = vset.pattern.permute.xlu0 0
        %846 = vperm.xlu0 %845, %v783
        %v847 = vpop.permute.xlu0 %846
        %850 = vset.pattern.permute.xlu0 0
        %851 = vperm.xlu0 %850, %v784
        %v852 = vpop.permute.xlu0 %851
        %855 = vset.pattern.permute.xlu0 0
        %856 = vperm.xlu0 %855, %v785
        %v857 = vpop.permute.xlu0 %856
        %860 = vset.pattern.permute.xlu0 0
        %861 = vperm.xlu0 %860, %v786
        %v862 = vpop.permute.xlu0 %861
        %865 = vset.pattern.permute.xlu0 0
        %866 = vperm.xlu0 %865, %v787
        %v867 = vpop.permute.xlu0 %866
        %v870 = vlaneseq
        %v871 = vshrl.u32 %v870, 7
        %v872 = vsub.s32 0, %v871
        %v873 = vrot.slane %v788, %v872
        %v875 = vmul.f32 %v792, %v873
        %v876 = vmul.f32 %v797, %v873
        %v877 = vmul.f32 %v802, %v873
        %v878 = vmul.f32 %v807, %v873
        %v879 = vmul.f32 %v812, %v873
        %v880 = vmul.f32 %v817, %v873
        %v881 = vmul.f32 %v822, %v873
        %v882 = vmul.f32 %v827, %v873
        %v883 = vmul.f32 %v832, %v873
        %v884 = vmul.f32 %v837, %v873
        %v885 = vmul.f32 %v842, %v873
        %v886 = vmul.f32 %v847, %v873
        %v887 = vmul.f32 %v852, %v873
        %v888 = vmul.f32 %v857, %v873
        %v889 = vmul.f32 %v862, %v873
        %v890 = vmul.f32 %v867, %v873
        %v891 = vld [vmem:[#allocation8] sm:$0x1]
        %v893 = vlaneseq
        %v894 = vshrl.u32 %v893, 7
        %v895 = vsub.s32 0, %v894
        %v896 = vrot.slane %v891, %v895
        %v898 = vadd.f32 %v875, %v896
        %v899 = vadd.f32 %v876, %v896
        %v900 = vadd.f32 %v877, %v896
        %v901 = vadd.f32 %v878, %v896
        %v902 = vadd.f32 %v879, %v896
        %v903 = vadd.f32 %v880, %v896
        %v904 = vadd.f32 %v881, %v896
        %v905 = vadd.f32 %v882, %v896
        %v906 = vadd.f32 %v883, %v896
        %v907 = vadd.f32 %v884, %v896
        %v908 = vadd.f32 %v885, %v896
        %v909 = vadd.f32 %v886, %v896
        %v910 = vadd.f32 %v887, %v896
        %v911 = vadd.f32 %v888, %v896
        %v912 = vadd.f32 %v889, %v896
        %v913 = vadd.f32 %v890, %v896
        %914 = vadd.xlane.f32.xlu0 %v898
        %v915 = vpop.xlane.xlu0 %914
        %916 = vadd.xlane.f32.xlu0 %v899
        %v917 = vpop.xlane.xlu0 %916
        %918 = vadd.xlane.f32.xlu0 %v900
        %v919 = vpop.xlane.xlu0 %918
        %920 = vadd.xlane.f32.xlu0 %v901
        %v921 = vpop.xlane.xlu0 %920
        %922 = vadd.xlane.f32.xlu0 %v902
        %v923 = vpop.xlane.xlu0 %922
        %924 = vadd.xlane.f32.xlu0 %v903
        %v925 = vpop.xlane.xlu0 %924
        %926 = vadd.xlane.f32.xlu0 %v904
        %v927 = vpop.xlane.xlu0 %926
        %928 = vadd.xlane.f32.xlu0 %v905
        %v929 = vpop.xlane.xlu0 %928
        %930 = vadd.xlane.f32.xlu0 %v906
        %v931 = vpop.xlane.xlu0 %930
        %932 = vadd.xlane.f32.xlu0 %v907
        %v933 = vpop.xlane.xlu0 %932
        %934 = vadd.xlane.f32.xlu0 %v908
        %v935 = vpop.xlane.xlu0 %934
        %936 = vadd.xlane.f32.xlu0 %v909
        %v937 = vpop.xlane.xlu0 %936
        %938 = vadd.xlane.f32.xlu0 %v910
        %v939 = vpop.xlane.xlu0 %938
        %940 = vadd.xlane.f32.xlu0 %v911
        %v941 = vpop.xlane.xlu0 %940
        %942 = vadd.xlane.f32.xlu0 %v912
        %v943 = vpop.xlane.xlu0 %942
        %944 = vadd.xlane.f32.xlu0 %v913
        %v945 = vpop.xlane.xlu0 %944
        %v946 = vrcp.pop 128.0
        %v947 = vmul.f32 %v915, %v946
        %v948 = vmul.f32 %v917, %v946
        %v949 = vmul.f32 %v919, %v946
        %v950 = vmul.f32 %v921, %v946
        %v951 = vmul.f32 %v923, %v946
        %v952 = vmul.f32 %v925, %v946
        %v953 = vmul.f32 %v927, %v946
        %v954 = vmul.f32 %v929, %v946
        %v955 = vmul.f32 %v931, %v946
        %v956 = vmul.f32 %v933, %v946
        %v957 = vmul.f32 %v935, %v946
        %v958 = vmul.f32 %v937, %v946
        %v959 = vmul.f32 %v939, %v946
        %v960 = vmul.f32 %v941, %v946
        %v961 = vmul.f32 %v943, %v946
        %v962 = vmul.f32 %v945, %v946
        %v963 = vsub.f32 %v898, %v947
        %v964 = vsub.f32 %v899, %v948
        %v965 = vsub.f32 %v900, %v949
        %v966 = vsub.f32 %v901, %v950
        %v967 = vsub.f32 %v902, %v951
        %v968 = vsub.f32 %v903, %v952
        %v969 = vsub.f32 %v904, %v953
        %v970 = vsub.f32 %v905, %v954
        %v971 = vsub.f32 %v906, %v955
        %v972 = vsub.f32 %v907, %v956
        %v973 = vsub.f32 %v908, %v957
        %v974 = vsub.f32 %v909, %v958
        %v975 = vsub.f32 %v910, %v959
        %v976 = vsub.f32 %v911, %v960
        %v977 = vsub.f32 %v912, %v961
        %v978 = vsub.f32 %v913, %v962
        %v979 = vmul.f32 %v963, %v963
        %v980 = vmul.f32 %v964, %v964
        %v981 = vmul.f32 %v965, %v965
        %v982 = vmul.f32 %v966, %v966
        %v983 = vmul.f32 %v967, %v967
        %v984 = vmul.f32 %v968, %v968
        %v985 = vmul.f32 %v969, %v969
        %v986 = vmul.f32 %v970, %v970
        %v987 = vmul.f32 %v971, %v971
        %v988 = vmul.f32 %v972, %v972
        %v989 = vmul.f32 %v973, %v973
        %v990 = vmul.f32 %v974, %v974
        %v991 = vmul.f32 %v975, %v975
        %v992 = vmul.f32 %v976, %v976
        %v993 = vmul.f32 %v977, %v977
        %v994 = vmul.f32 %v978, %v978
        %995 = vadd.xlane.f32.xlu0 %v979
        %v996 = vpop.xlane.xlu0 %995
        %997 = vadd.xlane.f32.xlu0 %v980
        %v998 = vpop.xlane.xlu0 %997
        %999 = vadd.xlane.f32.xlu0 %v981
        %v1000 = vpop.xlane.xlu0 %999
        %1001 = vadd.xlane.f32.xlu0 %v982
        %v1002 = vpop.xlane.xlu0 %1001
        %1003 = vadd.xlane.f32.xlu0 %v983
        %v1004 = vpop.xlane.xlu0 %1003
        %1005 = vadd.xlane.f32.xlu0 %v984
        %v1006 = vpop.xlane.xlu0 %1005
        %1007 = vadd.xlane.f32.xlu0 %v985
        %v1008 = vpop.xlane.xlu0 %1007
        %1009 = vadd.xlane.f32.xlu0 %v986
        %v1010 = vpop.xlane.xlu0 %1009
        %1011 = vadd.xlane.f32.xlu0 %v987
        %v1012 = vpop.xlane.xlu0 %1011
        %1013 = vadd.xlane.f32.xlu0 %v988
        %v1014 = vpop.xlane.xlu0 %1013
        %1015 = vadd.xlane.f32.xlu0 %v989
        %v1016 = vpop.xlane.xlu0 %1015
        %1017 = vadd.xlane.f32.xlu0 %v990
        %v1018 = vpop.xlane.xlu0 %1017
        %1019 = vadd.xlane.f32.xlu0 %v991
        %v1020 = vpop.xlane.xlu0 %1019
        %1021 = vadd.xlane.f32.xlu0 %v992
        %v1022 = vpop.xlane.xlu0 %1021
        %1023 = vadd.xlane.f32.xlu0 %v993
        %v1024 = vpop.xlane.xlu0 %1023
        %1025 = vadd.xlane.f32.xlu0 %v994
        %v1026 = vpop.xlane.xlu0 %1025
        %v1027 = vmul.f32 %v996, %v946
        %v1028 = vmul.f32 %v998, %v946
        %v1029 = vmul.f32 %v1000, %v946
        %v1030 = vmul.f32 %v1002, %v946
        %v1031 = vmul.f32 %v1004, %v946
        %v1032 = vmul.f32 %v1006, %v946
        %v1033 = vmul.f32 %v1008, %v946
        %v1034 = vmul.f32 %v1010, %v946
        %v1035 = vmul.f32 %v1012, %v946
        %v1036 = vmul.f32 %v1014, %v946
        %v1037 = vmul.f32 %v1016, %v946
        %v1038 = vmul.f32 %v1018, %v946
        %v1039 = vmul.f32 %v1020, %v946
        %v1040 = vmul.f32 %v1022, %v946
        %v1041 = vmul.f32 %v1024, %v946
        %v1042 = vmul.f32 %v1026, %v946
        %v1043 = vadd.f32 %v1027, 1e-05
        %v1044 = vadd.f32 %v1028, 1e-05
        %v1045 = vadd.f32 %v1029, 1e-05
        %v1046 = vadd.f32 %v1030, 1e-05
        %v1047 = vadd.f32 %v1031, 1e-05
        %v1048 = vadd.f32 %v1032, 1e-05
        %v1049 = vadd.f32 %v1033, 1e-05
        %v1050 = vadd.f32 %v1034, 1e-05
        %v1051 = vadd.f32 %v1035, 1e-05
        %v1052 = vadd.f32 %v1036, 1e-05
        %v1053 = vadd.f32 %v1037, 1e-05
        %v1054 = vadd.f32 %v1038, 1e-05
        %v1055 = vadd.f32 %v1039, 1e-05
        %v1056 = vadd.f32 %v1040, 1e-05
        %v1057 = vadd.f32 %v1041, 1e-05
        %v1058 = vadd.f32 %v1042, 1e-05
        %v1059 = vrsqrt.pop %v1043
        %v1060 = vrsqrt.pop %v1044
        %v1061 = vrsqrt.pop %v1045
        %v1062 = vrsqrt.pop %v1046
        %v1063 = vrsqrt.pop %v1047
        %v1064 = vrsqrt.pop %v1048
        %v1065 = vrsqrt.pop %v1049
        %v1066 = vrsqrt.pop %v1050
        %v1067 = vrsqrt.pop %v1051
        %v1068 = vrsqrt.pop %v1052
        %v1069 = vrsqrt.pop %v1053
        %v1070 = vrsqrt.pop %v1054
        %v1071 = vrsqrt.pop %v1055
        %v1072 = vrsqrt.pop %v1056
        %v1073 = vrsqrt.pop %v1057
        %v1074 = vrsqrt.pop %v1058
        %v1075 = vmul.f32 %v963, %v1059
        %v1076 = vmul.f32 %v964, %v1060
        %v1077 = vmul.f32 %v965, %v1061
        %v1078 = vmul.f32 %v966, %v1062
        %v1079 = vmul.f32 %v967, %v1063
        %v1080 = vmul.f32 %v968, %v1064
        %v1081 = vmul.f32 %v969, %v1065
        %v1082 = vmul.f32 %v970, %v1066
        %v1083 = vmul.f32 %v971, %v1067
        %v1084 = vmul.f32 %v972, %v1068
        %v1085 = vmul.f32 %v973, %v1069
        %v1086 = vmul.f32 %v974, %v1070
        %v1087 = vmul.f32 %v975, %v1071
        %v1088 = vmul.f32 %v976, %v1072
        %v1089 = vmul.f32 %v977, %v1073
        %v1090 = vmul.f32 %v978, %v1074
        %v1091 = vld [vmem:[#allocation10] sm:$0x1]
        %v1093 = vlaneseq
        %v1094 = vshrl.u32 %v1093, 7
        %v1095 = vsub.s32 0, %v1094
        %v1096 = vrot.slane %v1091, %v1095
        %v1098 = vmul.f32 %v1075, %v1096
        %v1099 = vmul.f32 %v1076, %v1096
        %v1100 = vmul.f32 %v1077, %v1096
        %v1101 = vmul.f32 %v1078, %v1096
        %v1102 = vmul.f32 %v1079, %v1096
        %v1103 = vmul.f32 %v1080, %v1096
        %v1104 = vmul.f32 %v1081, %v1096
        %v1105 = vmul.f32 %v1082, %v1096
        %v1106 = vmul.f32 %v1083, %v1096
        %v1107 = vmul.f32 %v1084, %v1096
        %v1108 = vmul.f32 %v1085, %v1096
        %v1109 = vmul.f32 %v1086, %v1096
        %v1110 = vmul.f32 %v1087, %v1096
        %v1111 = vmul.f32 %v1088, %v1096
        %v1112 = vmul.f32 %v1089, %v1096
        %v1113 = vmul.f32 %v1090, %v1096
        %v1114 = vld [vmem:[#allocation11] sm:$0x1]
        %v1116 = vlaneseq
        %v1117 = vshrl.u32 %v1116, 7
        %v1118 = vsub.s32 0, %v1117
        %v1119 = vrot.slane %v1114, %v1118
        %v1121 = vadd.f32 %v1098, %v1119
        %v1122 = vadd.f32 %v1099, %v1119
        %v1123 = vadd.f32 %v1100, %v1119
        %v1124 = vadd.f32 %v1101, %v1119
        %v1125 = vadd.f32 %v1102, %v1119
        %v1126 = vadd.f32 %v1103, %v1119
        %v1127 = vadd.f32 %v1104, %v1119
        %v1128 = vadd.f32 %v1105, %v1119
        %v1129 = vadd.f32 %v1106, %v1119
        %v1130 = vadd.f32 %v1107, %v1119
        %v1131 = vadd.f32 %v1108, %v1119
        %v1132 = vadd.f32 %v1109, %v1119
        %v1133 = vadd.f32 %v1110, %v1119
        %v1134 = vadd.f32 %v1111, %v1119
        %v1135 = vadd.f32 %v1112, %v1119
        %v1136 = vadd.f32 %v1113, %v1119
        %v1137 = vld [vmem:[%s650] sm:$0xf]
        %v1138 = vld [vmem:[%s650 + $0x4] sm:$0xf]
        %v1139 = vld [vmem:[%s650 + $0x8] sm:$0xf]
        %v1140 = vld [vmem:[%s650 + $0xc] sm:$0xf]
        %v1141 = vld [vmem:[%s650 + $0x10] sm:$0xf]
        %v1142 = vld [vmem:[%s650 + $0x14] sm:$0xf]
        %v1143 = vld [vmem:[%s650 + $0x18] sm:$0xf]
        %v1144 = vld [vmem:[%s650 + $0x1c] sm:$0xf]
        %v1145 = vld [vmem:[%s650 + $0x20] sm:$0xf]
        %v1146 = vld [vmem:[%s650 + $0x24] sm:$0xf]
        %v1147 = vld [vmem:[%s650 + $0x28] sm:$0xf]
        %v1148 = vld [vmem:[%s650 + $0x2c] sm:$0xf]
        %v1149 = vld [vmem:[%s650 + $0x30] sm:$0xf]
        %v1150 = vld [vmem:[%s650 + $0x34] sm:$0xf]
        %v1151 = vld [vmem:[%s650 + $0x38] sm:$0xf]
        %v1152 = vld [vmem:[%s650 + $0x3c] sm:$0xf]
        %v1153 = vld [vmem:[#allocation13] sm:$0xf]
        %v1154 = vld [vmem:[#allocation13 + $0x4] sm:$0xf]
        %v1155 = vld [vmem:[#allocation13 + $0x8] sm:$0xf]
        %v1156 = vld [vmem:[#allocation13 + $0xc] sm:$0xf]
        %v1157 = vld [vmem:[#allocation13 + $0x10] sm:$0xf]
        %v1158 = vld [vmem:[#allocation13 + $0x14] sm:$0xf]
        %v1159 = vld [vmem:[#allocation13 + $0x18] sm:$0xf]
        %v1160 = vld [vmem:[#allocation13 + $0x1c] sm:$0xf]
        %v1161 = vld [vmem:[#allocation13 + $0x20] sm:$0xf]
        %v1162 = vld [vmem:[#allocation13 + $0x24] sm:$0xf]
        %v1163 = vld [vmem:[#allocation13 + $0x28] sm:$0xf]
        %v1164 = vld [vmem:[#allocation13 + $0x2c] sm:$0xf]
        %v1165 = vld [vmem:[#allocation13 + $0x30] sm:$0xf]
        %v1166 = vld [vmem:[#allocation13 + $0x34] sm:$0xf]
        %v1167 = vld [vmem:[#allocation13 + $0x38] sm:$0xf]
        %v1168 = vld [vmem:[#allocation13 + $0x3c] sm:$0xf]
        %v1169 = vpack.c.bf16 %v1122, %v1121
        %v1170 = vpack.c.bf16 %v1124, %v1123
        %v1171 = vpack.c.bf16 %v1126, %v1125
        %v1172 = vpack.c.bf16 %v1128, %v1127
        %v1173 = vpack.c.bf16 %v1130, %v1129
        %v1174 = vpack.c.bf16 %v1132, %v1131
        %v1175 = vpack.c.bf16 %v1134, %v1133
        %v1176 = vpack.c.bf16 %v1136, %v1135
        %v1177 = vld [vmem:[#allocation14] sm:$0xf]
        %v1178 = vld [vmem:[#allocation14 + $0x4] sm:$0xf]
        %v1179 = vld [vmem:[#allocation14 + $0x8] sm:$0xf]
        %v1180 = vld [vmem:[#allocation14 + $0xc] sm:$0xf]
        %v1181 = vld [vmem:[#allocation14 + $0x10] sm:$0xf]
        %v1182 = vld [vmem:[#allocation14 + $0x14] sm:$0xf]
        %v1183 = vld [vmem:[#allocation14 + $0x18] sm:$0xf]
        %v1184 = vld [vmem:[#allocation14 + $0x1c] sm:$0xf]
        %v1185 = vld [vmem:[#allocation14 + $0x20] sm:$0xf]
        %v1186 = vld [vmem:[#allocation14 + $0x24] sm:$0xf]
        %v1187 = vld [vmem:[#allocation14 + $0x28] sm:$0xf]
        %v1188 = vld [vmem:[#allocation14 + $0x2c] sm:$0xf]
        %v1189 = vld [vmem:[#allocation14 + $0x30] sm:$0xf]
        %v1190 = vld [vmem:[#allocation14 + $0x34] sm:$0xf]
        %v1191 = vld [vmem:[#allocation14 + $0x38] sm:$0xf]
        %v1192 = vld [vmem:[#allocation14 + $0x3c] sm:$0xf]
        %v1209 = vunpack.c.l.b16 %v1177
        %v1210 = vunpack.c.l.b16 %v1178
        %v1211 = vunpack.c.l.b16 %v1179
        %v1212 = vunpack.c.l.b16 %v1180
        %v1213 = vunpack.c.l.b16 %v1181
        %v1214 = vunpack.c.l.b16 %v1182
        %v1215 = vunpack.c.l.b16 %v1183
        %v1216 = vunpack.c.l.b16 %v1184
        %v1217 = vunpack.c.l.b16 %v1185
        %v1218 = vunpack.c.l.b16 %v1186
        %v1219 = vunpack.c.l.b16 %v1187
        %v1220 = vunpack.c.l.b16 %v1188
        %v1221 = vunpack.c.l.b16 %v1189
        %v1222 = vunpack.c.l.b16 %v1190
        %v1223 = vunpack.c.l.b16 %v1191
        %v1224 = vunpack.c.l.b16 %v1192
        %v1225 = vpack.c.b16 %v1210, %v1209
        %v1226 = vpack.c.b16 %v1212, %v1211
        %v1227 = vpack.c.b16 %v1214, %v1213
        %v1228 = vpack.c.b16 %v1216, %v1215
        %v1229 = vpack.c.b16 %v1218, %v1217
        %v1230 = vpack.c.b16 %v1220, %v1219
        %v1231 = vpack.c.b16 %v1222, %v1221
        %v1232 = vpack.c.b16 %v1224, %v1223
        %1241 = vmatprep.subr.bf16.mxu0 0
        %1242 = vmatpush1.bf16.msra.mxu0 %v1225
        %1243 = vmatprep.subr.bf16.mxu0 0
        %1244 = vmatpush1.bf16.msra.mxu0 %v1226
        %1245 = vmatprep.subr.bf16.mxu0 0
        %1246 = vmatpush1.bf16.msra.mxu0 %v1227
        %1247 = vmatprep.subr.bf16.mxu0 0
        %1248 = vmatpush1.bf16.msra.mxu0 %v1228
        %1249 = vmatprep.subr.bf16.mxu0 0
        %1250 = vmatpush1.bf16.msra.mxu0 %v1229
        %1251 = vmatprep.subr.bf16.mxu0 0
        %1252 = vmatpush1.bf16.msra.mxu0 %v1230
        %1253 = vmatprep.subr.bf16.mxu0 0
        %1254 = vmatpush1.bf16.msra.mxu0 %v1231
        %1255 = vmatprep.subr.bf16.mxu0 0
        %1256 = vmatpush1.bf16.msra.mxu0 %v1232
        %1257 = vmatprep.subr.bf16.mxu0 0
        %1258 = vmatpush1.bf16.msra.mxu0 0
        %1259 = vmatprep.subr.bf16.mxu0 0
        %1260 = vmatpush1.bf16.msra.mxu0 0
        %1261 = vmatprep.subr.bf16.mxu0 0
        %1262 = vmatpush1.bf16.msra.mxu0 0
        %1263 = vmatprep.subr.bf16.mxu0 0
        %1264 = vmatpush1.bf16.msra.mxu0 0
        %1265 = vmatprep.subr.bf16.mxu0 0
        %1266 = vmatpush1.bf16.msra.mxu0 0
        %1267 = vmatprep.subr.bf16.mxu0 0
        %1268 = vmatpush1.bf16.msra.mxu0 0
        %1269 = vmatprep.subr.bf16.mxu0 0
        %1270 = vmatpush1.bf16.msra.mxu0 0
        %1271 = vmatprep.subr.bf16.mxu0 0
        %1272 = vmatpush1.bf16.msra.mxu0 0
        %1273 = vmatprep.mubr.bf16.mxu0 0
        %1274 = vmatmul.mubr.bf16.gmra.mrb[0].mxu0 %v1169
        %v1275 = vpop.f32.mrb[0].mxu0
        %v1276 = vadd.f32 0.0, %v1275
        %v1277 = vpop.f32.mrb[0].mxu0
        %v1278 = vpop.f32.mrb[0].mxu0
        %v1279 = vadd.f32 0.0, %v1278
        %v1280 = vpop.f32.mrb[0].mxu0
        %1281 = vmatprep.mubr.bf16.mxu0 0
        %1282 = vmatmul.mubr.bf16.gmra.mrb[0].mxu0 %v1170
        %v1283 = vpop.f32.mrb[0].mxu0
        %v1284 = vadd.f32 0.0, %v1283
        %v1285 = vpop.f32.mrb[0].mxu0
        %v1286 = vpop.f32.mrb[0].mxu0
        %v1287 = vadd.f32 0.0, %v1286
        %v1288 = vpop.f32.mrb[0].mxu0
        %1289 = vmatprep.mubr.bf16.mxu0 0
        %1290 = vmatmul.mubr.bf16.gmra.mrb[0].mxu0 %v1171
        %v1291 = vpop.f32.mrb[0].mxu0
        %v1292 = vadd.f32 0.0, %v1291
        %v1293 = vpop.f32.mrb[0].mxu0
        %v1294 = vpop.f32.mrb[0].mxu0
        %v1295 = vadd.f32 0.0, %v1294
        %v1296 = vpop.f32.mrb[0].mxu0
        %1297 = vmatprep.mubr.bf16.mxu0 0
        %1298 = vmatmul.mubr.bf16.gmra.mrb[0].mxu0 %v1172
        %v1299 = vpop.f32.mrb[0].mxu0
        %v1300 = vadd.f32 0.0, %v1299
        %v1301 = vpop.f32.mrb[0].mxu0
        %v1302 = vpop.f32.mrb[0].mxu0
        %v1303 = vadd.f32 0.0, %v1302
        %v1304 = vpop.f32.mrb[0].mxu0
        %1305 = vmatprep.mubr.bf16.mxu0 0
        %1306 = vmatmul.mubr.bf16.gmra.mrb[0].mxu0 %v1173
        %v1307 = vpop.f32.mrb[0].mxu0
        %v1308 = vadd.f32 0.0, %v1307
        %v1309 = vpop.f32.mrb[0].mxu0
        %v1310 = vpop.f32.mrb[0].mxu0
        %v1311 = vadd.f32 0.0, %v1310
        %v1312 = vpop.f32.mrb[0].mxu0
        %1313 = vmatprep.mubr.bf16.mxu0 0
        %1314 = vmatmul.mubr.bf16.gmra.mrb[0].mxu0 %v1174
        %v1315 = vpop.f32.mrb[0].mxu0
        %v1316 = vadd.f32 0.0, %v1315
        %v1317 = vpop.f32.mrb[0].mxu0
        %v1318 = vpop.f32.mrb[0].mxu0
        %v1319 = vadd.f32 0.0, %v1318
        %v1320 = vpop.f32.mrb[0].mxu0
        %1321 = vmatprep.mubr.bf16.mxu0 0
        %1322 = vmatmul.mubr.bf16.gmra.mrb[0].mxu0 %v1175
        %v1323 = vpop.f32.mrb[0].mxu0
        %v1324 = vadd.f32 0.0, %v1323
        %v1325 = vpop.f32.mrb[0].mxu0
        %v1326 = vpop.f32.mrb[0].mxu0
        %v1327 = vadd.f32 0.0, %v1326
        %v1328 = vpop.f32.mrb[0].mxu0
        %1329 = vmatprep.mubr.bf16.mxu0 0
        %1330 = vmatmul.mubr.bf16.gmra.mrb[0].mxu0 %v1176
        %v1331 = vpop.f32.mrb[0].mxu0
        %v1332 = vadd.f32 0.0, %v1331
        %v1333 = vpop.f32.mrb[0].mxu0
        %v1334 = vpop.f32.mrb[0].mxu0
        %v1335 = vadd.f32 0.0, %v1334
        %v1336 = vpop.f32.mrb[0].mxu0
        %1337 = vdwg.mxu0
        %v1354 = vunpack.c.l.b16 %v1137
        %v1355 = vunpack.c.l.b16 %v1138
        %v1356 = vunpack.c.l.b16 %v1139
        %v1357 = vunpack.c.l.b16 %v1140
        %v1358 = vunpack.c.l.b16 %v1141
        %v1359 = vunpack.c.l.b16 %v1142
        %v1360 = vunpack.c.l.b16 %v1143
        %v1361 = vunpack.c.l.b16 %v1144
        %v1362 = vunpack.c.l.b16 %v1145
        %v1363 = vunpack.c.l.b16 %v1146
        %v1364 = vunpack.c.l.b16 %v1147
        %v1365 = vunpack.c.l.b16 %v1148
        %v1366 = vunpack.c.l.b16 %v1149
        %v1367 = vunpack.c.l.b16 %v1150
        %v1368 = vunpack.c.l.b16 %v1151
        %v1369 = vunpack.c.l.b16 %v1152
        %v1370 = vpack.c.b16 %v1355, %v1354
        %v1371 = vpack.c.b16 %v1357, %v1356
        %v1372 = vpack.c.b16 %v1359, %v1358
        %v1373 = vpack.c.b16 %v1361, %v1360
        %v1374 = vpack.c.b16 %v1363, %v1362
        %v1375 = vpack.c.b16 %v1365, %v1364
        %v1376 = vpack.c.b16 %v1367, %v1366
        %v1377 = vpack.c.b16 %v1369, %v1368
        %v1402 = vunpack.c.l.b16 %v1153
        %v1403 = vunpack.c.l.b16 %v1154
        %v1404 = vunpack.c.l.b16 %v1155
        %v1405 = vunpack.c.l.b16 %v1156
        %v1406 = vunpack.c.l.b16 %v1157
        %v1407 = vunpack.c.l.b16 %v1158
        %v1408 = vunpack.c.l.b16 %v1159
        %v1409 = vunpack.c.l.b16 %v1160
        %v1410 = vunpack.c.l.b16 %v1161
        %v1411 = vunpack.c.l.b16 %v1162
        %v1412 = vunpack.c.l.b16 %v1163
        %v1413 = vunpack.c.l.b16 %v1164
        %v1414 = vunpack.c.l.b16 %v1165
        %v1415 = vunpack.c.l.b16 %v1166
        %v1416 = vunpack.c.l.b16 %v1167
        %v1417 = vunpack.c.l.b16 %v1168
        %v1418 = vpack.c.b16 %v1403, %v1402
        %v1419 = vpack.c.b16 %v1405, %v1404
        %v1420 = vpack.c.b16 %v1407, %v1406
        %v1421 = vpack.c.b16 %v1409, %v1408
        %v1422 = vpack.c.b16 %v1411, %v1410
        %v1423 = vpack.c.b16 %v1413, %v1412
        %v1424 = vpack.c.b16 %v1415, %v1414
        %v1425 = vpack.c.b16 %v1417, %v1416
        %1434 = vmatprep.subr.bf16.mxu0 0
        %1435 = vmatpush1.bf16.msra.mxu0 %v1418
        %1436 = vmatprep.subr.bf16.mxu0 0
        %1437 = vmatpush1.bf16.msra.mxu0 %v1419
        %1438 = vmatprep.subr.bf16.mxu0 0
        %1439 = vmatpush1.bf16.msra.mxu0 %v1420
        %1440 = vmatprep.subr.bf16.mxu0 0
        %1441 = vmatpush1.bf16.msra.mxu0 %v1421
        %1442 = vmatprep.subr.bf16.mxu0 0
        %1443 = vmatpush1.bf16.msra.mxu0 %v1422
        %1444 = vmatprep.subr.bf16.mxu0 0
        %1445 = vmatpush1.bf16.msra.mxu0 %v1423
        %1446 = vmatprep.subr.bf16.mxu0 0
        %1447 = vmatpush1.bf16.msra.mxu0 %v1424
        %1448 = vmatprep.subr.bf16.mxu0 0
        %1449 = vmatpush1.bf16.msra.mxu0 %v1425
        %1450 = vmatprep.subr.bf16.mxu0 0
        %1451 = vmatpush1.bf16.msra.mxu0 0
        %1452 = vmatprep.subr.bf16.mxu0 0
        %1453 = vmatpush1.bf16.msra.mxu0 0
        %1454 = vmatprep.subr.bf16.mxu0 0
        %1455 = vmatpush1.bf16.msra.mxu0 0
        %1456 = vmatprep.subr.bf16.mxu0 0
        %1457 = vmatpush1.bf16.msra.mxu0 0
        %1458 = vmatprep.subr.bf16.mxu0 0
        %1459 = vmatpush1.bf16.msra.mxu0 0
        %1460 = vmatprep.subr.bf16.mxu0 0
        %1461 = vmatpush1.bf16.msra.mxu0 0
        %1462 = vmatprep.subr.bf16.mxu0 0
        %1463 = vmatpush1.bf16.msra.mxu0 0
        %1464 = vmatprep.subr.bf16.mxu0 0
        %1465 = vmatpush1.bf16.msra.mxu0 0
        %1466 = vmatprep.mubr.bf16.mxu0 0
        %1467 = vmatmul.mubr.bf16.gmra.mrb[0].mxu0 %v1370
        %v1468 = vpop.f32.mrb[0].mxu0
        %v1469 = vadd.f32 %v1276, %v1468
        %v1470 = vpop.f32.mrb[0].mxu0
        %v1471 = vpop.f32.mrb[0].mxu0
        %v1472 = vadd.f32 %v1279, %v1471
        %v1473 = vpop.f32.mrb[0].mxu0
        %1474 = vmatprep.mubr.bf16.mxu0 0
        %1475 = vmatmul.mubr.bf16.gmra.mrb[0].mxu0 %v1371
        %v1476 = vpop.f32.mrb[0].mxu0
        %v1477 = vadd.f32 %v1284, %v1476
        %v1478 = vpop.f32.mrb[0].mxu0
        %v1479 = vpop.f32.mrb[0].mxu0
        %v1480 = vadd.f32 %v1287, %v1479
        %v1481 = vpop.f32.mrb[0].mxu0
        %1482 = vmatprep.mubr.bf16.mxu0 0
        %1483 = vmatmul.mubr.bf16.gmra.mrb[0].mxu0 %v1372
        %v1484 = vpop.f32.mrb[0].mxu0
        %v1485 = vadd.f32 %v1292, %v1484
        %v1486 = vpop.f32.mrb[0].mxu0
        %v1487 = vpop.f32.mrb[0].mxu0
        %v1488 = vadd.f32 %v1295, %v1487
        %v1489 = vpop.f32.mrb[0].mxu0
        %1490 = vmatprep.mubr.bf16.mxu0 0
        %1491 = vmatmul.mubr.bf16.gmra.mrb[0].mxu0 %v1373
        %v1492 = vpop.f32.mrb[0].mxu0
        %v1493 = vadd.f32 %v1300, %v1492
        %v1494 = vpop.f32.mrb[0].mxu0
        %v1495 = vpop.f32.mrb[0].mxu0
        %v1496 = vadd.f32 %v1303, %v1495
        %v1497 = vpop.f32.mrb[0].mxu0
        %1498 = vmatprep.mubr.bf16.mxu0 0
        %1499 = vmatmul.mubr.bf16.gmra.mrb[0].mxu0 %v1374
        %v1500 = vpop.f32.mrb[0].mxu0
        %v1501 = vadd.f32 %v1308, %v1500
        %v1502 = vpop.f32.mrb[0].mxu0
        %v1503 = vpop.f32.mrb[0].mxu0
        %v1504 = vadd.f32 %v1311, %v1503
        %v1505 = vpop.f32.mrb[0].mxu0
        %1506 = vmatprep.mubr.bf16.mxu0 0
        %1507 = vmatmul.mubr.bf16.gmra.mrb[0].mxu0 %v1375
        %v1508 = vpop.f32.mrb[0].mxu0
        %v1509 = vadd.f32 %v1316, %v1508
        %v1510 = vpop.f32.mrb[0].mxu0
        %v1511 = vpop.f32.mrb[0].mxu0
        %v1512 = vadd.f32 %v1319, %v1511
        %v1513 = vpop.f32.mrb[0].mxu0
        %1514 = vmatprep.mubr.bf16.mxu0 0
        %1515 = vmatmul.mubr.bf16.gmra.mrb[0].mxu0 %v1376
        %v1516 = vpop.f32.mrb[0].mxu0
        %v1517 = vadd.f32 %v1324, %v1516
        %v1518 = vpop.f32.mrb[0].mxu0
        %v1519 = vpop.f32.mrb[0].mxu0
        %v1520 = vadd.f32 %v1327, %v1519
        %v1521 = vpop.f32.mrb[0].mxu0
        %1522 = vmatprep.mubr.bf16.mxu0 0
        %1523 = vmatmul.mubr.bf16.gmra.mrb[0].mxu0 %v1377
        %v1524 = vpop.f32.mrb[0].mxu0
        %v1525 = vadd.f32 %v1332, %v1524
        %v1526 = vpop.f32.mrb[0].mxu0
        %v1527 = vpop.f32.mrb[0].mxu0
        %v1528 = vadd.f32 %v1335, %v1527
        %v1529 = vpop.f32.mrb[0].mxu0
        %1530 = vdwg.mxu0
        %v1531 = vld [vmem:[#allocation16] sm:$0x1]
        %v1533 = vlaneseq
        %v1534 = vshrl.u32 %v1533, 7
        %v1535 = vsub.s32 0, %v1534
        %v1536 = vrot.slane %v1531, %v1535
        %v1538 = vadd.f32 %v1469, %v1536
        %v1539 = vadd.f32 %v1472, %v1536
        %v1540 = vadd.f32 %v1477, %v1536
        %v1541 = vadd.f32 %v1480, %v1536
        %v1542 = vadd.f32 %v1485, %v1536
        %v1543 = vadd.f32 %v1488, %v1536
        %v1544 = vadd.f32 %v1493, %v1536
        %v1545 = vadd.f32 %v1496, %v1536
        %v1546 = vadd.f32 %v1501, %v1536
        %v1547 = vadd.f32 %v1504, %v1536
        %v1548 = vadd.f32 %v1509, %v1536
        %v1549 = vadd.f32 %v1512, %v1536
        %v1550 = vadd.f32 %v1517, %v1536
        %v1551 = vadd.f32 %v1520, %v1536
        %v1552 = vadd.f32 %v1525, %v1536
        %v1553 = vadd.f32 %v1528, %v1536
        %v1554 = vmax.f32 %v1538, 0.0
        %v1555 = vmax.f32 %v1539, 0.0
        %v1556 = vmax.f32 %v1540, 0.0
        %v1557 = vmax.f32 %v1541, 0.0
        %v1558 = vmax.f32 %v1542, 0.0
        %v1559 = vmax.f32 %v1543, 0.0
        %v1560 = vmax.f32 %v1544, 0.0
        %v1561 = vmax.f32 %v1545, 0.0
        %v1562 = vmax.f32 %v1546, 0.0
        %v1563 = vmax.f32 %v1547, 0.0
        %v1564 = vmax.f32 %v1548, 0.0
        %v1565 = vmax.f32 %v1549, 0.0
        %v1566 = vmax.f32 %v1550, 0.0
        %v1567 = vmax.f32 %v1551, 0.0
        %v1568 = vmax.f32 %v1552, 0.0
        %v1569 = vmax.f32 %v1553, 0.0
        %v1570 = vpack.c.bf16 %v1555, %v1554
        %v1571 = vpack.c.bf16 %v1557, %v1556
        %v1572 = vpack.c.bf16 %v1559, %v1558
        %v1573 = vpack.c.bf16 %v1561, %v1560
        %v1574 = vpack.c.bf16 %v1563, %v1562
        %v1575 = vpack.c.bf16 %v1565, %v1564
        %v1576 = vpack.c.bf16 %v1567, %v1566
        %v1577 = vpack.c.bf16 %v1569, %v1568
        %v1578 = vld [vmem:[#allocation17] sm:$0xf]
        %v1579 = vld [vmem:[#allocation17 + $0x4] sm:$0xf]
        %v1580 = vld [vmem:[#allocation17 + $0x8] sm:$0xf]
        %v1581 = vld [vmem:[#allocation17 + $0xc] sm:$0xf]
        %v1582 = vld [vmem:[#allocation17 + $0x10] sm:$0xf]
        %v1583 = vld [vmem:[#allocation17 + $0x14] sm:$0xf]
        %v1584 = vld [vmem:[#allocation17 + $0x18] sm:$0xf]
        %v1585 = vld [vmem:[#allocation17 + $0x1c] sm:$0xf]
        %v1586 = vld [vmem:[#allocation17 + $0x20] sm:$0xf]
        %v1587 = vld [vmem:[#allocation17 + $0x24] sm:$0xf]
        %v1588 = vld [vmem:[#allocation17 + $0x28] sm:$0xf]
        %v1589 = vld [vmem:[#allocation17 + $0x2c] sm:$0xf]
        %v1590 = vld [vmem:[#allocation17 + $0x30] sm:$0xf]
        %v1591 = vld [vmem:[#allocation17 + $0x34] sm:$0xf]
        %v1592 = vld [vmem:[#allocation17 + $0x38] sm:$0xf]
        %v1593 = vld [vmem:[#allocation17 + $0x3c] sm:$0xf]
        %v1594 = vld [vmem:[#allocation19] sm:$0x1]
        %v1596 = vlaneseq
        %v1597 = vshrl.u32 %v1596, 7
        %v1598 = vsub.s32 0, %v1597
        %v1599 = vrot.slane %v1594, %v1598
        %v1617 = vunpack.c.l.b16 %v1578
        %v1618 = vunpack.c.l.b16 %v1579
        %v1619 = vunpack.c.l.b16 %v1580
        %v1620 = vunpack.c.l.b16 %v1581
        %v1621 = vunpack.c.l.b16 %v1582
        %v1622 = vunpack.c.l.b16 %v1583
        %v1623 = vunpack.c.l.b16 %v1584
        %v1624 = vunpack.c.l.b16 %v1585
        %v1625 = vunpack.c.l.b16 %v1586
        %v1626 = vunpack.c.l.b16 %v1587
        %v1627 = vunpack.c.l.b16 %v1588
        %v1628 = vunpack.c.l.b16 %v1589
        %v1629 = vunpack.c.l.b16 %v1590
        %v1630 = vunpack.c.l.b16 %v1591
        %v1631 = vunpack.c.l.b16 %v1592
        %v1632 = vunpack.c.l.b16 %v1593
        %v1633 = vpack.c.b16 %v1618, %v1617
        %v1634 = vpack.c.b16 %v1620, %v1619
        %v1635 = vpack.c.b16 %v1622, %v1621
        %v1636 = vpack.c.b16 %v1624, %v1623
        %v1637 = vpack.c.b16 %v1626, %v1625
        %v1638 = vpack.c.b16 %v1628, %v1627
        %v1639 = vpack.c.b16 %v1630, %v1629
        %v1640 = vpack.c.b16 %v1632, %v1631
        %1649 = vmatprep.subr.bf16.mxu0 0
        %1650 = vmatpush1.bf16.msra.mxu0 %v1633
        %1651 = vmatprep.subr.bf16.mxu0 0
        %1652 = vmatpush1.bf16.msra.mxu0 %v1634
        %1653 = vmatprep.subr.bf16.mxu0 0
        %1654 = vmatpush1.bf16.msra.mxu0 %v1635
        %1655 = vmatprep.subr.bf16.mxu0 0
        %1656 = vmatpush1.bf16.msra.mxu0 %v1636
        %1657 = vmatprep.subr.bf16.mxu0 0
        %1658 = vmatpush1.bf16.msra.mxu0 %v1637
        %1659 = vmatprep.subr.bf16.mxu0 0
        %1660 = vmatpush1.bf16.msra.mxu0 %v1638
        %1661 = vmatprep.subr.bf16.mxu0 0
        %1662 = vmatpush1.bf16.msra.mxu0 %v1639
        %1663 = vmatprep.subr.bf16.mxu0 0
        %1664 = vmatpush1.bf16.msra.mxu0 %v1640
        %1665 = vmatprep.subr.bf16.mxu0 0
        %1666 = vmatpush1.bf16.msra.mxu0 0
        %1667 = vmatprep.subr.bf16.mxu0 0
        %1668 = vmatpush1.bf16.msra.mxu0 0
        %1669 = vmatprep.subr.bf16.mxu0 0
        %1670 = vmatpush1.bf16.msra.mxu0 0
        %1671 = vmatprep.subr.bf16.mxu0 0
        %1672 = vmatpush1.bf16.msra.mxu0 0
        %1673 = vmatprep.subr.bf16.mxu0 0
        %1674 = vmatpush1.bf16.msra.mxu0 0
        %1675 = vmatprep.subr.bf16.mxu0 0
        %1676 = vmatpush1.bf16.msra.mxu0 0
        %1677 = vmatprep.subr.bf16.mxu0 0
        %1678 = vmatpush1.bf16.msra.mxu0 0
        %1679 = vmatprep.subr.bf16.mxu0 0
        %1680 = vmatpush1.bf16.msra.mxu0 0
        %1681 = vmatprep.mubr.bf16.mxu0 0
        %1682 = vmatmul.mubr.bf16.gmra.mrb[0].mxu0 %v1570
        %v1683 = vpop.f32.mrb[0].mxu0
        %v1684 = vadd.f32 %v1599, %v1683
        %v1685 = vpop.f32.mrb[0].mxu0
        %v1686 = vpop.f32.mrb[0].mxu0
        %v1687 = vadd.f32 %v1599, %v1686
        %v1688 = vpop.f32.mrb[0].mxu0
        %1689 = vmatprep.mubr.bf16.mxu0 0
        %1690 = vmatmul.mubr.bf16.gmra.mrb[0].mxu0 %v1571
        %v1691 = vpop.f32.mrb[0].mxu0
        %v1692 = vadd.f32 %v1599, %v1691
        %v1693 = vpop.f32.mrb[0].mxu0
        %v1694 = vpop.f32.mrb[0].mxu0
        %v1695 = vadd.f32 %v1599, %v1694
        %v1696 = vpop.f32.mrb[0].mxu0
        %1697 = vmatprep.mubr.bf16.mxu0 0
        %1698 = vmatmul.mubr.bf16.gmra.mrb[0].mxu0 %v1572
        %v1699 = vpop.f32.mrb[0].mxu0
        %v1700 = vadd.f32 %v1599, %v1699
        %v1701 = vpop.f32.mrb[0].mxu0
        %v1702 = vpop.f32.mrb[0].mxu0
        %v1703 = vadd.f32 %v1599, %v1702
        %v1704 = vpop.f32.mrb[0].mxu0
        %1705 = vmatprep.mubr.bf16.mxu0 0
        %1706 = vmatmul.mubr.bf16.gmra.mrb[0].mxu0 %v1573
        %v1707 = vpop.f32.mrb[0].mxu0
        %v1708 = vadd.f32 %v1599, %v1707
        %v1709 = vpop.f32.mrb[0].mxu0
        %v1710 = vpop.f32.mrb[0].mxu0
        %v1711 = vadd.f32 %v1599, %v1710
        %v1712 = vpop.f32.mrb[0].mxu0
        %1713 = vmatprep.mubr.bf16.mxu0 0
        %1714 = vmatmul.mubr.bf16.gmra.mrb[0].mxu0 %v1574
        %v1715 = vpop.f32.mrb[0].mxu0
        %v1716 = vadd.f32 %v1599, %v1715
        %v1717 = vpop.f32.mrb[0].mxu0
        %v1718 = vpop.f32.mrb[0].mxu0
        %v1719 = vadd.f32 %v1599, %v1718
        %v1720 = vpop.f32.mrb[0].mxu0
        %1721 = vmatprep.mubr.bf16.mxu0 0
        %1722 = vmatmul.mubr.bf16.gmra.mrb[0].mxu0 %v1575
        %v1723 = vpop.f32.mrb[0].mxu0
        %v1724 = vadd.f32 %v1599, %v1723
        %v1725 = vpop.f32.mrb[0].mxu0
        %v1726 = vpop.f32.mrb[0].mxu0
        %v1727 = vadd.f32 %v1599, %v1726
        %v1728 = vpop.f32.mrb[0].mxu0
        %1729 = vmatprep.mubr.bf16.mxu0 0
        %1730 = vmatmul.mubr.bf16.gmra.mrb[0].mxu0 %v1576
        %v1731 = vpop.f32.mrb[0].mxu0
        %v1732 = vadd.f32 %v1599, %v1731
        %v1733 = vpop.f32.mrb[0].mxu0
        %v1734 = vpop.f32.mrb[0].mxu0
        %v1735 = vadd.f32 %v1599, %v1734
        %v1736 = vpop.f32.mrb[0].mxu0
        %1737 = vmatprep.mubr.bf16.mxu0 0
        %1738 = vmatmul.mubr.bf16.gmra.mrb[0].mxu0 %v1577
        %v1739 = vpop.f32.mrb[0].mxu0
        %v1740 = vadd.f32 %v1599, %v1739
        %v1741 = vpop.f32.mrb[0].mxu0
        %v1742 = vpop.f32.mrb[0].mxu0
        %v1743 = vadd.f32 %v1599, %v1742
        %v1744 = vpop.f32.mrb[0].mxu0
        %1745 = vdwg.mxu0
        %v1746 = vlaneseq
        %v1747 = vshrl.u32 %v1746, 7
        %v1748 = vadd.s32 %v1747, 8
        %v1749 = vadd.s32 %v1747, 16
        %v1750 = vadd.s32 %v1747, 24
        %v1751 = vadd.s32 %v1747, 32
        %v1752 = vadd.s32 %v1747, 40
        %v1753 = vadd.s32 %v1747, 48
        %v1754 = vadd.s32 %v1747, 56
        %v1755 = vadd.s32 %v1747, 64
        %v1756 = vadd.s32 %v1747, 72
        %v1757 = vadd.s32 %v1747, 80
        %v1758 = vadd.s32 %v1747, 88
        %v1759 = vadd.s32 %v1747, 96
        %v1760 = vadd.s32 %v1747, 104
        %v1761 = vadd.s32 %v1747, 112
        %v1762 = vadd.s32 %v1747, 120
        %vm1763 = vcmp.eq.s32.totalorder %v1747, 0
        %vm1764 = vcmp.eq.s32.totalorder %v1748, 0
        %vm1765 = vcmp.eq.s32.totalorder %v1749, 0
        %vm1766 = vcmp.eq.s32.totalorder %v1750, 0
        %vm1767 = vcmp.eq.s32.totalorder %v1751, 0
        %vm1768 = vcmp.eq.s32.totalorder %v1752, 0
        %vm1769 = vcmp.eq.s32.totalorder %v1753, 0
        %vm1770 = vcmp.eq.s32.totalorder %v1754, 0
        %vm1771 = vcmp.eq.s32.totalorder %v1755, 0
        %vm1772 = vcmp.eq.s32.totalorder %v1756, 0
        %vm1773 = vcmp.eq.s32.totalorder %v1757, 0
        %vm1774 = vcmp.eq.s32.totalorder %v1758, 0
        %vm1775 = vcmp.eq.s32.totalorder %v1759, 0
        %vm1776 = vcmp.eq.s32.totalorder %v1760, 0
        %vm1777 = vcmp.eq.s32.totalorder %v1761, 0
        %vm1778 = vcmp.eq.s32.totalorder %v1762, 0
        %vm1779 = vcmp.eq.s32.totalorder %v1747, 15
        %vm1780 = vcmp.eq.s32.totalorder %v1748, 15
        %vm1781 = vcmp.eq.s32.totalorder %v1749, 15
        %vm1782 = vcmp.eq.s32.totalorder %v1750, 15
        %vm1783 = vcmp.eq.s32.totalorder %v1751, 15
        %vm1784 = vcmp.eq.s32.totalorder %v1752, 15
        %vm1785 = vcmp.eq.s32.totalorder %v1753, 15
        %vm1786 = vcmp.eq.s32.totalorder %v1754, 15
        %vm1787 = vcmp.eq.s32.totalorder %v1755, 15
        %vm1788 = vcmp.eq.s32.totalorder %v1756, 15
        %vm1789 = vcmp.eq.s32.totalorder %v1757, 15
        %vm1790 = vcmp.eq.s32.totalorder %v1758, 15
        %vm1791 = vcmp.eq.s32.totalorder %v1759, 15
        %vm1792 = vcmp.eq.s32.totalorder %v1760, 15
        %vm1793 = vcmp.eq.s32.totalorder %v1761, 15
        %vm1794 = vcmp.eq.s32.totalorder %v1762, 15
        %vm1795 = vcmp.eq.s32.totalorder %v1747, 16
        %vm1796 = vcmp.eq.s32.totalorder %v1748, 16
        %vm1797 = vcmp.eq.s32.totalorder %v1749, 16
        %vm1798 = vcmp.eq.s32.totalorder %v1750, 16
        %vm1799 = vcmp.eq.s32.totalorder %v1751, 16
        %vm1800 = vcmp.eq.s32.totalorder %v1752, 16
        %vm1801 = vcmp.eq.s32.totalorder %v1753, 16
        %vm1802 = vcmp.eq.s32.totalorder %v1754, 16
        %vm1803 = vcmp.eq.s32.totalorder %v1755, 16
        %vm1804 = vcmp.eq.s32.totalorder %v1756, 16
        %vm1805 = vcmp.eq.s32.totalorder %v1757, 16
        %vm1806 = vcmp.eq.s32.totalorder %v1758, 16
        %vm1807 = vcmp.eq.s32.totalorder %v1759, 16
        %vm1808 = vcmp.eq.s32.totalorder %v1760, 16
        %vm1809 = vcmp.eq.s32.totalorder %v1761, 16
        %vm1810 = vcmp.eq.s32.totalorder %v1762, 16
        %vm1811 = vmor %vm1763, %vm1795
        %vm1812 = vmor %vm1764, %vm1796
        %vm1813 = vmor %vm1765, %vm1797
        %vm1814 = vmor %vm1766, %vm1798
        %vm1815 = vmor %vm1767, %vm1799
        %vm1816 = vmor %vm1768, %vm1800
        %vm1817 = vmor %vm1769, %vm1801
        %vm1818 = vmor %vm1770, %vm1802
        %vm1819 = vmor %vm1771, %vm1803
        %vm1820 = vmor %vm1772, %vm1804
        %vm1821 = vmor %vm1773, %vm1805
        %vm1822 = vmor %vm1774, %vm1806
        %vm1823 = vmor %vm1775, %vm1807
        %vm1824 = vmor %vm1776, %vm1808
        %vm1825 = vmor %vm1777, %vm1809
        %vm1826 = vmor %vm1778, %vm1810
        %vm1827 = vcmp.eq.s32.totalorder %v1747, 31
        %vm1828 = vcmp.eq.s32.totalorder %v1748, 31
        %vm1829 = vcmp.eq.s32.totalorder %v1749, 31
        %vm1830 = vcmp.eq.s32.totalorder %v1750, 31
        %vm1831 = vcmp.eq.s32.totalorder %v1751, 31
        %vm1832 = vcmp.eq.s32.totalorder %v1752, 31
        %vm1833 = vcmp.eq.s32.totalorder %v1753, 31
        %vm1834 = vcmp.eq.s32.totalorder %v1754, 31
        %vm1835 = vcmp.eq.s32.totalorder %v1755, 31
        %vm1836 = vcmp.eq.s32.totalorder %v1756, 31
        %vm1837 = vcmp.eq.s32.totalorder %v1757, 31
        %vm1838 = vcmp.eq.s32.totalorder %v1758, 31
        %vm1839 = vcmp.eq.s32.totalorder %v1759, 31
        %vm1840 = vcmp.eq.s32.totalorder %v1760, 31
        %vm1841 = vcmp.eq.s32.totalorder %v1761, 31
        %vm1842 = vcmp.eq.s32.totalorder %v1762, 31
        %vm1843 = vmor %vm1779, %vm1827
        %vm1844 = vmor %vm1780, %vm1828
        %vm1845 = vmor %vm1781, %vm1829
        %vm1846 = vmor %vm1782, %vm1830
        %vm1847 = vmor %vm1783, %vm1831
        %vm1848 = vmor %vm1784, %vm1832
        %vm1849 = vmor %vm1785, %vm1833
        %vm1850 = vmor %vm1786, %vm1834
        %vm1851 = vmor %vm1787, %vm1835
        %vm1852 = vmor %vm1788, %vm1836
        %vm1853 = vmor %vm1789, %vm1837
        %vm1854 = vmor %vm1790, %vm1838
        %vm1855 = vmor %vm1791, %vm1839
        %vm1856 = vmor %vm1792, %vm1840
        %vm1857 = vmor %vm1793, %vm1841
        %vm1858 = vmor %vm1794, %vm1842
        %vm1859 = vcmp.eq.s32.totalorder %v1747, 32
        %vm1860 = vcmp.eq.s32.totalorder %v1748, 32
        %vm1861 = vcmp.eq.s32.totalorder %v1749, 32
        %vm1862 = vcmp.eq.s32.totalorder %v1750, 32
        %vm1863 = vcmp.eq.s32.totalorder %v1751, 32
        %vm1864 = vcmp.eq.s32.totalorder %v1752, 32
        %vm1865 = vcmp.eq.s32.totalorder %v1753, 32
        %vm1866 = vcmp.eq.s32.totalorder %v1754, 32
        %vm1867 = vcmp.eq.s32.totalorder %v1755, 32
        %vm1868 = vcmp.eq.s32.totalorder %v1756, 32
        %vm1869 = vcmp.eq.s32.totalorder %v1757, 32
        %vm1870 = vcmp.eq.s32.totalorder %v1758, 32
        %vm1871 = vcmp.eq.s32.totalorder %v1759, 32
        %vm1872 = vcmp.eq.s32.totalorder %v1760, 32
        %vm1873 = vcmp.eq.s32.totalorder %v1761, 32
        %vm1874 = vcmp.eq.s32.totalorder %v1762, 32
        %vm1875 = vmor %vm1811, %vm1859
        %vm1876 = vmor %vm1812, %vm1860
        %vm1877 = vmor %vm1813, %vm1861
        %vm1878 = vmor %vm1814, %vm1862
        %vm1879 = vmor %vm1815, %vm1863
        %vm1880 = vmor %vm1816, %vm1864
        %vm1881 = vmor %vm1817, %vm1865
        %vm1882 = vmor %vm1818, %vm1866
        %vm1883 = vmor %vm1819, %vm1867
        %vm1884 = vmor %vm1820, %vm1868
        %vm1885 = vmor %vm1821, %vm1869
        %vm1886 = vmor %vm1822, %vm1870
        %vm1887 = vmor %vm1823, %vm1871
        %vm1888 = vmor %vm1824, %vm1872
        %vm1889 = vmor %vm1825, %vm1873
        %vm1890 = vmor %vm1826, %vm1874
        %vm1891 = vcmp.eq.s32.totalorder %v1747, 47
        %vm1892 = vcmp.eq.s32.totalorder %v1748, 47
        %vm1893 = vcmp.eq.s32.totalorder %v1749, 47
        %vm1894 = vcmp.eq.s32.totalorder %v1750, 47
        %vm1895 = vcmp.eq.s32.totalorder %v1751, 47
        %vm1896 = vcmp.eq.s32.totalorder %v1752, 47
        %vm1897 = vcmp.eq.s32.totalorder %v1753, 47
        %vm1898 = vcmp.eq.s32.totalorder %v1754, 47
        %vm1899 = vcmp.eq.s32.totalorder %v1755, 47
        %vm1900 = vcmp.eq.s32.totalorder %v1756, 47
        %vm1901 = vcmp.eq.s32.totalorder %v1757, 47
        %vm1902 = vcmp.eq.s32.totalorder %v1758, 47
        %vm1903 = vcmp.eq.s32.totalorder %v1759, 47
        %vm1904 = vcmp.eq.s32.totalorder %v1760, 47
        %vm1905 = vcmp.eq.s32.totalorder %v1761, 47
        %vm1906 = vcmp.eq.s32.totalorder %v1762, 47
        %vm1907 = vmor %vm1843, %vm1891
        %vm1908 = vmor %vm1844, %vm1892
        %vm1909 = vmor %vm1845, %vm1893
        %vm1910 = vmor %vm1846, %vm1894
        %vm1911 = vmor %vm1847, %vm1895
        %vm1912 = vmor %vm1848, %vm1896
        %vm1913 = vmor %vm1849, %vm1897
        %vm1914 = vmor %vm1850, %vm1898
        %vm1915 = vmor %vm1851, %vm1899
        %vm1916 = vmor %vm1852, %vm1900
        %vm1917 = vmor %vm1853, %vm1901
        %vm1918 = vmor %vm1854, %vm1902
        %vm1919 = vmor %vm1855, %vm1903
        %vm1920 = vmor %vm1856, %vm1904
        %vm1921 = vmor %vm1857, %vm1905
        %vm1922 = vmor %vm1858, %vm1906
        %vm1923 = vcmp.eq.s32.totalorder %v1747, 48
        %vm1924 = vcmp.eq.s32.totalorder %v1748, 48
        %vm1925 = vcmp.eq.s32.totalorder %v1749, 48
        %vm1926 = vcmp.eq.s32.totalorder %v1750, 48
        %vm1927 = vcmp.eq.s32.totalorder %v1751, 48
        %vm1928 = vcmp.eq.s32.totalorder %v1752, 48
        %vm1929 = vcmp.eq.s32.totalorder %v1753, 48
        %vm1930 = vcmp.eq.s32.totalorder %v1754, 48
        %vm1931 = vcmp.eq.s32.totalorder %v1755, 48
        %vm1932 = vcmp.eq.s32.totalorder %v1756, 48
        %vm1933 = vcmp.eq.s32.totalorder %v1757, 48
        %vm1934 = vcmp.eq.s32.totalorder %v1758, 48
        %vm1935 = vcmp.eq.s32.totalorder %v1759, 48
        %vm1936 = vcmp.eq.s32.totalorder %v1760, 48
        %vm1937 = vcmp.eq.s32.totalorder %v1761, 48
        %vm1938 = vcmp.eq.s32.totalorder %v1762, 48
        %vm1939 = vmor %vm1875, %vm1923
        %vm1940 = vmor %vm1876, %vm1924
        %vm1941 = vmor %vm1877, %vm1925
        %vm1942 = vmor %vm1878, %vm1926
        %vm1943 = vmor %vm1879, %vm1927
        %vm1944 = vmor %vm1880, %vm1928
        %vm1945 = vmor %vm1881, %vm1929
        %vm1946 = vmor %vm1882, %vm1930
        %vm1947 = vmor %vm1883, %vm1931
        %vm1948 = vmor %vm1884, %vm1932
        %vm1949 = vmor %vm1885, %vm1933
        %vm1950 = vmor %vm1886, %vm1934
        %vm1951 = vmor %vm1887, %vm1935
        %vm1952 = vmor %vm1888, %vm1936
        %vm1953 = vmor %vm1889, %vm1937
        %vm1954 = vmor %vm1890, %vm1938
        %vm1955 = vcmp.eq.s32.totalorder %v1747, 63
        %vm1956 = vcmp.eq.s32.totalorder %v1748, 63
        %vm1957 = vcmp.eq.s32.totalorder %v1749, 63
        %vm1958 = vcmp.eq.s32.totalorder %v1750, 63
        %vm1959 = vcmp.eq.s32.totalorder %v1751, 63
        %vm1960 = vcmp.eq.s32.totalorder %v1752, 63
        %vm1961 = vcmp.eq.s32.totalorder %v1753, 63
        %vm1962 = vcmp.eq.s32.totalorder %v1754, 63
        %vm1963 = vcmp.eq.s32.totalorder %v1755, 63
        %vm1964 = vcmp.eq.s32.totalorder %v1756, 63
        %vm1965 = vcmp.eq.s32.totalorder %v1757, 63
        %vm1966 = vcmp.eq.s32.totalorder %v1758, 63
        %vm1967 = vcmp.eq.s32.totalorder %v1759, 63
        %vm1968 = vcmp.eq.s32.totalorder %v1760, 63
        %vm1969 = vcmp.eq.s32.totalorder %v1761, 63
        %vm1970 = vcmp.eq.s32.totalorder %v1762, 63
        %vm1971 = vmor %vm1907, %vm1955
        %vm1972 = vmor %vm1908, %vm1956
        %vm1973 = vmor %vm1909, %vm1957
        %vm1974 = vmor %vm1910, %vm1958
        %vm1975 = vmor %vm1911, %vm1959
        %vm1976 = vmor %vm1912, %vm1960
        %vm1977 = vmor %vm1913, %vm1961
        %vm1978 = vmor %vm1914, %vm1962
        %vm1979 = vmor %vm1915, %vm1963
        %vm1980 = vmor %vm1916, %vm1964
        %vm1981 = vmor %vm1917, %vm1965
        %vm1982 = vmor %vm1918, %vm1966
        %vm1983 = vmor %vm1919, %vm1967
        %vm1984 = vmor %vm1920, %vm1968
        %vm1985 = vmor %vm1921, %vm1969
        %vm1986 = vmor %vm1922, %vm1970
        %vm1987 = vcmp.eq.s32.totalorder %v1747, 64
        %vm1988 = vcmp.eq.s32.totalorder %v1748, 64
        %vm1989 = vcmp.eq.s32.totalorder %v1749, 64
        %vm1990 = vcmp.eq.s32.totalorder %v1750, 64
        %vm1991 = vcmp.eq.s32.totalorder %v1751, 64
        %vm1992 = vcmp.eq.s32.totalorder %v1752, 64
        %vm1993 = vcmp.eq.s32.totalorder %v1753, 64
        %vm1994 = vcmp.eq.s32.totalorder %v1754, 64
        %vm1995 = vcmp.eq.s32.totalorder %v1755, 64
        %vm1996 = vcmp.eq.s32.totalorder %v1756, 64
        %vm1997 = vcmp.eq.s32.totalorder %v1757, 64
        %vm1998 = vcmp.eq.s32.totalorder %v1758, 64
        %vm1999 = vcmp.eq.s32.totalorder %v1759, 64
        %vm2000 = vcmp.eq.s32.totalorder %v1760, 64
        %vm2001 = vcmp.eq.s32.totalorder %v1761, 64
        %vm2002 = vcmp.eq.s32.totalorder %v1762, 64
        %vm2003 = vmor %vm1939, %vm1987
        %vm2004 = vmor %vm1940, %vm1988
        %vm2005 = vmor %vm1941, %vm1989
        %vm2006 = vmor %vm1942, %vm1990
        %vm2007 = vmor %vm1943, %vm1991
        %vm2008 = vmor %vm1944, %vm1992
        %vm2009 = vmor %vm1945, %vm1993
        %vm2010 = vmor %vm1946, %vm1994
        %vm2011 = vmor %vm1947, %vm1995
        %vm2012 = vmor %vm1948, %vm1996
        %vm2013 = vmor %vm1949, %vm1997
        %vm2014 = vmor %vm1950, %vm1998
        %vm2015 = vmor %vm1951, %vm1999
        %vm2016 = vmor %vm1952, %vm2000
        %vm2017 = vmor %vm1953, %vm2001
        %vm2018 = vmor %vm1954, %vm2002
        %vm2019 = vcmp.eq.s32.totalorder %v1747, 79
        %vm2020 = vcmp.eq.s32.totalorder %v1748, 79
        %vm2021 = vcmp.eq.s32.totalorder %v1749, 79
        %vm2022 = vcmp.eq.s32.totalorder %v1750, 79
        %vm2023 = vcmp.eq.s32.totalorder %v1751, 79
        %vm2024 = vcmp.eq.s32.totalorder %v1752, 79
        %vm2025 = vcmp.eq.s32.totalorder %v1753, 79
        %vm2026 = vcmp.eq.s32.totalorder %v1754, 79
        %vm2027 = vcmp.eq.s32.totalorder %v1755, 79
        %vm2028 = vcmp.eq.s32.totalorder %v1756, 79
        %vm2029 = vcmp.eq.s32.totalorder %v1757, 79
        %vm2030 = vcmp.eq.s32.totalorder %v1758, 79
        %vm2031 = vcmp.eq.s32.totalorder %v1759, 79
        %vm2032 = vcmp.eq.s32.totalorder %v1760, 79
        %vm2033 = vcmp.eq.s32.totalorder %v1761, 79
        %vm2034 = vcmp.eq.s32.totalorder %v1762, 79
        %vm2035 = vmor %vm1971, %vm2019
        %vm2036 = vmor %vm1972, %vm2020
        %vm2037 = vmor %vm1973, %vm2021
        %vm2038 = vmor %vm1974, %vm2022
        %vm2039 = vmor %vm1975, %vm2023
        %vm2040 = vmor %vm1976, %vm2024
        %vm2041 = vmor %vm1977, %vm2025
        %vm2042 = vmor %vm1978, %vm2026
        %vm2043 = vmor %vm1979, %vm2027
        %vm2044 = vmor %vm1980, %vm2028
        %vm2045 = vmor %vm1981, %vm2029
        %vm2046 = vmor %vm1982, %vm2030
        %vm2047 = vmor %vm1983, %vm2031
        %vm2048 = vmor %vm1984, %vm2032
        %vm2049 = vmor %vm1985, %vm2033
        %vm2050 = vmor %vm1986, %vm2034
        %vm2051 = vcmp.eq.s32.totalorder %v1747, 80
        %vm2052 = vcmp.eq.s32.totalorder %v1748, 80
        %vm2053 = vcmp.eq.s32.totalorder %v1749, 80
        %vm2054 = vcmp.eq.s32.totalorder %v1750, 80
        %vm2055 = vcmp.eq.s32.totalorder %v1751, 80
        %vm2056 = vcmp.eq.s32.totalorder %v1752, 80
        %vm2057 = vcmp.eq.s32.totalorder %v1753, 80
        %vm2058 = vcmp.eq.s32.totalorder %v1754, 80
        %vm2059 = vcmp.eq.s32.totalorder %v1755, 80
        %vm2060 = vcmp.eq.s32.totalorder %v1756, 80
        %vm2061 = vcmp.eq.s32.totalorder %v1757, 80
        %vm2062 = vcmp.eq.s32.totalorder %v1758, 80
        %vm2063 = vcmp.eq.s32.totalorder %v1759, 80
        %vm2064 = vcmp.eq.s32.totalorder %v1760, 80
        %vm2065 = vcmp.eq.s32.totalorder %v1761, 80
        %vm2066 = vcmp.eq.s32.totalorder %v1762, 80
        %vm2067 = vmor %vm2003, %vm2051
        %vm2068 = vmor %vm2004, %vm2052
        %vm2069 = vmor %vm2005, %vm2053
        %vm2070 = vmor %vm2006, %vm2054
        %vm2071 = vmor %vm2007, %vm2055
        %vm2072 = vmor %vm2008, %vm2056
        %vm2073 = vmor %vm2009, %vm2057
        %vm2074 = vmor %vm2010, %vm2058
        %vm2075 = vmor %vm2011, %vm2059
        %vm2076 = vmor %vm2012, %vm2060
        %vm2077 = vmor %vm2013, %vm2061
        %vm2078 = vmor %vm2014, %vm2062
        %vm2079 = vmor %vm2015, %vm2063
        %vm2080 = vmor %vm2016, %vm2064
        %vm2081 = vmor %vm2017, %vm2065
        %vm2082 = vmor %vm2018, %vm2066
        %vm2083 = vcmp.eq.s32.totalorder %v1747, 95
        %vm2084 = vcmp.eq.s32.totalorder %v1748, 95
        %vm2085 = vcmp.eq.s32.totalorder %v1749, 95
        %vm2086 = vcmp.eq.s32.totalorder %v1750, 95
        %vm2087 = vcmp.eq.s32.totalorder %v1751, 95
        %vm2088 = vcmp.eq.s32.totalorder %v1752, 95
        %vm2089 = vcmp.eq.s32.totalorder %v1753, 95
        %vm2090 = vcmp.eq.s32.totalorder %v1754, 95
        %vm2091 = vcmp.eq.s32.totalorder %v1755, 95
        %vm2092 = vcmp.eq.s32.totalorder %v1756, 95
        %vm2093 = vcmp.eq.s32.totalorder %v1757, 95
        %vm2094 = vcmp.eq.s32.totalorder %v1758, 95
        %vm2095 = vcmp.eq.s32.totalorder %v1759, 95
        %vm2096 = vcmp.eq.s32.totalorder %v1760, 95
        %vm2097 = vcmp.eq.s32.totalorder %v1761, 95
        %vm2098 = vcmp.eq.s32.totalorder %v1762, 95
        %vm2099 = vmor %vm2035, %vm2083
        %vm2100 = vmor %vm2036, %vm2084
        %vm2101 = vmor %vm2037, %vm2085
        %vm2102 = vmor %vm2038, %vm2086
        %vm2103 = vmor %vm2039, %vm2087
        %vm2104 = vmor %vm2040, %vm2088
        %vm2105 = vmor %vm2041, %vm2089
        %vm2106 = vmor %vm2042, %vm2090
        %vm2107 = vmor %vm2043, %vm2091
        %vm2108 = vmor %vm2044, %vm2092
        %vm2109 = vmor %vm2045, %vm2093
        %vm2110 = vmor %vm2046, %vm2094
        %vm2111 = vmor %vm2047, %vm2095
        %vm2112 = vmor %vm2048, %vm2096
        %vm2113 = vmor %vm2049, %vm2097
        %vm2114 = vmor %vm2050, %vm2098
        %vm2115 = vcmp.eq.s32.totalorder %v1747, 96
        %vm2116 = vcmp.eq.s32.totalorder %v1748, 96
        %vm2117 = vcmp.eq.s32.totalorder %v1749, 96
        %vm2118 = vcmp.eq.s32.totalorder %v1750, 96
        %vm2119 = vcmp.eq.s32.totalorder %v1751, 96
        %vm2120 = vcmp.eq.s32.totalorder %v1752, 96
        %vm2121 = vcmp.eq.s32.totalorder %v1753, 96
        %vm2122 = vcmp.eq.s32.totalorder %v1754, 96
        %vm2123 = vcmp.eq.s32.totalorder %v1755, 96
        %vm2124 = vcmp.eq.s32.totalorder %v1756, 96
        %vm2125 = vcmp.eq.s32.totalorder %v1757, 96
        %vm2126 = vcmp.eq.s32.totalorder %v1758, 96
        %vm2127 = vcmp.eq.s32.totalorder %v1759, 96
        %vm2128 = vcmp.eq.s32.totalorder %v1760, 96
        %vm2129 = vcmp.eq.s32.totalorder %v1761, 96
        %vm2130 = vcmp.eq.s32.totalorder %v1762, 96
        %vm2131 = vmor %vm2067, %vm2115
        %vm2132 = vmor %vm2068, %vm2116
        %vm2133 = vmor %vm2069, %vm2117
        %vm2134 = vmor %vm2070, %vm2118
        %vm2135 = vmor %vm2071, %vm2119
        %vm2136 = vmor %vm2072, %vm2120
        %vm2137 = vmor %vm2073, %vm2121
        %vm2138 = vmor %vm2074, %vm2122
        %vm2139 = vmor %vm2075, %vm2123
        %vm2140 = vmor %vm2076, %vm2124
        %vm2141 = vmor %vm2077, %vm2125
        %vm2142 = vmor %vm2078, %vm2126
        %vm2143 = vmor %vm2079, %vm2127
        %vm2144 = vmor %vm2080, %vm2128
        %vm2145 = vmor %vm2081, %vm2129
        %vm2146 = vmor %vm2082, %vm2130
        %vm2147 = vcmp.eq.s32.totalorder %v1747, 111
        %vm2148 = vcmp.eq.s32.totalorder %v1748, 111
        %vm2149 = vcmp.eq.s32.totalorder %v1749, 111
        %vm2150 = vcmp.eq.s32.totalorder %v1750, 111
        %vm2151 = vcmp.eq.s32.totalorder %v1751, 111
        %vm2152 = vcmp.eq.s32.totalorder %v1752, 111
        %vm2153 = vcmp.eq.s32.totalorder %v1753, 111
        %vm2154 = vcmp.eq.s32.totalorder %v1754, 111
        %vm2155 = vcmp.eq.s32.totalorder %v1755, 111
        %vm2156 = vcmp.eq.s32.totalorder %v1756, 111
        %vm2157 = vcmp.eq.s32.totalorder %v1757, 111
        %vm2158 = vcmp.eq.s32.totalorder %v1758, 111
        %vm2159 = vcmp.eq.s32.totalorder %v1759, 111
        %vm2160 = vcmp.eq.s32.totalorder %v1760, 111
        %vm2161 = vcmp.eq.s32.totalorder %v1761, 111
        %vm2162 = vcmp.eq.s32.totalorder %v1762, 111
        %vm2163 = vmor %vm2099, %vm2147
        %vm2164 = vmor %vm2100, %vm2148
        %vm2165 = vmor %vm2101, %vm2149
        %vm2166 = vmor %vm2102, %vm2150
        %vm2167 = vmor %vm2103, %vm2151
        %vm2168 = vmor %vm2104, %vm2152
        %vm2169 = vmor %vm2105, %vm2153
        %vm2170 = vmor %vm2106, %vm2154
        %vm2171 = vmor %vm2107, %vm2155
        %vm2172 = vmor %vm2108, %vm2156
        %vm2173 = vmor %vm2109, %vm2157
        %vm2174 = vmor %vm2110, %vm2158
        %vm2175 = vmor %vm2111, %vm2159
        %vm2176 = vmor %vm2112, %vm2160
        %vm2177 = vmor %vm2113, %vm2161
        %vm2178 = vmor %vm2114, %vm2162
        %vm2179 = vcmp.eq.s32.totalorder %v1747, 112
        %vm2180 = vcmp.eq.s32.totalorder %v1748, 112
        %vm2181 = vcmp.eq.s32.totalorder %v1749, 112
        %vm2182 = vcmp.eq.s32.totalorder %v1750, 112
        %vm2183 = vcmp.eq.s32.totalorder %v1751, 112
        %vm2184 = vcmp.eq.s32.totalorder %v1752, 112
        %vm2185 = vcmp.eq.s32.totalorder %v1753, 112
        %vm2186 = vcmp.eq.s32.totalorder %v1754, 112
        %vm2187 = vcmp.eq.s32.totalorder %v1755, 112
        %vm2188 = vcmp.eq.s32.totalorder %v1756, 112
        %vm2189 = vcmp.eq.s32.totalorder %v1757, 112
        %vm2190 = vcmp.eq.s32.totalorder %v1758, 112
        %vm2191 = vcmp.eq.s32.totalorder %v1759, 112
        %vm2192 = vcmp.eq.s32.totalorder %v1760, 112
        %vm2193 = vcmp.eq.s32.totalorder %v1761, 112
        %vm2194 = vcmp.eq.s32.totalorder %v1762, 112
        %vm2195 = vmor %vm2131, %vm2179
        %vm2196 = vmor %vm2132, %vm2180
        %vm2197 = vmor %vm2133, %vm2181
        %vm2198 = vmor %vm2134, %vm2182
        %vm2199 = vmor %vm2135, %vm2183
        %vm2200 = vmor %vm2136, %vm2184
        %vm2201 = vmor %vm2137, %vm2185
        %vm2202 = vmor %vm2138, %vm2186
        %vm2203 = vmor %vm2139, %vm2187
        %vm2204 = vmor %vm2140, %vm2188
        %vm2205 = vmor %vm2141, %vm2189
        %vm2206 = vmor %vm2142, %vm2190
        %vm2207 = vmor %vm2143, %vm2191
        %vm2208 = vmor %vm2144, %vm2192
        %vm2209 = vmor %vm2145, %vm2193
        %vm2210 = vmor %vm2146, %vm2194
        %vm2211 = vcmp.eq.s32.totalorder %v1747, 127
        %vm2212 = vcmp.eq.s32.totalorder %v1748, 127
        %vm2213 = vcmp.eq.s32.totalorder %v1749, 127
        %vm2214 = vcmp.eq.s32.totalorder %v1750, 127
        %vm2215 = vcmp.eq.s32.totalorder %v1751, 127
        %vm2216 = vcmp.eq.s32.totalorder %v1752, 127
        %vm2217 = vcmp.eq.s32.totalorder %v1753, 127
        %vm2218 = vcmp.eq.s32.totalorder %v1754, 127
        %vm2219 = vcmp.eq.s32.totalorder %v1755, 127
        %vm2220 = vcmp.eq.s32.totalorder %v1756, 127
        %vm2221 = vcmp.eq.s32.totalorder %v1757, 127
        %vm2222 = vcmp.eq.s32.totalorder %v1758, 127
        %vm2223 = vcmp.eq.s32.totalorder %v1759, 127
        %vm2224 = vcmp.eq.s32.totalorder %v1760, 127
        %vm2225 = vcmp.eq.s32.totalorder %v1761, 127
        %vm2226 = vcmp.eq.s32.totalorder %v1762, 127
        %vm2227 = vmor %vm2163, %vm2211
        %vm2228 = vmor %vm2164, %vm2212
        %vm2229 = vmor %vm2165, %vm2213
        %vm2230 = vmor %vm2166, %vm2214
        %vm2231 = vmor %vm2167, %vm2215
        %vm2232 = vmor %vm2168, %vm2216
        %vm2233 = vmor %vm2169, %vm2217
        %vm2234 = vmor %vm2170, %vm2218
        %vm2235 = vmor %vm2171, %vm2219
        %vm2236 = vmor %vm2172, %vm2220
        %vm2237 = vmor %vm2173, %vm2221
        %vm2238 = vmor %vm2174, %vm2222
        %vm2239 = vmor %vm2175, %vm2223
        %vm2240 = vmor %vm2176, %vm2224
        %vm2241 = vmor %vm2177, %vm2225
        %vm2242 = vmor %vm2178, %vm2226
        %v2243 = vrot.slane %v1684, 7
        %v2244 = vrot.slane %v1687, 7
        %v2245 = vrot.slane %v1692, 7
        %v2246 = vrot.slane %v1695, 7
        %v2247 = vrot.slane %v1700, 7
        %v2248 = vrot.slane %v1703, 7
        %v2249 = vrot.slane %v1708, 7
        %v2250 = vrot.slane %v1711, 7
        %v2251 = vrot.slane %v1716, 7
        %v2252 = vrot.slane %v1719, 7
        %v2253 = vrot.slane %v1724, 7
        %v2254 = vrot.slane %v1727, 7
        %v2255 = vrot.slane %v1732, 7
        %v2256 = vrot.slane %v1735, 7
        %v2257 = vrot.slane %v1740, 7
        %v2258 = vrot.slane %v1743, 7
        %vm2259 = vcmp.lt.s32.totalorder %v1747, 1
        %v2260 = vsel %vm2259, %v2257, %v2258
        %v2261 = vsel %vm2259, %v2256, %v2257
        %v2262 = vsel %vm2259, %v2255, %v2256
        %v2263 = vsel %vm2259, %v2254, %v2255
        %v2264 = vsel %vm2259, %v2253, %v2254
        %v2265 = vsel %vm2259, %v2252, %v2253
        %v2266 = vsel %vm2259, %v2251, %v2252
        %v2267 = vsel %vm2259, %v2250, %v2251
        %v2268 = vsel %vm2259, %v2249, %v2250
        %v2269 = vsel %vm2259, %v2248, %v2249
        %v2270 = vsel %vm2259, %v2247, %v2248
        %v2271 = vsel %vm2259, %v2246, %v2247
        %v2272 = vsel %vm2259, %v2245, %v2246
        %v2273 = vsel %vm2259, %v2244, %v2245
        %v2274 = vsel %vm2259, %v2243, %v2244
        %v2275 = vsel %vm2259, %v2258, %v2243
        %v2276 = vsel %vm2195, 1, 0
        %v2277 = vsel %vm2196, 1, 0
        %v2278 = vsel %vm2197, 1, 0
        %v2279 = vsel %vm2198, 1, 0
        %v2280 = vsel %vm2199, 1, 0
        %v2281 = vsel %vm2200, 1, 0
        %v2282 = vsel %vm2201, 1, 0
        %v2283 = vsel %vm2202, 1, 0
        %v2284 = vsel %vm2203, 1, 0
        %v2285 = vsel %vm2204, 1, 0
        %v2286 = vsel %vm2205, 1, 0
        %v2287 = vsel %vm2206, 1, 0
        %v2288 = vsel %vm2207, 1, 0
        %v2289 = vsel %vm2208, 1, 0
        %v2290 = vsel %vm2209, 1, 0
        %v2291 = vsel %vm2210, 1, 0
        %vm2292 = vcmp.eq.s32.totalorder %v2276, 1
        %vm2293 = vcmp.eq.s32.totalorder %v2277, 1
        %vm2294 = vcmp.eq.s32.totalorder %v2278, 1
        %vm2295 = vcmp.eq.s32.totalorder %v2279, 1
        %vm2296 = vcmp.eq.s32.totalorder %v2280, 1
        %vm2297 = vcmp.eq.s32.totalorder %v2281, 1
        %vm2298 = vcmp.eq.s32.totalorder %v2282, 1
        %vm2299 = vcmp.eq.s32.totalorder %v2283, 1
        %vm2300 = vcmp.eq.s32.totalorder %v2284, 1
        %vm2301 = vcmp.eq.s32.totalorder %v2285, 1
        %vm2302 = vcmp.eq.s32.totalorder %v2286, 1
        %vm2303 = vcmp.eq.s32.totalorder %v2287, 1
        %vm2304 = vcmp.eq.s32.totalorder %v2288, 1
        %vm2305 = vcmp.eq.s32.totalorder %v2289, 1
        %vm2306 = vcmp.eq.s32.totalorder %v2290, 1
        %vm2307 = vcmp.eq.s32.totalorder %v2291, 1
        %v2308 = vsel %vm2292, 0.0, %v2275
        %v2309 = vsel %vm2293, 0.0, %v2274
        %v2310 = vsel %vm2294, 0.0, %v2273
        %v2311 = vsel %vm2295, 0.0, %v2272
        %v2312 = vsel %vm2296, 0.0, %v2271
        %v2313 = vsel %vm2297, 0.0, %v2270
        %v2314 = vsel %vm2298, 0.0, %v2269
        %v2315 = vsel %vm2299, 0.0, %v2268
        %v2316 = vsel %vm2300, 0.0, %v2267
        %v2317 = vsel %vm2301, 0.0, %v2266
        %v2318 = vsel %vm2302, 0.0, %v2265
        %v2319 = vsel %vm2303, 0.0, %v2264
        %v2320 = vsel %vm2304, 0.0, %v2263
        %v2321 = vsel %vm2305, 0.0, %v2262
        %v2322 = vsel %vm2306, 0.0, %v2261
        %v2323 = vsel %vm2307, 0.0, %v2260
        %v2324 = vrot.slane %v1684, 1
        %v2325 = vrot.slane %v1687, 1
        %v2326 = vrot.slane %v1692, 1
        %v2327 = vrot.slane %v1695, 1
        %v2328 = vrot.slane %v1700, 1
        %v2329 = vrot.slane %v1703, 1
        %v2330 = vrot.slane %v1708, 1
        %v2331 = vrot.slane %v1711, 1
        %v2332 = vrot.slane %v1716, 1
        %v2333 = vrot.slane %v1719, 1
        %v2334 = vrot.slane %v1724, 1
        %v2335 = vrot.slane %v1727, 1
        %v2336 = vrot.slane %v1732, 1
        %v2337 = vrot.slane %v1735, 1
        %v2338 = vrot.slane %v1740, 1
        %v2339 = vrot.slane %v1743, 1
        %vm2340 = vcmp.lt.s32.totalorder %v1747, 7
        %v2341 = vsel %vm2340, %v2338, %v2339
        %v2342 = vsel %vm2340, %v2337, %v2338
        %v2343 = vsel %vm2340, %v2336, %v2337
        %v2344 = vsel %vm2340, %v2335, %v2336
        %v2345 = vsel %vm2340, %v2334, %v2335
        %v2346 = vsel %vm2340, %v2333, %v2334
        %v2347 = vsel %vm2340, %v2332, %v2333
        %v2348 = vsel %vm2340, %v2331, %v2332
        %v2349 = vsel %vm2340, %v2330, %v2331
        %v2350 = vsel %vm2340, %v2329, %v2330
        %v2351 = vsel %vm2340, %v2328, %v2329
        %v2352 = vsel %vm2340, %v2327, %v2328
        %v2353 = vsel %vm2340, %v2326, %v2327
        %v2354 = vsel %vm2340, %v2325, %v2326
        %v2355 = vsel %vm2340, %v2324, %v2325
        %v2356 = vsel %vm2340, %v2339, %v2324
        %v2357 = vsel %vm2227, 1, 0
        %v2358 = vsel %vm2228, 1, 0
        %v2359 = vsel %vm2229, 1, 0
        %v2360 = vsel %vm2230, 1, 0
        %v2361 = vsel %vm2231, 1, 0
        %v2362 = vsel %vm2232, 1, 0
        %v2363 = vsel %vm2233, 1, 0
        %v2364 = vsel %vm2234, 1, 0
        %v2365 = vsel %vm2235, 1, 0
        %v2366 = vsel %vm2236, 1, 0
        %v2367 = vsel %vm2237, 1, 0
        %v2368 = vsel %vm2238, 1, 0
        %v2369 = vsel %vm2239, 1, 0
        %v2370 = vsel %vm2240, 1, 0
        %v2371 = vsel %vm2241, 1, 0
        %v2372 = vsel %vm2242, 1, 0
        %vm2373 = vcmp.eq.s32.totalorder %v2357, 1
        %vm2374 = vcmp.eq.s32.totalorder %v2358, 1
        %vm2375 = vcmp.eq.s32.totalorder %v2359, 1
        %vm2376 = vcmp.eq.s32.totalorder %v2360, 1
        %vm2377 = vcmp.eq.s32.totalorder %v2361, 1
        %vm2378 = vcmp.eq.s32.totalorder %v2362, 1
        %vm2379 = vcmp.eq.s32.totalorder %v2363, 1
        %vm2380 = vcmp.eq.s32.totalorder %v2364, 1
        %vm2381 = vcmp.eq.s32.totalorder %v2365, 1
        %vm2382 = vcmp.eq.s32.totalorder %v2366, 1
        %vm2383 = vcmp.eq.s32.totalorder %v2367, 1
        %vm2384 = vcmp.eq.s32.totalorder %v2368, 1
        %vm2385 = vcmp.eq.s32.totalorder %v2369, 1
        %vm2386 = vcmp.eq.s32.totalorder %v2370, 1
        %vm2387 = vcmp.eq.s32.totalorder %v2371, 1
        %vm2388 = vcmp.eq.s32.totalorder %v2372, 1
        %v2389 = vsel %vm2373, 0.0, %v2355
        %v2390 = vsel %vm2374, 0.0, %v2354
        %v2391 = vsel %vm2375, 0.0, %v2353
        %v2392 = vsel %vm2376, 0.0, %v2352
        %v2393 = vsel %vm2377, 0.0, %v2351
        %v2394 = vsel %vm2378, 0.0, %v2350
        %v2395 = vsel %vm2379, 0.0, %v2349
        %v2396 = vsel %vm2380, 0.0, %v2348
        %v2397 = vsel %vm2381, 0.0, %v2347
        %v2398 = vsel %vm2382, 0.0, %v2346
        %v2399 = vsel %vm2383, 0.0, %v2345
        %v2400 = vsel %vm2384, 0.0, %v2344
        %v2401 = vsel %vm2385, 0.0, %v2343
        %v2402 = vsel %vm2386, 0.0, %v2342
        %v2403 = vsel %vm2387, 0.0, %v2341
        %v2404 = vsel %vm2388, 0.0, %v2356
        %v2405 = vpack.c.bf16 %v2309, %v2308
        %v2406 = vpack.c.bf16 %v2311, %v2310
        %v2407 = vpack.c.bf16 %v2313, %v2312
        %v2408 = vpack.c.bf16 %v2315, %v2314
        %v2409 = vpack.c.bf16 %v2317, %v2316
        %v2410 = vpack.c.bf16 %v2319, %v2318
        %v2411 = vpack.c.bf16 %v2321, %v2320
        %v2412 = vpack.c.bf16 %v2323, %v2322
        %v2413 = vpack.c.bf16 %v1687, %v1684
        %v2414 = vpack.c.bf16 %v1695, %v1692
        %v2415 = vpack.c.bf16 %v1703, %v1700
        %v2416 = vpack.c.bf16 %v1711, %v1708
        %v2417 = vpack.c.bf16 %v1719, %v1716
        %v2418 = vpack.c.bf16 %v1727, %v1724
        %v2419 = vpack.c.bf16 %v1735, %v1732
        %v2420 = vpack.c.bf16 %v1743, %v1740
        %v2421 = vpack.c.bf16 %v2390, %v2389
        %v2422 = vpack.c.bf16 %v2392, %v2391
        %v2423 = vpack.c.bf16 %v2394, %v2393
        %v2424 = vpack.c.bf16 %v2396, %v2395
        %v2425 = vpack.c.bf16 %v2398, %v2397
        %v2426 = vpack.c.bf16 %v2400, %v2399
        %v2427 = vpack.c.bf16 %v2402, %v2401
        %v2428 = vpack.c.bf16 %v2404, %v2403
        %v2429 = vld [vmem:[#allocation20] sm:$0xf]
        %v2430 = vld [vmem:[#allocation20 + $0x4] sm:$0xf]
        %v2431 = vld [vmem:[#allocation20 + $0x8] sm:$0xf]
        %v2432 = vld [vmem:[#allocation20 + $0xc] sm:$0xf]
        %v2433 = vld [vmem:[#allocation20 + $0x10] sm:$0xf]
        %v2434 = vld [vmem:[#allocation20 + $0x14] sm:$0xf]
        %v2435 = vld [vmem:[#allocation20 + $0x18] sm:$0xf]
        %v2436 = vld [vmem:[#allocation20 + $0x1c] sm:$0xf]
        %v2437 = vld [vmem:[#allocation20 + $0x20] sm:$0xf]
        %v2438 = vld [vmem:[#allocation20 + $0x24] sm:$0xf]
        %v2439 = vld [vmem:[#allocation20 + $0x28] sm:$0xf]
        %v2440 = vld [vmem:[#allocation20 + $0x2c] sm:$0xf]
        %v2441 = vld [vmem:[#allocation20 + $0x30] sm:$0xf]
        %v2442 = vld [vmem:[#allocation20 + $0x34] sm:$0xf]
        %v2443 = vld [vmem:[#allocation20 + $0x38] sm:$0xf]
        %v2444 = vld [vmem:[#allocation20 + $0x3c] sm:$0xf]
        %v2445 = vld [vmem:[#allocation20 + $0x40] sm:$0xf]
        %v2446 = vld [vmem:[#allocation20 + $0x44] sm:$0xf]
        %v2447 = vld [vmem:[#allocation20 + $0x48] sm:$0xf]
        %v2448 = vld [vmem:[#allocation20 + $0x4c] sm:$0xf]
        %v2449 = vld [vmem:[#allocation20 + $0x50] sm:$0xf]
        %v2450 = vld [vmem:[#allocation20 + $0x54] sm:$0xf]
        %v2451 = vld [vmem:[#allocation20 + $0x58] sm:$0xf]
        %v2452 = vld [vmem:[#allocation20 + $0x5c] sm:$0xf]
        %v2453 = vld [vmem:[#allocation20 + $0x60] sm:$0xf]
        %v2454 = vld [vmem:[#allocation20 + $0x64] sm:$0xf]
        %v2455 = vld [vmem:[#allocation20 + $0x68] sm:$0xf]
        %v2456 = vld [vmem:[#allocation20 + $0x6c] sm:$0xf]
        %v2457 = vld [vmem:[#allocation20 + $0x70] sm:$0xf]
        %v2458 = vld [vmem:[#allocation20 + $0x74] sm:$0xf]
        %v2459 = vld [vmem:[#allocation20 + $0x78] sm:$0xf]
        %v2460 = vld [vmem:[#allocation20 + $0x7c] sm:$0xf]
        %v2461 = vld [vmem:[#allocation20 + $0x80] sm:$0xf]
        %v2462 = vld [vmem:[#allocation20 + $0x84] sm:$0xf]
        %v2463 = vld [vmem:[#allocation20 + $0x88] sm:$0xf]
        %v2464 = vld [vmem:[#allocation20 + $0x8c] sm:$0xf]
        %v2465 = vld [vmem:[#allocation20 + $0x90] sm:$0xf]
        %v2466 = vld [vmem:[#allocation20 + $0x94] sm:$0xf]
        %v2467 = vld [vmem:[#allocation20 + $0x98] sm:$0xf]
        %v2468 = vld [vmem:[#allocation20 + $0x9c] sm:$0xf]
        %v2469 = vld [vmem:[#allocation20 + $0xa0] sm:$0xf]
        %v2470 = vld [vmem:[#allocation20 + $0xa4] sm:$0xf]
        %v2471 = vld [vmem:[#allocation20 + $0xa8] sm:$0xf]
        %v2472 = vld [vmem:[#allocation20 + $0xac] sm:$0xf]
        %v2473 = vld [vmem:[#allocation20 + $0xb0] sm:$0xf]
        %v2474 = vld [vmem:[#allocation20 + $0xb4] sm:$0xf]
        %v2475 = vld [vmem:[#allocation20 + $0xb8] sm:$0xf]
        %v2476 = vld [vmem:[#allocation20 + $0xbc] sm:$0xf]
        %v2525 = vunpack.c.l.b16 %v2429
        %v2526 = vunpack.c.l.b16 %v2430
        %v2527 = vunpack.c.l.b16 %v2431
        %v2528 = vunpack.c.l.b16 %v2432
        %v2529 = vunpack.c.l.b16 %v2433
        %v2530 = vunpack.c.l.b16 %v2434
        %v2531 = vunpack.c.l.b16 %v2435
        %v2532 = vunpack.c.l.b16 %v2436
        %v2533 = vunpack.c.l.b16 %v2437
        %v2534 = vunpack.c.l.b16 %v2438
        %v2535 = vunpack.c.l.b16 %v2439
        %v2536 = vunpack.c.l.b16 %v2440
        %v2537 = vunpack.c.l.b16 %v2441
        %v2538 = vunpack.c.l.b16 %v2442
        %v2539 = vunpack.c.l.b16 %v2443
        %v2540 = vunpack.c.l.b16 %v2444
        %v2541 = vunpack.c.l.b16 %v2445
        %v2542 = vunpack.c.l.b16 %v2446
        %v2543 = vunpack.c.l.b16 %v2447
        %v2544 = vunpack.c.l.b16 %v2448
        %v2545 = vunpack.c.l.b16 %v2449
        %v2546 = vunpack.c.l.b16 %v2450
        %v2547 = vunpack.c.l.b16 %v2451
        %v2548 = vunpack.c.l.b16 %v2452
        %v2549 = vunpack.c.l.b16 %v2453
        %v2550 = vunpack.c.l.b16 %v2454
        %v2551 = vunpack.c.l.b16 %v2455
        %v2552 = vunpack.c.l.b16 %v2456
        %v2553 = vunpack.c.l.b16 %v2457
        %v2554 = vunpack.c.l.b16 %v2458
        %v2555 = vunpack.c.l.b16 %v2459
        %v2556 = vunpack.c.l.b16 %v2460
        %v2557 = vunpack.c.l.b16 %v2461
        %v2558 = vunpack.c.l.b16 %v2462
        %v2559 = vunpack.c.l.b16 %v2463
        %v2560 = vunpack.c.l.b16 %v2464
        %v2561 = vunpack.c.l.b16 %v2465
        %v2562 = vunpack.c.l.b16 %v2466
        %v2563 = vunpack.c.l.b16 %v2467
        %v2564 = vunpack.c.l.b16 %v2468
        %v2565 = vunpack.c.l.b16 %v2469
        %v2566 = vunpack.c.l.b16 %v2470
        %v2567 = vunpack.c.l.b16 %v2471
        %v2568 = vunpack.c.l.b16 %v2472
        %v2569 = vunpack.c.l.b16 %v2473
        %v2570 = vunpack.c.l.b16 %v2474
        %v2571 = vunpack.c.l.b16 %v2475
        %v2572 = vunpack.c.l.b16 %v2476
        %v2573 = vpack.c.b16 %v2526, %v2525
        %v2574 = vpack.c.b16 %v2528, %v2527
        %v2575 = vpack.c.b16 %v2530, %v2529
        %v2576 = vpack.c.b16 %v2532, %v2531
        %v2577 = vpack.c.b16 %v2534, %v2533
        %v2578 = vpack.c.b16 %v2536, %v2535
        %v2579 = vpack.c.b16 %v2538, %v2537
        %v2580 = vpack.c.b16 %v2540, %v2539
        %v2581 = vpack.c.b16 %v2542, %v2541
        %v2582 = vpack.c.b16 %v2544, %v2543
        %v2583 = vpack.c.b16 %v2546, %v2545
        %v2584 = vpack.c.b16 %v2548, %v2547
        %v2585 = vpack.c.b16 %v2550, %v2549
        %v2586 = vpack.c.b16 %v2552, %v2551
        %v2587 = vpack.c.b16 %v2554, %v2553
        %v2588 = vpack.c.b16 %v2556, %v2555
        %v2589 = vpack.c.b16 %v2558, %v2557
        %v2590 = vpack.c.b16 %v2560, %v2559
        %v2591 = vpack.c.b16 %v2562, %v2561
        %v2592 = vpack.c.b16 %v2564, %v2563
        %v2593 = vpack.c.b16 %v2566, %v2565
        %v2594 = vpack.c.b16 %v2568, %v2567
        %v2595 = vpack.c.b16 %v2570, %v2569
        %v2596 = vpack.c.b16 %v2572, %v2571
        %2621 = vmatprep.subr.bf16.mxu0 0
        %2622 = vmatpush1.bf16.msra.mxu0 %v2573
        %2623 = vmatprep.subr.bf16.mxu0 0
        %2624 = vmatpush1.bf16.msra.mxu0 %v2574
        %2625 = vmatprep.subr.bf16.mxu0 0
        %2626 = vmatpush1.bf16.msra.mxu0 %v2575
        %2627 = vmatprep.subr.bf16.mxu0 0
        %2628 = vmatpush1.bf16.msra.mxu0 %v2576
        %2629 = vmatprep.subr.bf16.mxu0 0
        %2630 = vmatpush1.bf16.msra.mxu0 %v2577
        %2631 = vmatprep.subr.bf16.mxu0 0
        %2632 = vmatpush1.bf16.msra.mxu0 %v2578
        %2633 = vmatprep.subr.bf16.mxu0 0
        %2634 = vmatpush1.bf16.msra.mxu0 %v2579
        %2635 = vmatprep.subr.bf16.mxu0 0
        %2636 = vmatpush1.bf16.msra.mxu0 %v2580
        %2637 = vmatprep.subr.bf16.mxu0 0
        %2638 = vmatpush1.bf16.msra.mxu0 %v2581
        %2639 = vmatprep.subr.bf16.mxu0 0
        %2640 = vmatpush1.bf16.msra.mxu0 %v2582
        %2641 = vmatprep.subr.bf16.mxu0 0
        %2642 = vmatpush1.bf16.msra.mxu0 %v2583
        %2643 = vmatprep.subr.bf16.mxu0 0
        %2644 = vmatpush1.bf16.msra.mxu0 %v2584
        %2645 = vmatprep.subr.bf16.mxu0 0
        %2646 = vmatpush1.bf16.msra.mxu0 %v2585
        %2647 = vmatprep.subr.bf16.mxu0 0
        %2648 = vmatpush1.bf16.msra.mxu0 %v2586
        %2649 = vmatprep.subr.bf16.mxu0 0
        %2650 = vmatpush1.bf16.msra.mxu0 %v2587
        %2651 = vmatprep.subr.bf16.mxu0 0
        %2652 = vmatpush1.bf16.msra.mxu0 %v2588
        %2653 = vmatprep.mubr.bf16.mxu0 %v2413
        %2654 = vmatmul.mubr.bf16.gmra.mrb[0].mxu0 %v2405
        %v2655 = vpop.f32.mrb[0].mxu0
        %v2656 = vadd.f32 0.0, %v2655
        %v2657 = vpop.f32.mrb[0].mxu0
        %v2658 = vpop.f32.mrb[0].mxu0
        %v2659 = vadd.f32 0.0, %v2658
        %v2660 = vpop.f32.mrb[0].mxu0
        %2661 = vmatprep.mubr.bf16.mxu0 %v2414
        %2662 = vmatmul.mubr.bf16.gmra.mrb[0].mxu0 %v2406
        %v2663 = vpop.f32.mrb[0].mxu0
        %v2664 = vadd.f32 0.0, %v2663
        %v2665 = vpop.f32.mrb[0].mxu0
        %v2666 = vpop.f32.mrb[0].mxu0
        %v2667 = vadd.f32 0.0, %v2666
        %v2668 = vpop.f32.mrb[0].mxu0
        %2669 = vmatprep.mubr.bf16.mxu0 %v2415
        %2670 = vmatmul.mubr.bf16.gmra.mrb[0].mxu0 %v2407
        %v2671 = vpop.f32.mrb[0].mxu0
        %v2672 = vadd.f32 0.0, %v2671
        %v2673 = vpop.f32.mrb[0].mxu0
        %v2674 = vpop.f32.mrb[0].mxu0
        %v2675 = vadd.f32 0.0, %v2674
        %v2676 = vpop.f32.mrb[0].mxu0
        %2677 = vmatprep.mubr.bf16.mxu0 %v2416
        %2678 = vmatmul.mubr.bf16.gmra.mrb[0].mxu0 %v2408
        %v2679 = vpop.f32.mrb[0].mxu0
        %v2680 = vadd.f32 0.0, %v2679
        %v2681 = vpop.f32.mrb[0].mxu0
        %v2682 = vpop.f32.mrb[0].mxu0
        %v2683 = vadd.f32 0.0, %v2682
        %v2684 = vpop.f32.mrb[0].mxu0
        %2685 = vmatprep.mubr.bf16.mxu0 %v2417
        %2686 = vmatmul.mubr.bf16.gmra.mrb[0].mxu0 %v2409
        %v2687 = vpop.f32.mrb[0].mxu0
        %v2688 = vadd.f32 0.0, %v2687
        %v2689 = vpop.f32.mrb[0].mxu0
        %v2690 = vpop.f32.mrb[0].mxu0
        %v2691 = vadd.f32 0.0, %v2690
        %v2692 = vpop.f32.mrb[0].mxu0
        %2693 = vmatprep.mubr.bf16.mxu0 %v2418
        %2694 = vmatmul.mubr.bf16.gmra.mrb[0].mxu0 %v2410
        %v2695 = vpop.f32.mrb[0].mxu0
        %v2696 = vadd.f32 0.0, %v2695
        %v2697 = vpop.f32.mrb[0].mxu0
        %v2698 = vpop.f32.mrb[0].mxu0
        %v2699 = vadd.f32 0.0, %v2698
        %v2700 = vpop.f32.mrb[0].mxu0
        %2701 = vmatprep.mubr.bf16.mxu0 %v2419
        %2702 = vmatmul.mubr.bf16.gmra.mrb[0].mxu0 %v2411
        %v2703 = vpop.f32.mrb[0].mxu0
        %v2704 = vadd.f32 0.0, %v2703
        %v2705 = vpop.f32.mrb[0].mxu0
        %v2706 = vpop.f32.mrb[0].mxu0
        %v2707 = vadd.f32 0.0, %v2706
        %v2708 = vpop.f32.mrb[0].mxu0
        %2709 = vmatprep.mubr.bf16.mxu0 %v2420
        %2710 = vmatmul.mubr.bf16.gmra.mrb[0].mxu0 %v2412
        %v2711 = vpop.f32.mrb[0].mxu0
        %v2712 = vadd.f32 0.0, %v2711
        %v2713 = vpop.f32.mrb[0].mxu0
        %v2714 = vpop.f32.mrb[0].mxu0
        %v2715 = vadd.f32 0.0, %v2714
        %v2716 = vpop.f32.mrb[0].mxu0
        %2717 = vdwg.mxu0
        %2718 = vmatprep.subr.bf16.mxu0 0
        %2719 = vmatpush1.bf16.msra.mxu0 %v2589
        %2720 = vmatprep.subr.bf16.mxu0 0
        %2721 = vmatpush1.bf16.msra.mxu0 %v2590
        %2722 = vmatprep.subr.bf16.mxu0 0
        %2723 = vmatpush1.bf16.msra.mxu0 %v2591
        %2724 = vmatprep.subr.bf16.mxu0 0
        %2725 = vmatpush1.bf16.msra.mxu0 %v2592
        %2726 = vmatprep.subr.bf16.mxu0 0
        %2727 = vmatpush1.bf16.msra.mxu0 %v2593
        %2728 = vmatprep.subr.bf16.mxu0 0
        %2729 = vmatpush1.bf16.msra.mxu0 %v2594
        %2730 = vmatprep.subr.bf16.mxu0 0
        %2731 = vmatpush1.bf16.msra.mxu0 %v2595
        %2732 = vmatprep.subr.bf16.mxu0 0
        %2733 = vmatpush1.bf16.msra.mxu0 %v2596
        %2734 = vmatprep.subr.bf16.mxu0 0
        %2735 = vmatpush1.bf16.msra.mxu0 0
        %2736 = vmatprep.subr.bf16.mxu0 0
        %2737 = vmatpush1.bf16.msra.mxu0 0
        %2738 = vmatprep.subr.bf16.mxu0 0
        %2739 = vmatpush1.bf16.msra.mxu0 0
        %2740 = vmatprep.subr.bf16.mxu0 0
        %2741 = vmatpush1.bf16.msra.mxu0 0
        %2742 = vmatprep.subr.bf16.mxu0 0
        %2743 = vmatpush1.bf16.msra.mxu0 0
        %2744 = vmatprep.subr.bf16.mxu0 0
        %2745 = vmatpush1.bf16.msra.mxu0 0
        %2746 = vmatprep.subr.bf16.mxu0 0
        %2747 = vmatpush1.bf16.msra.mxu0 0
        %2748 = vmatprep.subr.bf16.mxu0 0
        %2749 = vmatpush1.bf16.msra.mxu0 0
        %2750 = vmatprep.mubr.bf16.mxu0 0
        %2751 = vmatmul.mubr.bf16.gmra.mrb[0].mxu0 %v2421
        %v2752 = vpop.f32.mrb[0].mxu0
        %v2753 = vadd.f32 %v2656, %v2752
        %v2754 = vpop.f32.mrb[0].mxu0
        %v2755 = vpop.f32.mrb[0].mxu0
        %v2756 = vadd.f32 %v2659, %v2755
        %v2757 = vpop.f32.mrb[0].mxu0
        %2758 = vmatprep.mubr.bf16.mxu0 0
        %2759 = vmatmul.mubr.bf16.gmra.mrb[0].mxu0 %v2422
        %v2760 = vpop.f32.mrb[0].mxu0
        %v2761 = vadd.f32 %v2664, %v2760
        %v2762 = vpop.f32.mrb[0].mxu0
        %v2763 = vpop.f32.mrb[0].mxu0
        %v2764 = vadd.f32 %v2667, %v2763
        %v2765 = vpop.f32.mrb[0].mxu0
        %2766 = vmatprep.mubr.bf16.mxu0 0
        %2767 = vmatmul.mubr.bf16.gmra.mrb[0].mxu0 %v2423
        %v2768 = vpop.f32.mrb[0].mxu0
        %v2769 = vadd.f32 %v2672, %v2768
        %v2770 = vpop.f32.mrb[0].mxu0
        %v2771 = vpop.f32.mrb[0].mxu0
        %v2772 = vadd.f32 %v2675, %v2771
        %v2773 = vpop.f32.mrb[0].mxu0
        %2774 = vmatprep.mubr.bf16.mxu0 0
        %2775 = vmatmul.mubr.bf16.gmra.mrb[0].mxu0 %v2424
        %v2776 = vpop.f32.mrb[0].mxu0
        %v2777 = vadd.f32 %v2680, %v2776
        %v2778 = vpop.f32.mrb[0].mxu0
        %v2779 = vpop.f32.mrb[0].mxu0
        %v2780 = vadd.f32 %v2683, %v2779
        %v2781 = vpop.f32.mrb[0].mxu0
        %2782 = vmatprep.mubr.bf16.mxu0 0
        %2783 = vmatmul.mubr.bf16.gmra.mrb[0].mxu0 %v2425
        %v2784 = vpop.f32.mrb[0].mxu0
        %v2785 = vadd.f32 %v2688, %v2784
        %v2786 = vpop.f32.mrb[0].mxu0
        %v2787 = vpop.f32.mrb[0].mxu0
        %v2788 = vadd.f32 %v2691, %v2787
        %v2789 = vpop.f32.mrb[0].mxu0
        %2790 = vmatprep.mubr.bf16.mxu0 0
        %2791 = vmatmul.mubr.bf16.gmra.mrb[0].mxu0 %v2426
        %v2792 = vpop.f32.mrb[0].mxu0
        %v2793 = vadd.f32 %v2696, %v2792
        %v2794 = vpop.f32.mrb[0].mxu0
        %v2795 = vpop.f32.mrb[0].mxu0
        %v2796 = vadd.f32 %v2699, %v2795
        %v2797 = vpop.f32.mrb[0].mxu0
        %2798 = vmatprep.mubr.bf16.mxu0 0
        %2799 = vmatmul.mubr.bf16.gmra.mrb[0].mxu0 %v2427
        %v2800 = vpop.f32.mrb[0].mxu0
        %v2801 = vadd.f32 %v2704, %v2800
        %v2802 = vpop.f32.mrb[0].mxu0
        %v2803 = vpop.f32.mrb[0].mxu0
        %v2804 = vadd.f32 %v2707, %v2803
        %v2805 = vpop.f32.mrb[0].mxu0
        %2806 = vmatprep.mubr.bf16.mxu0 0
        %2807 = vmatmul.mubr.bf16.gmra.mrb[0].mxu0 %v2428
        %v2808 = vpop.f32.mrb[0].mxu0
        %v2809 = vadd.f32 %v2712, %v2808
        %v2810 = vpop.f32.mrb[0].mxu0
        %v2811 = vpop.f32.mrb[0].mxu0
        %v2812 = vadd.f32 %v2715, %v2811
        %v2813 = vpop.f32.mrb[0].mxu0
        %2814 = vdwg.mxu0
        %v2815 = vld [vmem:[#allocation22] sm:$0x1]
        %v2817 = vlaneseq
        %v2818 = vshrl.u32 %v2817, 7
        %v2819 = vsub.s32 0, %v2818
        %v2820 = vrot.slane %v2815, %v2819
        %v2822 = vmul.f32 %v2753, %v2820
        %v2823 = vmul.f32 %v2756, %v2820
        %v2824 = vmul.f32 %v2761, %v2820
        %v2825 = vmul.f32 %v2764, %v2820
        %v2826 = vmul.f32 %v2769, %v2820
        %v2827 = vmul.f32 %v2772, %v2820
        %v2828 = vmul.f32 %v2777, %v2820
        %v2829 = vmul.f32 %v2780, %v2820
        %v2830 = vmul.f32 %v2785, %v2820
        %v2831 = vmul.f32 %v2788, %v2820
        %v2832 = vmul.f32 %v2793, %v2820
        %v2833 = vmul.f32 %v2796, %v2820
        %v2834 = vmul.f32 %v2801, %v2820
        %v2835 = vmul.f32 %v2804, %v2820
        %v2836 = vmul.f32 %v2809, %v2820
        %v2837 = vmul.f32 %v2812, %v2820
        %v2838 = vld [vmem:[#allocation23] sm:$0x1]
        %v2840 = vlaneseq
        %v2841 = vshrl.u32 %v2840, 7
        %v2842 = vsub.s32 0, %v2841
        %v2843 = vrot.slane %v2838, %v2842
        %v2845 = vadd.f32 %v2822, %v2843
        %v2846 = vadd.f32 %v2823, %v2843
        %v2847 = vadd.f32 %v2824, %v2843
        %v2848 = vadd.f32 %v2825, %v2843
        %v2849 = vadd.f32 %v2826, %v2843
        %v2850 = vadd.f32 %v2827, %v2843
        %v2851 = vadd.f32 %v2828, %v2843
        %v2852 = vadd.f32 %v2829, %v2843
        %v2853 = vadd.f32 %v2830, %v2843
        %v2854 = vadd.f32 %v2831, %v2843
        %v2855 = vadd.f32 %v2832, %v2843
        %v2856 = vadd.f32 %v2833, %v2843
        %v2857 = vadd.f32 %v2834, %v2843
        %v2858 = vadd.f32 %v2835, %v2843
        %v2859 = vadd.f32 %v2836, %v2843
        %v2860 = vadd.f32 %v2837, %v2843
        %v2861 = vmax.f32 %v2845, 0.0
        %v2862 = vmax.f32 %v2846, 0.0
        %v2863 = vmax.f32 %v2847, 0.0
        %v2864 = vmax.f32 %v2848, 0.0
        %v2865 = vmax.f32 %v2849, 0.0
        %v2866 = vmax.f32 %v2850, 0.0
        %v2867 = vmax.f32 %v2851, 0.0
        %v2868 = vmax.f32 %v2852, 0.0
        %v2869 = vmax.f32 %v2853, 0.0
        %v2870 = vmax.f32 %v2854, 0.0
        %v2871 = vmax.f32 %v2855, 0.0
        %v2872 = vmax.f32 %v2856, 0.0
        %v2873 = vmax.f32 %v2857, 0.0
        %v2874 = vmax.f32 %v2858, 0.0
        %v2875 = vmax.f32 %v2859, 0.0
        %v2876 = vmax.f32 %v2860, 0.0
        %v2877 = vrot.slane %v2861, 7
        %v2878 = vrot.slane %v2862, 7
        %v2879 = vrot.slane %v2863, 7
        %v2880 = vrot.slane %v2864, 7
        %v2881 = vrot.slane %v2865, 7
        %v2882 = vrot.slane %v2866, 7
        %v2883 = vrot.slane %v2867, 7
        %v2884 = vrot.slane %v2868, 7
        %v2885 = vrot.slane %v2869, 7
        %v2886 = vrot.slane %v2870, 7
        %v2887 = vrot.slane %v2871, 7
        %v2888 = vrot.slane %v2872, 7
        %v2889 = vrot.slane %v2873, 7
        %v2890 = vrot.slane %v2874, 7
        %v2891 = vrot.slane %v2875, 7
        %v2892 = vrot.slane %v2876, 7
        %v2893 = vsel %vm2259, %v2891, %v2892
        %v2894 = vsel %vm2259, %v2890, %v2891
        %v2895 = vsel %vm2259, %v2889, %v2890
        %v2896 = vsel %vm2259, %v2888, %v2889
        %v2897 = vsel %vm2259, %v2887, %v2888
        %v2898 = vsel %vm2259, %v2886, %v2887
        %v2899 = vsel %vm2259, %v2885, %v2886
        %v2900 = vsel %vm2259, %v2884, %v2885
        %v2901 = vsel %vm2259, %v2883, %v2884
        %v2902 = vsel %vm2259, %v2882, %v2883
        %v2903 = vsel %vm2259, %v2881, %v2882
        %v2904 = vsel %vm2259, %v2880, %v2881
        %v2905 = vsel %vm2259, %v2879, %v2880
        %v2906 = vsel %vm2259, %v2878, %v2879
        %v2907 = vsel %vm2259, %v2877, %v2878
        %v2908 = vsel %vm2259, %v2892, %v2877
        %v2909 = vsel %vm2292, 0.0, %v2908
        %v2910 = vsel %vm2293, 0.0, %v2907
        %v2911 = vsel %vm2294, 0.0, %v2906
        %v2912 = vsel %vm2295, 0.0, %v2905
        %v2913 = vsel %vm2296, 0.0, %v2904
        %v2914 = vsel %vm2297, 0.0, %v2903
        %v2915 = vsel %vm2298, 0.0, %v2902
        %v2916 = vsel %vm2299, 0.0, %v2901
        %v2917 = vsel %vm2300, 0.0, %v2900
        %v2918 = vsel %vm2301, 0.0, %v2899
        %v2919 = vsel %vm2302, 0.0, %v2898
        %v2920 = vsel %vm2303, 0.0, %v2897
        %v2921 = vsel %vm2304, 0.0, %v2896
        %v2922 = vsel %vm2305, 0.0, %v2895
        %v2923 = vsel %vm2306, 0.0, %v2894
        %v2924 = vsel %vm2307, 0.0, %v2893
        %v2925 = vrot.slane %v2861, 1
        %v2926 = vrot.slane %v2862, 1
        %v2927 = vrot.slane %v2863, 1
        %v2928 = vrot.slane %v2864, 1
        %v2929 = vrot.slane %v2865, 1
        %v2930 = vrot.slane %v2866, 1
        %v2931 = vrot.slane %v2867, 1
        %v2932 = vrot.slane %v2868, 1
        %v2933 = vrot.slane %v2869, 1
        %v2934 = vrot.slane %v2870, 1
        %v2935 = vrot.slane %v2871, 1
        %v2936 = vrot.slane %v2872, 1
        %v2937 = vrot.slane %v2873, 1
        %v2938 = vrot.slane %v2874, 1
        %v2939 = vrot.slane %v2875, 1
        %v2940 = vrot.slane %v2876, 1
        %v2941 = vsel %vm2340, %v2939, %v2940
        %v2942 = vsel %vm2340, %v2938, %v2939
        %v2943 = vsel %vm2340, %v2937, %v2938
        %v2944 = vsel %vm2340, %v2936, %v2937
        %v2945 = vsel %vm2340, %v2935, %v2936
        %v2946 = vsel %vm2340, %v2934, %v2935
        %v2947 = vsel %vm2340, %v2933, %v2934
        %v2948 = vsel %vm2340, %v2932, %v2933
        %v2949 = vsel %vm2340, %v2931, %v2932
        %v2950 = vsel %vm2340, %v2930, %v2931
        %v2951 = vsel %vm2340, %v2929, %v2930
        %v2952 = vsel %vm2340, %v2928, %v2929
        %v2953 = vsel %vm2340, %v2927, %v2928
        %v2954 = vsel %vm2340, %v2926, %v2927
        %v2955 = vsel %vm2340, %v2925, %v2926
        %v2956 = vsel %vm2340, %v2940, %v2925
        %v2957 = vsel %vm2373, 0.0, %v2955
        %v2958 = vsel %vm2374, 0.0, %v2954
        %v2959 = vsel %vm2375, 0.0, %v2953
        %v2960 = vsel %vm2376, 0.0, %v2952
        %v2961 = vsel %vm2377, 0.0, %v2951
        %v2962 = vsel %vm2378, 0.0, %v2950
        %v2963 = vsel %vm2379, 0.0, %v2949
        %v2964 = vsel %vm2380, 0.0, %v2948
        %v2965 = vsel %vm2381, 0.0, %v2947
        %v2966 = vsel %vm2382, 0.0, %v2946
        %v2967 = vsel %vm2383, 0.0, %v2945
        %v2968 = vsel %vm2384, 0.0, %v2944
        %v2969 = vsel %vm2385, 0.0, %v2943
        %v2970 = vsel %vm2386, 0.0, %v2942
        %v2971 = vsel %vm2387, 0.0, %v2941
        %v2972 = vsel %vm2388, 0.0, %v2956
        %v2973 = vpack.c.bf16 %v2910, %v2909
        %v2974 = vpack.c.bf16 %v2912, %v2911
        %v2975 = vpack.c.bf16 %v2914, %v2913
        %v2976 = vpack.c.bf16 %v2916, %v2915
        %v2977 = vpack.c.bf16 %v2918, %v2917
        %v2978 = vpack.c.bf16 %v2920, %v2919
        %v2979 = vpack.c.bf16 %v2922, %v2921
        %v2980 = vpack.c.bf16 %v2924, %v2923
        %v2981 = vpack.c.bf16 %v2862, %v2861
        %v2982 = vpack.c.bf16 %v2864, %v2863
        %v2983 = vpack.c.bf16 %v2866, %v2865
        %v2984 = vpack.c.bf16 %v2868, %v2867
        %v2985 = vpack.c.bf16 %v2870, %v2869
        %v2986 = vpack.c.bf16 %v2872, %v2871
        %v2987 = vpack.c.bf16 %v2874, %v2873
        %v2988 = vpack.c.bf16 %v2876, %v2875
        %v2989 = vpack.c.bf16 %v2958, %v2957
        %v2990 = vpack.c.bf16 %v2960, %v2959
        %v2991 = vpack.c.bf16 %v2962, %v2961
        %v2992 = vpack.c.bf16 %v2964, %v2963
        %v2993 = vpack.c.bf16 %v2966, %v2965
        %v2994 = vpack.c.bf16 %v2968, %v2967
        %v2995 = vpack.c.bf16 %v2970, %v2969
        %v2996 = vpack.c.bf16 %v2972, %v2971
        %s2997 = scalar_lea.vmem [#allocation20], 192
        %v2998 = vld [vmem:[%s2997] sm:$0xf]
        %v2999 = vld [vmem:[%s2997 + $0x4] sm:$0xf]
        %v3000 = vld [vmem:[%s2997 + $0x8] sm:$0xf]
        %v3001 = vld [vmem:[%s2997 + $0xc] sm:$0xf]
        %v3002 = vld [vmem:[%s2997 + $0x10] sm:$0xf]
        %v3003 = vld [vmem:[%s2997 + $0x14] sm:$0xf]
        %v3004 = vld [vmem:[%s2997 + $0x18] sm:$0xf]
        %v3005 = vld [vmem:[%s2997 + $0x1c] sm:$0xf]
        %v3006 = vld [vmem:[%s2997 + $0x20] sm:$0xf]
        %v3007 = vld [vmem:[%s2997 + $0x24] sm:$0xf]
        %v3008 = vld [vmem:[%s2997 + $0x28] sm:$0xf]
        %v3009 = vld [vmem:[%s2997 + $0x2c] sm:$0xf]
        %v3010 = vld [vmem:[%s2997 + $0x30] sm:$0xf]
        %v3011 = vld [vmem:[%s2997 + $0x34] sm:$0xf]
        %v3012 = vld [vmem:[%s2997 + $0x38] sm:$0xf]
        %v3013 = vld [vmem:[%s2997 + $0x3c] sm:$0xf]
        %v3014 = vld [vmem:[%s2997 + $0x40] sm:$0xf]
        %v3015 = vld [vmem:[%s2997 + $0x44] sm:$0xf]
        %v3016 = vld [vmem:[%s2997 + $0x48] sm:$0xf]
        %v3017 = vld [vmem:[%s2997 + $0x4c] sm:$0xf]
        %v3018 = vld [vmem:[%s2997 + $0x50] sm:$0xf]
        %v3019 = vld [vmem:[%s2997 + $0x54] sm:$0xf]
        %v3020 = vld [vmem:[%s2997 + $0x58] sm:$0xf]
        %v3021 = vld [vmem:[%s2997 + $0x5c] sm:$0xf]
        %v3022 = vld [vmem:[%s2997 + $0x60] sm:$0xf]
        %v3023 = vld [vmem:[%s2997 + $0x64] sm:$0xf]
        %v3024 = vld [vmem:[%s2997 + $0x68] sm:$0xf]
        %v3025 = vld [vmem:[%s2997 + $0x6c] sm:$0xf]
        %v3026 = vld [vmem:[%s2997 + $0x70] sm:$0xf]
        %v3027 = vld [vmem:[%s2997 + $0x74] sm:$0xf]
        %v3028 = vld [vmem:[%s2997 + $0x78] sm:$0xf]
        %v3029 = vld [vmem:[%s2997 + $0x7c] sm:$0xf]
        %v3030 = vld [vmem:[%s2997 + $0x80] sm:$0xf]
        %v3031 = vld [vmem:[%s2997 + $0x84] sm:$0xf]
        %v3032 = vld [vmem:[%s2997 + $0x88] sm:$0xf]
        %v3033 = vld [vmem:[%s2997 + $0x8c] sm:$0xf]
        %v3034 = vld [vmem:[%s2997 + $0x90] sm:$0xf]
        %v3035 = vld [vmem:[%s2997 + $0x94] sm:$0xf]
        %v3036 = vld [vmem:[%s2997 + $0x98] sm:$0xf]
        %v3037 = vld [vmem:[%s2997 + $0x9c] sm:$0xf]
        %v3038 = vld [vmem:[%s2997 + $0xa0] sm:$0xf]
        %v3039 = vld [vmem:[%s2997 + $0xa4] sm:$0xf]
        %v3040 = vld [vmem:[%s2997 + $0xa8] sm:$0xf]
        %v3041 = vld [vmem:[%s2997 + $0xac] sm:$0xf]
        %v3042 = vld [vmem:[%s2997 + $0xb0] sm:$0xf]
        %v3043 = vld [vmem:[%s2997 + $0xb4] sm:$0xf]
        %v3044 = vld [vmem:[%s2997 + $0xb8] sm:$0xf]
        %v3045 = vld [vmem:[%s2997 + $0xbc] sm:$0xf]
        %v3094 = vunpack.c.l.b16 %v2998
        %v3095 = vunpack.c.l.b16 %v2999
        %v3096 = vunpack.c.l.b16 %v3000
        %v3097 = vunpack.c.l.b16 %v3001
        %v3098 = vunpack.c.l.b16 %v3002
        %v3099 = vunpack.c.l.b16 %v3003
        %v3100 = vunpack.c.l.b16 %v3004
        %v3101 = vunpack.c.l.b16 %v3005
        %v3102 = vunpack.c.l.b16 %v3006
        %v3103 = vunpack.c.l.b16 %v3007
        %v3104 = vunpack.c.l.b16 %v3008
        %v3105 = vunpack.c.l.b16 %v3009
        %v3106 = vunpack.c.l.b16 %v3010
        %v3107 = vunpack.c.l.b16 %v3011
        %v3108 = vunpack.c.l.b16 %v3012
        %v3109 = vunpack.c.l.b16 %v3013
        %v3110 = vunpack.c.l.b16 %v3014
        %v3111 = vunpack.c.l.b16 %v3015
        %v3112 = vunpack.c.l.b16 %v3016
        %v3113 = vunpack.c.l.b16 %v3017
        %v3114 = vunpack.c.l.b16 %v3018
        %v3115 = vunpack.c.l.b16 %v3019
        %v3116 = vunpack.c.l.b16 %v3020
        %v3117 = vunpack.c.l.b16 %v3021
        %v3118 = vunpack.c.l.b16 %v3022
        %v3119 = vunpack.c.l.b16 %v3023
        %v3120 = vunpack.c.l.b16 %v3024
        %v3121 = vunpack.c.l.b16 %v3025
        %v3122 = vunpack.c.l.b16 %v3026
        %v3123 = vunpack.c.l.b16 %v3027
        %v3124 = vunpack.c.l.b16 %v3028
        %v3125 = vunpack.c.l.b16 %v3029
        %v3126 = vunpack.c.l.b16 %v3030
        %v3127 = vunpack.c.l.b16 %v3031
        %v3128 = vunpack.c.l.b16 %v3032
        %v3129 = vunpack.c.l.b16 %v3033
        %v3130 = vunpack.c.l.b16 %v3034
        %v3131 = vunpack.c.l.b16 %v3035
        %v3132 = vunpack.c.l.b16 %v3036
        %v3133 = vunpack.c.l.b16 %v3037
        %v3134 = vunpack.c.l.b16 %v3038
        %v3135 = vunpack.c.l.b16 %v3039
        %v3136 = vunpack.c.l.b16 %v3040
        %v3137 = vunpack.c.l.b16 %v3041
        %v3138 = vunpack.c.l.b16 %v3042
        %v3139 = vunpack.c.l.b16 %v3043
        %v3140 = vunpack.c.l.b16 %v3044
        %v3141 = vunpack.c.l.b16 %v3045
        %v3142 = vpack.c.b16 %v3095, %v3094
        %v3143 = vpack.c.b16 %v3097, %v3096
        %v3144 = vpack.c.b16 %v3099, %v3098
        %v3145 = vpack.c.b16 %v3101, %v3100
        %v3146 = vpack.c.b16 %v3103, %v3102
        %v3147 = vpack.c.b16 %v3105, %v3104
        %v3148 = vpack.c.b16 %v3107, %v3106
        %v3149 = vpack.c.b16 %v3109, %v3108
        %v3150 = vpack.c.b16 %v3111, %v3110
        %v3151 = vpack.c.b16 %v3113, %v3112
        %v3152 = vpack.c.b16 %v3115, %v3114
        %v3153 = vpack.c.b16 %v3117, %v3116
        %v3154 = vpack.c.b16 %v3119, %v3118
        %v3155 = vpack.c.b16 %v3121, %v3120
        %v3156 = vpack.c.b16 %v3123, %v3122
        %v3157 = vpack.c.b16 %v3125, %v3124
        %v3158 = vpack.c.b16 %v3127, %v3126
        %v3159 = vpack.c.b16 %v3129, %v3128
        %v3160 = vpack.c.b16 %v3131, %v3130
        %v3161 = vpack.c.b16 %v3133, %v3132
        %v3162 = vpack.c.b16 %v3135, %v3134
        %v3163 = vpack.c.b16 %v3137, %v3136
        %v3164 = vpack.c.b16 %v3139, %v3138
        %v3165 = vpack.c.b16 %v3141, %v3140
        %3190 = vmatprep.subr.bf16.mxu0 0
        %3191 = vmatpush1.bf16.msra.mxu0 %v3142
        %3192 = vmatprep.subr.bf16.mxu0 0
        %3193 = vmatpush1.bf16.msra.mxu0 %v3143
        %3194 = vmatprep.subr.bf16.mxu0 0
        %3195 = vmatpush1.bf16.msra.mxu0 %v3144
        %3196 = vmatprep.subr.bf16.mxu0 0
        %3197 = vmatpush1.bf16.msra.mxu0 %v3145
        %3198 = vmatprep.subr.bf16.mxu0 0
        %3199 = vmatpush1.bf16.msra.mxu0 %v3146
        %3200 = vmatprep.subr.bf16.mxu0 0
        %3201 = vmatpush1.bf16.msra.mxu0 %v3147
        %3202 = vmatprep.subr.bf16.mxu0 0
        %3203 = vmatpush1.bf16.msra.mxu0 %v3148
        %3204 = vmatprep.subr.bf16.mxu0 0
        %3205 = vmatpush1.bf16.msra.mxu0 %v3149
        %3206 = vmatprep.subr.bf16.mxu0 0
        %3207 = vmatpush1.bf16.msra.mxu0 %v3150
        %3208 = vmatprep.subr.bf16.mxu0 0
        %3209 = vmatpush1.bf16.msra.mxu0 %v3151
        %3210 = vmatprep.subr.bf16.mxu0 0
        %3211 = vmatpush1.bf16.msra.mxu0 %v3152
        %3212 = vmatprep.subr.bf16.mxu0 0
        %3213 = vmatpush1.bf16.msra.mxu0 %v3153
        %3214 = vmatprep.subr.bf16.mxu0 0
        %3215 = vmatpush1.bf16.msra.mxu0 %v3154
        %3216 = vmatprep.subr.bf16.mxu0 0
        %3217 = vmatpush1.bf16.msra.mxu0 %v3155
        %3218 = vmatprep.subr.bf16.mxu0 0
        %3219 = vmatpush1.bf16.msra.mxu0 %v3156
        %3220 = vmatprep.subr.bf16.mxu0 0
        %3221 = vmatpush1.bf16.msra.mxu0 %v3157
        %3222 = vmatprep.mubr.bf16.mxu0 %v2981
        %3223 = vmatmul.mubr.bf16.gmra.mrb[0].mxu0 %v2973
        %v3224 = vpop.f32.mrb[0].mxu0
        %v3225 = vadd.f32 0.0, %v3224
        %v3226 = vpop.f32.mrb[0].mxu0
        %v3227 = vpop.f32.mrb[0].mxu0
        %v3228 = vadd.f32 0.0, %v3227
        %v3229 = vpop.f32.mrb[0].mxu0
        %3230 = vmatprep.mubr.bf16.mxu0 %v2982
        %3231 = vmatmul.mubr.bf16.gmra.mrb[0].mxu0 %v2974
        %v3232 = vpop.f32.mrb[0].mxu0
        %v3233 = vadd.f32 0.0, %v3232
        %v3234 = vpop.f32.mrb[0].mxu0
        %v3235 = vpop.f32.mrb[0].mxu0
        %v3236 = vadd.f32 0.0, %v3235
        %v3237 = vpop.f32.mrb[0].mxu0
        %3238 = vmatprep.mubr.bf16.mxu0 %v2983
        %3239 = vmatmul.mubr.bf16.gmra.mrb[0].mxu0 %v2975
        %v3240 = vpop.f32.mrb[0].mxu0
        %v3241 = vadd.f32 0.0, %v3240
        %v3242 = vpop.f32.mrb[0].mxu0
        %v3243 = vpop.f32.mrb[0].mxu0
        %v3244 = vadd.f32 0.0, %v3243
        %v3245 = vpop.f32.mrb[0].mxu0
        %3246 = vmatprep.mubr.bf16.mxu0 %v2984
        %3247 = vmatmul.mubr.bf16.gmra.mrb[0].mxu0 %v2976
        %v3248 = vpop.f32.mrb[0].mxu0
        %v3249 = vadd.f32 0.0, %v3248
        %v3250 = vpop.f32.mrb[0].mxu0
        %v3251 = vpop.f32.mrb[0].mxu0
        %v3252 = vadd.f32 0.0, %v3251
        %v3253 = vpop.f32.mrb[0].mxu0
        %3254 = vmatprep.mubr.bf16.mxu0 %v2985
        %3255 = vmatmul.mubr.bf16.gmra.mrb[0].mxu0 %v2977
        %v3256 = vpop.f32.mrb[0].mxu0
        %v3257 = vadd.f32 0.0, %v3256
        %v3258 = vpop.f32.mrb[0].mxu0
        %v3259 = vpop.f32.mrb[0].mxu0
        %v3260 = vadd.f32 0.0, %v3259
        %v3261 = vpop.f32.mrb[0].mxu0
        %3262 = vmatprep.mubr.bf16.mxu0 %v2986
        %3263 = vmatmul.mubr.bf16.gmra.mrb[0].mxu0 %v2978
        %v3264 = vpop.f32.mrb[0].mxu0
        %v3265 = vadd.f32 0.0, %v3264
        %v3266 = vpop.f32.mrb[0].mxu0
        %v3267 = vpop.f32.mrb[0].mxu0
        %v3268 = vadd.f32 0.0, %v3267
        %v3269 = vpop.f32.mrb[0].mxu0
        %3270 = vmatprep.mubr.bf16.mxu0 %v2987
        %3271 = vmatmul.mubr.bf16.gmra.mrb[0].mxu0 %v2979
        %v3272 = vpop.f32.mrb[0].mxu0
        %v3273 = vadd.f32 0.0, %v3272
        %v3274 = vpop.f32.mrb[0].mxu0
        %v3275 = vpop.f32.mrb[0].mxu0
        %v3276 = vadd.f32 0.0, %v3275
        %v3277 = vpop.f32.mrb[0].mxu0
        %3278 = vmatprep.mubr.bf16.mxu0 %v2988
        %3279 = vmatmul.mubr.bf16.gmra.mrb[0].mxu0 %v2980
        %v3280 = vpop.f32.mrb[0].mxu0
        %v3281 = vadd.f32 0.0, %v3280
        %v3282 = vpop.f32.mrb[0].mxu0
        %v3283 = vpop.f32.mrb[0].mxu0
        %v3284 = vadd.f32 0.0, %v3283
        %v3285 = vpop.f32.mrb[0].mxu0
        %3286 = vdwg.mxu0
        %3287 = vmatprep.subr.bf16.mxu0 0
        %3288 = vmatpush1.bf16.msra.mxu0 %v3158
        %3289 = vmatprep.subr.bf16.mxu0 0
        %3290 = vmatpush1.bf16.msra.mxu0 %v3159
        %3291 = vmatprep.subr.bf16.mxu0 0
        %3292 = vmatpush1.bf16.msra.mxu0 %v3160
        %3293 = vmatprep.subr.bf16.mxu0 0
        %3294 = vmatpush1.bf16.msra.mxu0 %v3161
        %3295 = vmatprep.subr.bf16.mxu0 0
        %3296 = vmatpush1.bf16.msra.mxu0 %v3162
        %3297 = vmatprep.subr.bf16.mxu0 0
        %3298 = vmatpush1.bf16.msra.mxu0 %v3163
        %3299 = vmatprep.subr.bf16.mxu0 0
        %3300 = vmatpush1.bf16.msra.mxu0 %v3164
        %3301 = vmatprep.subr.bf16.mxu0 0
        %3302 = vmatpush1.bf16.msra.mxu0 %v3165
        %3303 = vmatprep.subr.bf16.mxu0 0
        %3304 = vmatpush1.bf16.msra.mxu0 0
        %3305 = vmatprep.subr.bf16.mxu0 0
        %3306 = vmatpush1.bf16.msra.mxu0 0
        %3307 = vmatprep.subr.bf16.mxu0 0
        %3308 = vmatpush1.bf16.msra.mxu0 0
        %3309 = vmatprep.subr.bf16.mxu0 0
        %3310 = vmatpush1.bf16.msra.mxu0 0
        %3311 = vmatprep.subr.bf16.mxu0 0
        %3312 = vmatpush1.bf16.msra.mxu0 0
        %3313 = vmatprep.subr.bf16.mxu0 0
        %3314 = vmatpush1.bf16.msra.mxu0 0
        %3315 = vmatprep.subr.bf16.mxu0 0
        %3316 = vmatpush1.bf16.msra.mxu0 0
        %3317 = vmatprep.subr.bf16.mxu0 0
        %3318 = vmatpush1.bf16.msra.mxu0 0
        %3319 = vmatprep.mubr.bf16.mxu0 0
        %3320 = vmatmul.mubr.bf16.gmra.mrb[0].mxu0 %v2989
        %v3321 = vpop.f32.mrb[0].mxu0
        %v3322 = vadd.f32 %v3225, %v3321
        %v3323 = vpop.f32.mrb[0].mxu0
        %v3324 = vpop.f32.mrb[0].mxu0
        %v3325 = vadd.f32 %v3228, %v3324
        %v3326 = vpop.f32.mrb[0].mxu0
        %3327 = vmatprep.mubr.bf16.mxu0 0
        %3328 = vmatmul.mubr.bf16.gmra.mrb[0].mxu0 %v2990
        %v3329 = vpop.f32.mrb[0].mxu0
        %v3330 = vadd.f32 %v3233, %v3329
        %v3331 = vpop.f32.mrb[0].mxu0
        %v3332 = vpop.f32.mrb[0].mxu0
        %v3333 = vadd.f32 %v3236, %v3332
        %v3334 = vpop.f32.mrb[0].mxu0
        %3335 = vmatprep.mubr.bf16.mxu0 0
        %3336 = vmatmul.mubr.bf16.gmra.mrb[0].mxu0 %v2991
        %v3337 = vpop.f32.mrb[0].mxu0
        %v3338 = vadd.f32 %v3241, %v3337
        %v3339 = vpop.f32.mrb[0].mxu0
        %v3340 = vpop.f32.mrb[0].mxu0
        %v3341 = vadd.f32 %v3244, %v3340
        %v3342 = vpop.f32.mrb[0].mxu0
        %3343 = vmatprep.mubr.bf16.mxu0 0
        %3344 = vmatmul.mubr.bf16.gmra.mrb[0].mxu0 %v2992
        %v3345 = vpop.f32.mrb[0].mxu0
        %v3346 = vadd.f32 %v3249, %v3345
        %v3347 = vpop.f32.mrb[0].mxu0
        %v3348 = vpop.f32.mrb[0].mxu0
        %v3349 = vadd.f32 %v3252, %v3348
        %v3350 = vpop.f32.mrb[0].mxu0
        %3351 = vmatprep.mubr.bf16.mxu0 0
        %3352 = vmatmul.mubr.bf16.gmra.mrb[0].mxu0 %v2993
        %v3353 = vpop.f32.mrb[0].mxu0
        %v3354 = vadd.f32 %v3257, %v3353
        %v3355 = vpop.f32.mrb[0].mxu0
        %v3356 = vpop.f32.mrb[0].mxu0
        %v3357 = vadd.f32 %v3260, %v3356
        %v3358 = vpop.f32.mrb[0].mxu0
        %3359 = vmatprep.mubr.bf16.mxu0 0
        %3360 = vmatmul.mubr.bf16.gmra.mrb[0].mxu0 %v2994
        %v3361 = vpop.f32.mrb[0].mxu0
        %v3362 = vadd.f32 %v3265, %v3361
        %v3363 = vpop.f32.mrb[0].mxu0
        %v3364 = vpop.f32.mrb[0].mxu0
        %v3365 = vadd.f32 %v3268, %v3364
        %v3366 = vpop.f32.mrb[0].mxu0
        %3367 = vmatprep.mubr.bf16.mxu0 0
        %3368 = vmatmul.mubr.bf16.gmra.mrb[0].mxu0 %v2995
        %v3369 = vpop.f32.mrb[0].mxu0
        %v3370 = vadd.f32 %v3273, %v3369
        %v3371 = vpop.f32.mrb[0].mxu0
        %v3372 = vpop.f32.mrb[0].mxu0
        %v3373 = vadd.f32 %v3276, %v3372
        %v3374 = vpop.f32.mrb[0].mxu0
        %3375 = vmatprep.mubr.bf16.mxu0 0
        %3376 = vmatmul.mubr.bf16.gmra.mrb[0].mxu0 %v2996
        %v3377 = vpop.f32.mrb[0].mxu0
        %v3378 = vadd.f32 %v3281, %v3377
        %v3379 = vpop.f32.mrb[0].mxu0
        %v3380 = vpop.f32.mrb[0].mxu0
        %v3381 = vadd.f32 %v3284, %v3380
        %v3382 = vpop.f32.mrb[0].mxu0
        %3383 = vdwg.mxu0
        %s3384 = scalar_lea.vmem [#allocation22], 1
        %v3385 = vld [vmem:[%s3384] sm:$0x1]
        %v3387 = vlaneseq
        %v3388 = vshrl.u32 %v3387, 7
        %v3389 = vsub.s32 0, %v3388
        %v3390 = vrot.slane %v3385, %v3389
        %v3392 = vmul.f32 %v3322, %v3390
        %v3393 = vmul.f32 %v3325, %v3390
        %v3394 = vmul.f32 %v3330, %v3390
        %v3395 = vmul.f32 %v3333, %v3390
        %v3396 = vmul.f32 %v3338, %v3390
        %v3397 = vmul.f32 %v3341, %v3390
        %v3398 = vmul.f32 %v3346, %v3390
        %v3399 = vmul.f32 %v3349, %v3390
        %v3400 = vmul.f32 %v3354, %v3390
        %v3401 = vmul.f32 %v3357, %v3390
        %v3402 = vmul.f32 %v3362, %v3390
        %v3403 = vmul.f32 %v3365, %v3390
        %v3404 = vmul.f32 %v3370, %v3390
        %v3405 = vmul.f32 %v3373, %v3390
        %v3406 = vmul.f32 %v3378, %v3390
        %v3407 = vmul.f32 %v3381, %v3390
        %s3408 = scalar_lea.vmem [#allocation23], 1
        %v3409 = vld [vmem:[%s3408] sm:$0x1]
        %v3411 = vlaneseq
        %v3412 = vshrl.u32 %v3411, 7
        %v3413 = vsub.s32 0, %v3412
        %v3414 = vrot.slane %v3409, %v3413
        %v3416 = vadd.f32 %v3392, %v3414
        %v3417 = vadd.f32 %v3393, %v3414
        %v3418 = vadd.f32 %v3394, %v3414
        %v3419 = vadd.f32 %v3395, %v3414
        %v3420 = vadd.f32 %v3396, %v3414
        %v3421 = vadd.f32 %v3397, %v3414
        %v3422 = vadd.f32 %v3398, %v3414
        %v3423 = vadd.f32 %v3399, %v3414
        %v3424 = vadd.f32 %v3400, %v3414
        %v3425 = vadd.f32 %v3401, %v3414
        %v3426 = vadd.f32 %v3402, %v3414
        %v3427 = vadd.f32 %v3403, %v3414
        %v3428 = vadd.f32 %v3404, %v3414
        %v3429 = vadd.f32 %v3405, %v3414
        %v3430 = vadd.f32 %v3406, %v3414
        %v3431 = vadd.f32 %v3407, %v3414
        %v3432 = vmax.f32 %v3416, 0.0
        %v3433 = vmax.f32 %v3417, 0.0
        %v3434 = vmax.f32 %v3418, 0.0
        %v3435 = vmax.f32 %v3419, 0.0
        %v3436 = vmax.f32 %v3420, 0.0
        %v3437 = vmax.f32 %v3421, 0.0
        %v3438 = vmax.f32 %v3422, 0.0
        %v3439 = vmax.f32 %v3423, 0.0
        %v3440 = vmax.f32 %v3424, 0.0
        %v3441 = vmax.f32 %v3425, 0.0
        %v3442 = vmax.f32 %v3426, 0.0
        %v3443 = vmax.f32 %v3427, 0.0
        %v3444 = vmax.f32 %v3428, 0.0
        %v3445 = vmax.f32 %v3429, 0.0
        %v3446 = vmax.f32 %v3430, 0.0
        %v3447 = vmax.f32 %v3431, 0.0
        %v3448 = vrot.slane %v3432, 7
        %v3449 = vrot.slane %v3433, 7
        %v3450 = vrot.slane %v3434, 7
        %v3451 = vrot.slane %v3435, 7
        %v3452 = vrot.slane %v3436, 7
        %v3453 = vrot.slane %v3437, 7
        %v3454 = vrot.slane %v3438, 7
        %v3455 = vrot.slane %v3439, 7
        %v3456 = vrot.slane %v3440, 7
        %v3457 = vrot.slane %v3441, 7
        %v3458 = vrot.slane %v3442, 7
        %v3459 = vrot.slane %v3443, 7
        %v3460 = vrot.slane %v3444, 7
        %v3461 = vrot.slane %v3445, 7
        %v3462 = vrot.slane %v3446, 7
        %v3463 = vrot.slane %v3447, 7
        %v3464 = vsel %vm2259, %v3462, %v3463
        %v3465 = vsel %vm2259, %v3461, %v3462
        %v3466 = vsel %vm2259, %v3460, %v3461
        %v3467 = vsel %vm2259, %v3459, %v3460
        %v3468 = vsel %vm2259, %v3458, %v3459
        %v3469 = vsel %vm2259, %v3457, %v3458
        %v3470 = vsel %vm2259, %v3456, %v3457
        %v3471 = vsel %vm2259, %v3455, %v3456
        %v3472 = vsel %vm2259, %v3454, %v3455
        %v3473 = vsel %vm2259, %v3453, %v3454
        %v3474 = vsel %vm2259, %v3452, %v3453
        %v3475 = vsel %vm2259, %v3451, %v3452
        %v3476 = vsel %vm2259, %v3450, %v3451
        %v3477 = vsel %vm2259, %v3449, %v3450
        %v3478 = vsel %vm2259, %v3448, %v3449
        %v3479 = vsel %vm2259, %v3463, %v3448
        %v3480 = vsel %vm2292, 0.0, %v3479
        %v3481 = vsel %vm2293, 0.0, %v3478
        %v3482 = vsel %vm2294, 0.0, %v3477
        %v3483 = vsel %vm2295, 0.0, %v3476
        %v3484 = vsel %vm2296, 0.0, %v3475
        %v3485 = vsel %vm2297, 0.0, %v3474
        %v3486 = vsel %vm2298, 0.0, %v3473
        %v3487 = vsel %vm2299, 0.0, %v3472
        %v3488 = vsel %vm2300, 0.0, %v3471
        %v3489 = vsel %vm2301, 0.0, %v3470
        %v3490 = vsel %vm2302, 0.0, %v3469
        %v3491 = vsel %vm2303, 0.0, %v3468
        %v3492 = vsel %vm2304, 0.0, %v3467
        %v3493 = vsel %vm2305, 0.0, %v3466
        %v3494 = vsel %vm2306, 0.0, %v3465
        %v3495 = vsel %vm2307, 0.0, %v3464
        %v3496 = vrot.slane %v3432, 1
        %v3497 = vrot.slane %v3433, 1
        %v3498 = vrot.slane %v3434, 1
        %v3499 = vrot.slane %v3435, 1
        %v3500 = vrot.slane %v3436, 1
        %v3501 = vrot.slane %v3437, 1
        %v3502 = vrot.slane %v3438, 1
        %v3503 = vrot.slane %v3439, 1
        %v3504 = vrot.slane %v3440, 1
        %v3505 = vrot.slane %v3441, 1
        %v3506 = vrot.slane %v3442, 1
        %v3507 = vrot.slane %v3443, 1
        %v3508 = vrot.slane %v3444, 1
        %v3509 = vrot.slane %v3445, 1
        %v3510 = vrot.slane %v3446, 1
        %v3511 = vrot.slane %v3447, 1
        %v3512 = vsel %vm2340, %v3510, %v3511
        %v3513 = vsel %vm2340, %v3509, %v3510
        %v3514 = vsel %vm2340, %v3508, %v3509
        %v3515 = vsel %vm2340, %v3507, %v3508
        %v3516 = vsel %vm2340, %v3506, %v3507
        %v3517 = vsel %vm2340, %v3505, %v3506
        %v3518 = vsel %vm2340, %v3504, %v3505
        %v3519 = vsel %vm2340, %v3503, %v3504
        %v3520 = vsel %vm2340, %v3502, %v3503
        %v3521 = vsel %vm2340, %v3501, %v3502
        %v3522 = vsel %vm2340, %v3500, %v3501
        %v3523 = vsel %vm2340, %v3499, %v3500
        %v3524 = vsel %vm2340, %v3498, %v3499
        %v3525 = vsel %vm2340, %v3497, %v3498
        %v3526 = vsel %vm2340, %v3496, %v3497
        %v3527 = vsel %vm2340, %v3511, %v3496
        %v3528 = vsel %vm2373, 0.0, %v3526
        %v3529 = vsel %vm2374, 0.0, %v3525
        %v3530 = vsel %vm2375, 0.0, %v3524
        %v3531 = vsel %vm2376, 0.0, %v3523
        %v3532 = vsel %vm2377, 0.0, %v3522
        %v3533 = vsel %vm2378, 0.0, %v3521
        %v3534 = vsel %vm2379, 0.0, %v3520
        %v3535 = vsel %vm2380, 0.0, %v3519
        %v3536 = vsel %vm2381, 0.0, %v3518
        %v3537 = vsel %vm2382, 0.0, %v3517
        %v3538 = vsel %vm2383, 0.0, %v3516
        %v3539 = vsel %vm2384, 0.0, %v3515
        %v3540 = vsel %vm2385, 0.0, %v3514
        %v3541 = vsel %vm2386, 0.0, %v3513
        %v3542 = vsel %vm2387, 0.0, %v3512
        %v3543 = vsel %vm2388, 0.0, %v3527
        %v3544 = vpack.c.bf16 %v3481, %v3480
        %v3545 = vpack.c.bf16 %v3483, %v3482
        %v3546 = vpack.c.bf16 %v3485, %v3484
        %v3547 = vpack.c.bf16 %v3487, %v3486
        %v3548 = vpack.c.bf16 %v3489, %v3488
        %v3549 = vpack.c.bf16 %v3491, %v3490
        %v3550 = vpack.c.bf16 %v3493, %v3492
        %v3551 = vpack.c.bf16 %v3495, %v3494
        %v3552 = vpack.c.bf16 %v3433, %v3432
        %v3553 = vpack.c.bf16 %v3435, %v3434
        %v3554 = vpack.c.bf16 %v3437, %v3436
        %v3555 = vpack.c.bf16 %v3439, %v3438
        %v3556 = vpack.c.bf16 %v3441, %v3440
        %v3557 = vpack.c.bf16 %v3443, %v3442
        %v3558 = vpack.c.bf16 %v3445, %v3444
        %v3559 = vpack.c.bf16 %v3447, %v3446
        %v3560 = vpack.c.bf16 %v3529, %v3528
        %v3561 = vpack.c.bf16 %v3531, %v3530
        %v3562 = vpack.c.bf16 %v3533, %v3532
        %v3563 = vpack.c.bf16 %v3535, %v3534
        %v3564 = vpack.c.bf16 %v3537, %v3536
        %v3565 = vpack.c.bf16 %v3539, %v3538
        %v3566 = vpack.c.bf16 %v3541, %v3540
        %v3567 = vpack.c.bf16 %v3543, %v3542
        %s3568 = scalar_lea.vmem [#allocation20], 384
        %v3569 = vld [vmem:[%s3568] sm:$0xf]
        %v3570 = vld [vmem:[%s3568 + $0x4] sm:$0xf]
        %v3571 = vld [vmem:[%s3568 + $0x8] sm:$0xf]
        %v3572 = vld [vmem:[%s3568 + $0xc] sm:$0xf]
        %v3573 = vld [vmem:[%s3568 + $0x10] sm:$0xf]
        %v3574 = vld [vmem:[%s3568 + $0x14] sm:$0xf]
        %v3575 = vld [vmem:[%s3568 + $0x18] sm:$0xf]
        %v3576 = vld [vmem:[%s3568 + $0x1c] sm:$0xf]
        %v3577 = vld [vmem:[%s3568 + $0x20] sm:$0xf]
        %v3578 = vld [vmem:[%s3568 + $0x24] sm:$0xf]
        %v3579 = vld [vmem:[%s3568 + $0x28] sm:$0xf]
        %v3580 = vld [vmem:[%s3568 + $0x2c] sm:$0xf]
        %v3581 = vld [vmem:[%s3568 + $0x30] sm:$0xf]
        %v3582 = vld [vmem:[%s3568 + $0x34] sm:$0xf]
        %v3583 = vld [vmem:[%s3568 + $0x38] sm:$0xf]
        %v3584 = vld [vmem:[%s3568 + $0x3c] sm:$0xf]
        %v3585 = vld [vmem:[%s3568 + $0x40] sm:$0xf]
        %v3586 = vld [vmem:[%s3568 + $0x44] sm:$0xf]
        %v3587 = vld [vmem:[%s3568 + $0x48] sm:$0xf]
        %v3588 = vld [vmem:[%s3568 + $0x4c] sm:$0xf]
        %v3589 = vld [vmem:[%s3568 + $0x50] sm:$0xf]
        %v3590 = vld [vmem:[%s3568 + $0x54] sm:$0xf]
        %v3591 = vld [vmem:[%s3568 + $0x58] sm:$0xf]
        %v3592 = vld [vmem:[%s3568 + $0x5c] sm:$0xf]
        %v3593 = vld [vmem:[%s3568 + $0x60] sm:$0xf]
        %v3594 = vld [vmem:[%s3568 + $0x64] sm:$0xf]
        %v3595 = vld [vmem:[%s3568 + $0x68] sm:$0xf]
        %v3596 = vld [vmem:[%s3568 + $0x6c] sm:$0xf]
        %v3597 = vld [vmem:[%s3568 + $0x70] sm:$0xf]
        %v3598 = vld [vmem:[%s3568 + $0x74] sm:$0xf]
        %v3599 = vld [vmem:[%s3568 + $0x78] sm:$0xf]
        %v3600 = vld [vmem:[%s3568 + $0x7c] sm:$0xf]
        %v3601 = vld [vmem:[%s3568 + $0x80] sm:$0xf]
        %v3602 = vld [vmem:[%s3568 + $0x84] sm:$0xf]
        %v3603 = vld [vmem:[%s3568 + $0x88] sm:$0xf]
        %v3604 = vld [vmem:[%s3568 + $0x8c] sm:$0xf]
        %v3605 = vld [vmem:[%s3568 + $0x90] sm:$0xf]
        %v3606 = vld [vmem:[%s3568 + $0x94] sm:$0xf]
        %v3607 = vld [vmem:[%s3568 + $0x98] sm:$0xf]
        %v3608 = vld [vmem:[%s3568 + $0x9c] sm:$0xf]
        %v3609 = vld [vmem:[%s3568 + $0xa0] sm:$0xf]
        %v3610 = vld [vmem:[%s3568 + $0xa4] sm:$0xf]
        %v3611 = vld [vmem:[%s3568 + $0xa8] sm:$0xf]
        %v3612 = vld [vmem:[%s3568 + $0xac] sm:$0xf]
        %v3613 = vld [vmem:[%s3568 + $0xb0] sm:$0xf]
        %v3614 = vld [vmem:[%s3568 + $0xb4] sm:$0xf]
        %v3615 = vld [vmem:[%s3568 + $0xb8] sm:$0xf]
        %v3616 = vld [vmem:[%s3568 + $0xbc] sm:$0xf]
        %v3665 = vunpack.c.l.b16 %v3569
        %v3666 = vunpack.c.l.b16 %v3570
        %v3667 = vunpack.c.l.b16 %v3571
        %v3668 = vunpack.c.l.b16 %v3572
        %v3669 = vunpack.c.l.b16 %v3573
        %v3670 = vunpack.c.l.b16 %v3574
        %v3671 = vunpack.c.l.b16 %v3575
        %v3672 = vunpack.c.l.b16 %v3576
        %v3673 = vunpack.c.l.b16 %v3577
        %v3674 = vunpack.c.l.b16 %v3578
        %v3675 = vunpack.c.l.b16 %v3579
        %v3676 = vunpack.c.l.b16 %v3580
        %v3677 = vunpack.c.l.b16 %v3581
        %v3678 = vunpack.c.l.b16 %v3582
        %v3679 = vunpack.c.l.b16 %v3583
        %v3680 = vunpack.c.l.b16 %v3584
        %v3681 = vunpack.c.l.b16 %v3585
        %v3682 = vunpack.c.l.b16 %v3586
        %v3683 = vunpack.c.l.b16 %v3587
        %v3684 = vunpack.c.l.b16 %v3588
        %v3685 = vunpack.c.l.b16 %v3589
        %v3686 = vunpack.c.l.b16 %v3590
        %v3687 = vunpack.c.l.b16 %v3591
        %v3688 = vunpack.c.l.b16 %v3592
        %v3689 = vunpack.c.l.b16 %v3593
        %v3690 = vunpack.c.l.b16 %v3594
        %v3691 = vunpack.c.l.b16 %v3595
        %v3692 = vunpack.c.l.b16 %v3596
        %v3693 = vunpack.c.l.b16 %v3597
        %v3694 = vunpack.c.l.b16 %v3598
        %v3695 = vunpack.c.l.b16 %v3599
        %v3696 = vunpack.c.l.b16 %v3600
        %v3697 = vunpack.c.l.b16 %v3601
        %v3698 = vunpack.c.l.b16 %v3602
        %v3699 = vunpack.c.l.b16 %v3603
        %v3700 = vunpack.c.l.b16 %v3604
        %v3701 = vunpack.c.l.b16 %v3605
        %v3702 = vunpack.c.l.b16 %v3606
        %v3703 = vunpack.c.l.b16 %v3607
        %v3704 = vunpack.c.l.b16 %v3608
        %v3705 = vunpack.c.l.b16 %v3609
        %v3706 = vunpack.c.l.b16 %v3610
        %v3707 = vunpack.c.l.b16 %v3611
        %v3708 = vunpack.c.l.b16 %v3612
        %v3709 = vunpack.c.l.b16 %v3613
        %v3710 = vunpack.c.l.b16 %v3614
        %v3711 = vunpack.c.l.b16 %v3615
        %v3712 = vunpack.c.l.b16 %v3616
        %v3713 = vpack.c.b16 %v3666, %v3665
        %v3714 = vpack.c.b16 %v3668, %v3667
        %v3715 = vpack.c.b16 %v3670, %v3669
        %v3716 = vpack.c.b16 %v3672, %v3671
        %v3717 = vpack.c.b16 %v3674, %v3673
        %v3718 = vpack.c.b16 %v3676, %v3675
        %v3719 = vpack.c.b16 %v3678, %v3677
        %v3720 = vpack.c.b16 %v3680, %v3679
        %v3721 = vpack.c.b16 %v3682, %v3681
        %v3722 = vpack.c.b16 %v3684, %v3683
        %v3723 = vpack.c.b16 %v3686, %v3685
        %v3724 = vpack.c.b16 %v3688, %v3687
        %v3725 = vpack.c.b16 %v3690, %v3689
        %v3726 = vpack.c.b16 %v3692, %v3691
        %v3727 = vpack.c.b16 %v3694, %v3693
        %v3728 = vpack.c.b16 %v3696, %v3695
        %v3729 = vpack.c.b16 %v3698, %v3697
        %v3730 = vpack.c.b16 %v3700, %v3699
        %v3731 = vpack.c.b16 %v3702, %v3701
        %v3732 = vpack.c.b16 %v3704, %v3703
        %v3733 = vpack.c.b16 %v3706, %v3705
        %v3734 = vpack.c.b16 %v3708, %v3707
        %v3735 = vpack.c.b16 %v3710, %v3709
        %v3736 = vpack.c.b16 %v3712, %v3711
        %3761 = vmatprep.subr.bf16.mxu0 0
        %3762 = vmatpush1.bf16.msra.mxu0 %v3713
        %3763 = vmatprep.subr.bf16.mxu0 0
        %3764 = vmatpush1.bf16.msra.mxu0 %v3714
        %3765 = vmatprep.subr.bf16.mxu0 0
        %3766 = vmatpush1.bf16.msra.mxu0 %v3715
        %3767 = vmatprep.subr.bf16.mxu0 0
        %3768 = vmatpush1.bf16.msra.mxu0 %v3716
        %3769 = vmatprep.subr.bf16.mxu0 0
        %3770 = vmatpush1.bf16.msra.mxu0 %v3717
        %3771 = vmatprep.subr.bf16.mxu0 0
        %3772 = vmatpush1.bf16.msra.mxu0 %v3718
        %3773 = vmatprep.subr.bf16.mxu0 0
        %3774 = vmatpush1.bf16.msra.mxu0 %v3719
        %3775 = vmatprep.subr.bf16.mxu0 0
        %3776 = vmatpush1.bf16.msra.mxu0 %v3720
        %3777 = vmatprep.subr.bf16.mxu0 0
        %3778 = vmatpush1.bf16.msra.mxu0 %v3721
        %3779 = vmatprep.subr.bf16.mxu0 0
        %3780 = vmatpush1.bf16.msra.mxu0 %v3722
        %3781 = vmatprep.subr.bf16.mxu0 0
        %3782 = vmatpush1.bf16.msra.mxu0 %v3723
        %3783 = vmatprep.subr.bf16.mxu0 0
        %3784 = vmatpush1.bf16.msra.mxu0 %v3724
        %3785 = vmatprep.subr.bf16.mxu0 0
        %3786 = vmatpush1.bf16.msra.mxu0 %v3725
        %3787 = vmatprep.subr.bf16.mxu0 0
        %3788 = vmatpush1.bf16.msra.mxu0 %v3726
        %3789 = vmatprep.subr.bf16.mxu0 0
        %3790 = vmatpush1.bf16.msra.mxu0 %v3727
        %3791 = vmatprep.subr.bf16.mxu0 0
        %3792 = vmatpush1.bf16.msra.mxu0 %v3728
        %3793 = vmatprep.mubr.bf16.mxu0 %v3552
        %3794 = vmatmul.mubr.bf16.gmra.mrb[0].mxu0 %v3544
        %v3795 = vpop.f32.mrb[0].mxu0
        %v3796 = vadd.f32 0.0, %v3795
        %v3797 = vpop.f32.mrb[0].mxu0
        %v3798 = vpop.f32.mrb[0].mxu0
        %v3799 = vadd.f32 0.0, %v3798
        %v3800 = vpop.f32.mrb[0].mxu0
        %3801 = vmatprep.mubr.bf16.mxu0 %v3553
        %3802 = vmatmul.mubr.bf16.gmra.mrb[0].mxu0 %v3545
        %v3803 = vpop.f32.mrb[0].mxu0
        %v3804 = vadd.f32 0.0, %v3803
        %v3805 = vpop.f32.mrb[0].mxu0
        %v3806 = vpop.f32.mrb[0].mxu0
        %v3807 = vadd.f32 0.0, %v3806
        %v3808 = vpop.f32.mrb[0].mxu0
        %3809 = vmatprep.mubr.bf16.mxu0 %v3554
        %3810 = vmatmul.mubr.bf16.gmra.mrb[0].mxu0 %v3546
        %v3811 = vpop.f32.mrb[0].mxu0
        %v3812 = vadd.f32 0.0, %v3811
        %v3813 = vpop.f32.mrb[0].mxu0
        %v3814 = vpop.f32.mrb[0].mxu0
        %v3815 = vadd.f32 0.0, %v3814
        %v3816 = vpop.f32.mrb[0].mxu0
        %3817 = vmatprep.mubr.bf16.mxu0 %v3555
        %3818 = vmatmul.mubr.bf16.gmra.mrb[0].mxu0 %v3547
        %v3819 = vpop.f32.mrb[0].mxu0
        %v3820 = vadd.f32 0.0, %v3819
        %v3821 = vpop.f32.mrb[0].mxu0
        %v3822 = vpop.f32.mrb[0].mxu0
        %v3823 = vadd.f32 0.0, %v3822
        %v3824 = vpop.f32.mrb[0].mxu0
        %3825 = vmatprep.mubr.bf16.mxu0 %v3556
        %3826 = vmatmul.mubr.bf16.gmra.mrb[0].mxu0 %v3548
        %v3827 = vpop.f32.mrb[0].mxu0
        %v3828 = vadd.f32 0.0, %v3827
        %v3829 = vpop.f32.mrb[0].mxu0
        %v3830 = vpop.f32.mrb[0].mxu0
        %v3831 = vadd.f32 0.0, %v3830
        %v3832 = vpop.f32.mrb[0].mxu0
        %3833 = vmatprep.mubr.bf16.mxu0 %v3557
        %3834 = vmatmul.mubr.bf16.gmra.mrb[0].mxu0 %v3549
        %v3835 = vpop.f32.mrb[0].mxu0
        %v3836 = vadd.f32 0.0, %v3835
        %v3837 = vpop.f32.mrb[0].mxu0
        %v3838 = vpop.f32.mrb[0].mxu0
        %v3839 = vadd.f32 0.0, %v3838
        %v3840 = vpop.f32.mrb[0].mxu0
        %3841 = vmatprep.mubr.bf16.mxu0 %v3558
        %3842 = vmatmul.mubr.bf16.gmra.mrb[0].mxu0 %v3550
        %v3843 = vpop.f32.mrb[0].mxu0
        %v3844 = vadd.f32 0.0, %v3843
        %v3845 = vpop.f32.mrb[0].mxu0
        %v3846 = vpop.f32.mrb[0].mxu0
        %v3847 = vadd.f32 0.0, %v3846
        %v3848 = vpop.f32.mrb[0].mxu0
        %3849 = vmatprep.mubr.bf16.mxu0 %v3559
        %3850 = vmatmul.mubr.bf16.gmra.mrb[0].mxu0 %v3551
        %v3851 = vpop.f32.mrb[0].mxu0
        %v3852 = vadd.f32 0.0, %v3851
        %v3853 = vpop.f32.mrb[0].mxu0
        %v3854 = vpop.f32.mrb[0].mxu0
        %v3855 = vadd.f32 0.0, %v3854
        %v3856 = vpop.f32.mrb[0].mxu0
        %3857 = vdwg.mxu0
        %3858 = vmatprep.subr.bf16.mxu0 0
        %3859 = vmatpush1.bf16.msra.mxu0 %v3729
        %3860 = vmatprep.subr.bf16.mxu0 0
        %3861 = vmatpush1.bf16.msra.mxu0 %v3730
        %3862 = vmatprep.subr.bf16.mxu0 0
        %3863 = vmatpush1.bf16.msra.mxu0 %v3731
        %3864 = vmatprep.subr.bf16.mxu0 0
        %3865 = vmatpush1.bf16.msra.mxu0 %v3732
        %3866 = vmatprep.subr.bf16.mxu0 0
        %3867 = vmatpush1.bf16.msra.mxu0 %v3733
        %3868 = vmatprep.subr.bf16.mxu0 0
        %3869 = vmatpush1.bf16.msra.mxu0 %v3734
        %3870 = vmatprep.subr.bf16.mxu0 0
        %3871 = vmatpush1.bf16.msra.mxu0 %v3735
        %3872 = vmatprep.subr.bf16.mxu0 0
        %3873 = vmatpush1.bf16.msra.mxu0 %v3736
        %3874 = vmatprep.subr.bf16.mxu0 0
        %3875 = vmatpush1.bf16.msra.mxu0 0
        %3876 = vmatprep.subr.bf16.mxu0 0
        %3877 = vmatpush1.bf16.msra.mxu0 0
        %3878 = vmatprep.subr.bf16.mxu0 0
        %3879 = vmatpush1.bf16.msra.mxu0 0
        %3880 = vmatprep.subr.bf16.mxu0 0
        %3881 = vmatpush1.bf16.msra.mxu0 0
        %3882 = vmatprep.subr.bf16.mxu0 0
        %3883 = vmatpush1.bf16.msra.mxu0 0
        %3884 = vmatprep.subr.bf16.mxu0 0
        %3885 = vmatpush1.bf16.msra.mxu0 0
        %3886 = vmatprep.subr.bf16.mxu0 0
        %3887 = vmatpush1.bf16.msra.mxu0 0
        %3888 = vmatprep.subr.bf16.mxu0 0
        %3889 = vmatpush1.bf16.msra.mxu0 0
        %3890 = vmatprep.mubr.bf16.mxu0 0
        %3891 = vmatmul.mubr.bf16.gmra.mrb[0].mxu0 %v3560
        %v3892 = vpop.f32.mrb[0].mxu0
        %v3893 = vadd.f32 %v3796, %v3892
        %v3894 = vpop.f32.mrb[0].mxu0
        %v3895 = vpop.f32.mrb[0].mxu0
        %v3896 = vadd.f32 %v3799, %v3895
        %v3897 = vpop.f32.mrb[0].mxu0
        %3898 = vmatprep.mubr.bf16.mxu0 0
        %3899 = vmatmul.mubr.bf16.gmra.mrb[0].mxu0 %v3561
        %v3900 = vpop.f32.mrb[0].mxu0
        %v3901 = vadd.f32 %v3804, %v3900
        %v3902 = vpop.f32.mrb[0].mxu0
        %v3903 = vpop.f32.mrb[0].mxu0
        %v3904 = vadd.f32 %v3807, %v3903
        %v3905 = vpop.f32.mrb[0].mxu0
        %3906 = vmatprep.mubr.bf16.mxu0 0
        %3907 = vmatmul.mubr.bf16.gmra.mrb[0].mxu0 %v3562
        %v3908 = vpop.f32.mrb[0].mxu0
        %v3909 = vadd.f32 %v3812, %v3908
        %v3910 = vpop.f32.mrb[0].mxu0
        %v3911 = vpop.f32.mrb[0].mxu0
        %v3912 = vadd.f32 %v3815, %v3911
        %v3913 = vpop.f32.mrb[0].mxu0
        %3914 = vmatprep.mubr.bf16.mxu0 0
        %3915 = vmatmul.mubr.bf16.gmra.mrb[0].mxu0 %v3563
        %v3916 = vpop.f32.mrb[0].mxu0
        %v3917 = vadd.f32 %v3820, %v3916
        %v3918 = vpop.f32.mrb[0].mxu0
        %v3919 = vpop.f32.mrb[0].mxu0
        %v3920 = vadd.f32 %v3823, %v3919
        %v3921 = vpop.f32.mrb[0].mxu0
        %3922 = vmatprep.mubr.bf16.mxu0 0
        %3923 = vmatmul.mubr.bf16.gmra.mrb[0].mxu0 %v3564
        %v3924 = vpop.f32.mrb[0].mxu0
        %v3925 = vadd.f32 %v3828, %v3924
        %v3926 = vpop.f32.mrb[0].mxu0
        %v3927 = vpop.f32.mrb[0].mxu0
        %v3928 = vadd.f32 %v3831, %v3927
        %v3929 = vpop.f32.mrb[0].mxu0
        %3930 = vmatprep.mubr.bf16.mxu0 0
        %3931 = vmatmul.mubr.bf16.gmra.mrb[0].mxu0 %v3565
        %v3932 = vpop.f32.mrb[0].mxu0
        %v3933 = vadd.f32 %v3836, %v3932
        %v3934 = vpop.f32.mrb[0].mxu0
        %v3935 = vpop.f32.mrb[0].mxu0
        %v3936 = vadd.f32 %v3839, %v3935
        %v3937 = vpop.f32.mrb[0].mxu0
        %3938 = vmatprep.mubr.bf16.mxu0 0
        %3939 = vmatmul.mubr.bf16.gmra.mrb[0].mxu0 %v3566
        %v3940 = vpop.f32.mrb[0].mxu0
        %v3941 = vadd.f32 %v3844, %v3940
        %v3942 = vpop.f32.mrb[0].mxu0
        %v3943 = vpop.f32.mrb[0].mxu0
        %v3944 = vadd.f32 %v3847, %v3943
        %v3945 = vpop.f32.mrb[0].mxu0
        %3946 = vmatprep.mubr.bf16.mxu0 0
        %3947 = vmatmul.mubr.bf16.gmra.mrb[0].mxu0 %v3567
        %v3948 = vpop.f32.mrb[0].mxu0
        %v3949 = vadd.f32 %v3852, %v3948
        %v3950 = vpop.f32.mrb[0].mxu0
        %v3951 = vpop.f32.mrb[0].mxu0
        %v3952 = vadd.f32 %v3855, %v3951
        %v3953 = vpop.f32.mrb[0].mxu0
        %3954 = vdwg.mxu0
        %s3955 = scalar_lea.vmem [#allocation22], 2
        %v3956 = vld [vmem:[%s3955] sm:$0x1]
        %v3958 = vlaneseq
        %v3959 = vshrl.u32 %v3958, 7
        %v3960 = vsub.s32 0, %v3959
        %v3961 = vrot.slane %v3956, %v3960
        %v3963 = vmul.f32 %v3893, %v3961
        %v3964 = vmul.f32 %v3896, %v3961
        %v3965 = vmul.f32 %v3901, %v3961
        %v3966 = vmul.f32 %v3904, %v3961
        %v3967 = vmul.f32 %v3909, %v3961
        %v3968 = vmul.f32 %v3912, %v3961
        %v3969 = vmul.f32 %v3917, %v3961
        %v3970 = vmul.f32 %v3920, %v3961
        %v3971 = vmul.f32 %v3925, %v3961
        %v3972 = vmul.f32 %v3928, %v3961
        %v3973 = vmul.f32 %v3933, %v3961
        %v3974 = vmul.f32 %v3936, %v3961
        %v3975 = vmul.f32 %v3941, %v3961
        %v3976 = vmul.f32 %v3944, %v3961
        %v3977 = vmul.f32 %v3949, %v3961
        %v3978 = vmul.f32 %v3952, %v3961
        %s3979 = scalar_lea.vmem [#allocation23], 2
        %v3980 = vld [vmem:[%s3979] sm:$0x1]
        %v3982 = vlaneseq
        %v3983 = vshrl.u32 %v3982, 7
        %v3984 = vsub.s32 0, %v3983
        %v3985 = vrot.slane %v3980, %v3984
        %v3987 = vadd.f32 %v3963, %v3985
        %v3988 = vadd.f32 %v3964, %v3985
        %v3989 = vadd.f32 %v3965, %v3985
        %v3990 = vadd.f32 %v3966, %v3985
        %v3991 = vadd.f32 %v3967, %v3985
        %v3992 = vadd.f32 %v3968, %v3985
        %v3993 = vadd.f32 %v3969, %v3985
        %v3994 = vadd.f32 %v3970, %v3985
        %v3995 = vadd.f32 %v3971, %v3985
        %v3996 = vadd.f32 %v3972, %v3985
        %v3997 = vadd.f32 %v3973, %v3985
        %v3998 = vadd.f32 %v3974, %v3985
        %v3999 = vadd.f32 %v3975, %v3985
        %v4000 = vadd.f32 %v3976, %v3985
        %v4001 = vadd.f32 %v3977, %v3985
        %v4002 = vadd.f32 %v3978, %v3985
        %v4003 = vmax.f32 %v3987, 0.0
        %v4004 = vmax.f32 %v3988, 0.0
        %v4005 = vmax.f32 %v3989, 0.0
        %v4006 = vmax.f32 %v3990, 0.0
        %v4007 = vmax.f32 %v3991, 0.0
        %v4008 = vmax.f32 %v3992, 0.0
        %v4009 = vmax.f32 %v3993, 0.0
        %v4010 = vmax.f32 %v3994, 0.0
        %v4011 = vmax.f32 %v3995, 0.0
        %v4012 = vmax.f32 %v3996, 0.0
        %v4013 = vmax.f32 %v3997, 0.0
        %v4014 = vmax.f32 %v3998, 0.0
        %v4015 = vmax.f32 %v3999, 0.0
        %v4016 = vmax.f32 %v4000, 0.0
        %v4017 = vmax.f32 %v4001, 0.0
        %v4018 = vmax.f32 %v4002, 0.0
        %v4019 = vsel %vm2373, 0.0, %v4003
        %v4020 = vsel %vm2374, 0.0, %v4004
        %v4021 = vsel %vm2375, 0.0, %v4005
        %v4022 = vsel %vm2376, 0.0, %v4006
        %v4023 = vsel %vm2377, 0.0, %v4007
        %v4024 = vsel %vm2378, 0.0, %v4008
        %v4025 = vsel %vm2379, 0.0, %v4009
        %v4026 = vsel %vm2380, 0.0, %v4010
        %v4027 = vsel %vm2381, 0.0, %v4011
        %v4028 = vsel %vm2382, 0.0, %v4012
        %v4029 = vsel %vm2383, 0.0, %v4013
        %v4030 = vsel %vm2384, 0.0, %v4014
        %v4031 = vsel %vm2385, 0.0, %v4015
        %v4032 = vsel %vm2386, 0.0, %v4016
        %v4033 = vsel %vm2387, 0.0, %v4017
        %v4034 = vsel %vm2388, 0.0, %v4018
        %v4035 = vsel %vm2292, 0.0, %v4003
        %v4036 = vsel %vm2293, 0.0, %v4004
        %v4037 = vsel %vm2294, 0.0, %v4005
        %v4038 = vsel %vm2295, 0.0, %v4006
        %v4039 = vsel %vm2296, 0.0, %v4007
        %v4040 = vsel %vm2297, 0.0, %v4008
        %v4041 = vsel %vm2298, 0.0, %v4009
        %v4042 = vsel %vm2299, 0.0, %v4010
        %v4043 = vsel %vm2300, 0.0, %v4011
        %v4044 = vsel %vm2301, 0.0, %v4012
        %v4045 = vsel %vm2302, 0.0, %v4013
        %v4046 = vsel %vm2303, 0.0, %v4014
        %v4047 = vsel %vm2304, 0.0, %v4015
        %v4048 = vsel %vm2305, 0.0, %v4016
        %v4049 = vsel %vm2306, 0.0, %v4017
        %v4050 = vsel %vm2307, 0.0, %v4018
        %v4051 = vpack.c.bf16 %v4020, %v4019
        %v4052 = vpack.c.bf16 %v4022, %v4021
        %v4053 = vpack.c.bf16 %v4024, %v4023
        %v4054 = vpack.c.bf16 %v4026, %v4025
        %v4055 = vpack.c.bf16 %v4028, %v4027
        %v4056 = vpack.c.bf16 %v4030, %v4029
        %v4057 = vpack.c.bf16 %v4032, %v4031
        %v4058 = vpack.c.bf16 %v4034, %v4033
        %v4059 = vpack.c.bf16 %v4004, %v4003
        %v4060 = vpack.c.bf16 %v4006, %v4005
        %v4061 = vpack.c.bf16 %v4008, %v4007
        %v4062 = vpack.c.bf16 %v4010, %v4009
        %v4063 = vpack.c.bf16 %v4012, %v4011
        %v4064 = vpack.c.bf16 %v4014, %v4013
        %v4065 = vpack.c.bf16 %v4016, %v4015
        %v4066 = vpack.c.bf16 %v4018, %v4017
        %v4067 = vpack.c.bf16 %v4036, %v4035
        %v4068 = vpack.c.bf16 %v4038, %v4037
        %v4069 = vpack.c.bf16 %v4040, %v4039
        %v4070 = vpack.c.bf16 %v4042, %v4041
        %v4071 = vpack.c.bf16 %v4044, %v4043
        %v4072 = vpack.c.bf16 %v4046, %v4045
        %v4073 = vpack.c.bf16 %v4048, %v4047
        %v4074 = vpack.c.bf16 %v4050, %v4049
        %v4075 = vlaneseq
        %v4076 = vand.u32 %v4075, 127
        %v4077 = vmul.u32 %v1747, 16
        %vm4078 = vcmp.ge.s32.totalorder %v4076, %v4077
        %v4079 = vadd.s32 %v4077, 16
        %vm4080 = vcmp.lt.s32.totalorder %v4076, %v4079
        %vm4081 = vmand %vm4078, %vm4080
        %v4082 = vsel %vm4081, 1, 0
        %v4083 = vcvt.s32.f32 %v4082
        %v4084 = vpack.c.bf16 %v4083, %v4083
        %4085 = vmatprep.subr.bf16.mxu0 %v4059
        %4086 = vmatpush1.bf16.msra.mxu0 %v4051
        %4087 = vmatprep.subr.bf16.mxu0 %v4060
        %4088 = vmatpush1.bf16.msra.mxu0 %v4052
        %4089 = vmatprep.subr.bf16.mxu0 %v4061
        %4090 = vmatpush1.bf16.msra.mxu0 %v4053
        %4091 = vmatprep.subr.bf16.mxu0 %v4062
        %4092 = vmatpush1.bf16.msra.mxu0 %v4054
        %4093 = vmatprep.subr.bf16.mxu0 %v4063
        %4094 = vmatpush1.bf16.msra.mxu0 %v4055
        %4095 = vmatprep.subr.bf16.mxu0 %v4064
        %4096 = vmatpush1.bf16.msra.mxu0 %v4056
        %4097 = vmatprep.subr.bf16.mxu0 %v4065
        %4098 = vmatpush1.bf16.msra.mxu0 %v4057
        %4099 = vmatprep.subr.bf16.mxu0 %v4066
        %4100 = vmatpush1.bf16.msra.mxu0 %v4058
        %4101 = vmatprep.subr.bf16.mxu0 0
        %4102 = vmatpush1.bf16.msra.mxu0 0
        %4103 = vmatprep.subr.bf16.mxu0 0
        %4104 = vmatpush1.bf16.msra.mxu0 0
        %4105 = vmatprep.subr.bf16.mxu0 0
        %4106 = vmatpush1.bf16.msra.mxu0 0
        %4107 = vmatprep.subr.bf16.mxu0 0
        %4108 = vmatpush1.bf16.msra.mxu0 0
        %4109 = vmatprep.subr.bf16.mxu0 0
        %4110 = vmatpush1.bf16.msra.mxu0 0
        %4111 = vmatprep.subr.bf16.mxu0 0
        %4112 = vmatpush1.bf16.msra.mxu0 0
        %4113 = vmatprep.subr.bf16.mxu0 0
        %4114 = vmatpush1.bf16.msra.mxu0 0
        %4115 = vmatprep.subr.bf16.mxu0 0
        %4116 = vmatpush1.bf16.msra.mxu0 0
        %4117 = vmatprep.mubr.bf16.mxu0 0
        %4118 = vmatmul.mubr.bf16.gmra.mrb[0].mxu0 %v4084
        %v4119 = vpop.f32.mrb[0].mxu0
        %v4120 = vadd.f32 0.0, %v4119
        %v4121 = vpop.f32.mrb[0].mxu0
        %v4122 = vadd.f32 0.0, %v4121
        %v4123 = vpop.f32.mrb[0].mxu0
        %v4124 = vpop.f32.mrb[0].mxu0
        %4125 = vdwg.mxu0
        %4126 = vmatprep.subr.bf16.mxu0 0
        %4127 = vmatpush1.bf16.msra.mxu0 %v4067
        %4128 = vmatprep.subr.bf16.mxu0 0
        %4129 = vmatpush1.bf16.msra.mxu0 %v4068
        %4130 = vmatprep.subr.bf16.mxu0 0
        %4131 = vmatpush1.bf16.msra.mxu0 %v4069
        %4132 = vmatprep.subr.bf16.mxu0 0
        %4133 = vmatpush1.bf16.msra.mxu0 %v4070
        %4134 = vmatprep.subr.bf16.mxu0 0
        %4135 = vmatpush1.bf16.msra.mxu0 %v4071
        %4136 = vmatprep.subr.bf16.mxu0 0
        %4137 = vmatpush1.bf16.msra.mxu0 %v4072
        %4138 = vmatprep.subr.bf16.mxu0 0
        %4139 = vmatpush1.bf16.msra.mxu0 %v4073
        %4140 = vmatprep.subr.bf16.mxu0 0
        %4141 = vmatpush1.bf16.msra.mxu0 %v4074
        %4142 = vmatprep.subr.bf16.mxu0 0
        %4143 = vmatpush1.bf16.msra.mxu0 0
        %4144 = vmatprep.subr.bf16.mxu0 0
        %4145 = vmatpush1.bf16.msra.mxu0 0
        %4146 = vmatprep.subr.bf16.mxu0 0
        %4147 = vmatpush1.bf16.msra.mxu0 0
        %4148 = vmatprep.subr.bf16.mxu0 0
        %4149 = vmatpush1.bf16.msra.mxu0 0
        %4150 = vmatprep.subr.bf16.mxu0 0
        %4151 = vmatpush1.bf16.msra.mxu0 0
        %4152 = vmatprep.subr.bf16.mxu0 0
        %4153 = vmatpush1.bf16.msra.mxu0 0
        %4154 = vmatprep.subr.bf16.mxu0 0
        %4155 = vmatpush1.bf16.msra.mxu0 0
        %4156 = vmatprep.subr.bf16.mxu0 0
        %4157 = vmatpush1.bf16.msra.mxu0 0
        %4158 = vmatprep.mubr.bf16.mxu0 0
        %4159 = vmatmul.mubr.bf16.gmra.mrb[0].mxu0 %v4084
        %v4160 = vpop.f32.mrb[0].mxu0
        %v4161 = vadd.f32 0.0, %v4160
        %v4162 = vpop.f32.mrb[0].mxu0
        %v4163 = vpop.f32.mrb[0].mxu0
        %v4164 = vpop.f32.mrb[0].mxu0
        %4165 = vdwg.mxu0
        %v4166 = vmul.f32 %v4120, 0.0625
        %v4167 = vmul.f32 %v4122, 0.0625
        %v4168 = vmul.f32 %v4161, 0.0625
        %v4169 = vpack.c.bf16 %v4166, %v4166
        %v4170 = vpack.c.bf16 %v4167, %v4167
        %v4171 = vpack.c.bf16 %v4168, %v4168
        %s4172 = scalar_lea.vmem [#allocation20], 576
        %v4173 = vld [vmem:[%s4172] sm:$0xf]
        %v4174 = vld [vmem:[%s4172 + $0x4] sm:$0xf]
        %v4175 = vld [vmem:[%s4172 + $0x8] sm:$0xf]
        %v4176 = vld [vmem:[%s4172 + $0xc] sm:$0xf]
        %v4177 = vld [vmem:[%s4172 + $0x10] sm:$0xf]
        %v4178 = vld [vmem:[%s4172 + $0x14] sm:$0xf]
        %v4179 = vld [vmem:[%s4172 + $0x18] sm:$0xf]
        %v4180 = vld [vmem:[%s4172 + $0x1c] sm:$0xf]
        %v4181 = vld [vmem:[%s4172 + $0x20] sm:$0xf]
        %v4182 = vld [vmem:[%s4172 + $0x24] sm:$0xf]
        %v4183 = vld [vmem:[%s4172 + $0x28] sm:$0xf]
        %v4184 = vld [vmem:[%s4172 + $0x2c] sm:$0xf]
        %v4185 = vld [vmem:[%s4172 + $0x30] sm:$0xf]
        %v4186 = vld [vmem:[%s4172 + $0x34] sm:$0xf]
        %v4187 = vld [vmem:[%s4172 + $0x38] sm:$0xf]
        %v4188 = vld [vmem:[%s4172 + $0x3c] sm:$0xf]
        %v4189 = vld [vmem:[%s4172 + $0x40] sm:$0xf]
        %v4190 = vld [vmem:[%s4172 + $0x44] sm:$0xf]
        %v4191 = vld [vmem:[%s4172 + $0x48] sm:$0xf]
        %v4192 = vld [vmem:[%s4172 + $0x4c] sm:$0xf]
        %v4193 = vld [vmem:[%s4172 + $0x50] sm:$0xf]
        %v4194 = vld [vmem:[%s4172 + $0x54] sm:$0xf]
        %v4195 = vld [vmem:[%s4172 + $0x58] sm:$0xf]
        %v4196 = vld [vmem:[%s4172 + $0x5c] sm:$0xf]
        %v4197 = vld [vmem:[%s4172 + $0x60] sm:$0xf]
        %v4198 = vld [vmem:[%s4172 + $0x64] sm:$0xf]
        %v4199 = vld [vmem:[%s4172 + $0x68] sm:$0xf]
        %v4200 = vld [vmem:[%s4172 + $0x6c] sm:$0xf]
        %v4201 = vld [vmem:[%s4172 + $0x70] sm:$0xf]
        %v4202 = vld [vmem:[%s4172 + $0x74] sm:$0xf]
        %v4203 = vld [vmem:[%s4172 + $0x78] sm:$0xf]
        %v4204 = vld [vmem:[%s4172 + $0x7c] sm:$0xf]
        %v4205 = vld [vmem:[%s4172 + $0x80] sm:$0xf]
        %v4206 = vld [vmem:[%s4172 + $0x84] sm:$0xf]
        %v4207 = vld [vmem:[%s4172 + $0x88] sm:$0xf]
        %v4208 = vld [vmem:[%s4172 + $0x8c] sm:$0xf]
        %v4209 = vld [vmem:[%s4172 + $0x90] sm:$0xf]
        %v4210 = vld [vmem:[%s4172 + $0x94] sm:$0xf]
        %v4211 = vld [vmem:[%s4172 + $0x98] sm:$0xf]
        %v4212 = vld [vmem:[%s4172 + $0x9c] sm:$0xf]
        %v4213 = vld [vmem:[%s4172 + $0xa0] sm:$0xf]
        %v4214 = vld [vmem:[%s4172 + $0xa4] sm:$0xf]
        %v4215 = vld [vmem:[%s4172 + $0xa8] sm:$0xf]
        %v4216 = vld [vmem:[%s4172 + $0xac] sm:$0xf]
        %v4217 = vld [vmem:[%s4172 + $0xb0] sm:$0xf]
        %v4218 = vld [vmem:[%s4172 + $0xb4] sm:$0xf]
        %v4219 = vld [vmem:[%s4172 + $0xb8] sm:$0xf]
        %v4220 = vld [vmem:[%s4172 + $0xbc] sm:$0xf]
        %v4269 = vunpack.c.l.b16 %v4173
        %v4270 = vunpack.c.l.b16 %v4174
        %v4271 = vunpack.c.l.b16 %v4175
        %v4272 = vunpack.c.l.b16 %v4176
        %v4273 = vunpack.c.l.b16 %v4177
        %v4274 = vunpack.c.l.b16 %v4178
        %v4275 = vunpack.c.l.b16 %v4179
        %v4276 = vunpack.c.l.b16 %v4180
        %v4277 = vunpack.c.l.b16 %v4181
        %v4278 = vunpack.c.l.b16 %v4182
        %v4279 = vunpack.c.l.b16 %v4183
        %v4280 = vunpack.c.l.b16 %v4184
        %v4281 = vunpack.c.l.b16 %v4185
        %v4282 = vunpack.c.l.b16 %v4186
        %v4283 = vunpack.c.l.b16 %v4187
        %v4284 = vunpack.c.l.b16 %v4188
        %v4285 = vunpack.c.l.b16 %v4189
        %v4286 = vunpack.c.l.b16 %v4190
        %v4287 = vunpack.c.l.b16 %v4191
        %v4288 = vunpack.c.l.b16 %v4192
        %v4289 = vunpack.c.l.b16 %v4193
        %v4290 = vunpack.c.l.b16 %v4194
        %v4291 = vunpack.c.l.b16 %v4195
        %v4292 = vunpack.c.l.b16 %v4196
        %v4293 = vunpack.c.l.b16 %v4197
        %v4294 = vunpack.c.l.b16 %v4198
        %v4295 = vunpack.c.l.b16 %v4199
        %v4296 = vunpack.c.l.b16 %v4200
        %v4297 = vunpack.c.l.b16 %v4201
        %v4298 = vunpack.c.l.b16 %v4202
        %v4299 = vunpack.c.l.b16 %v4203
        %v4300 = vunpack.c.l.b16 %v4204
        %v4301 = vunpack.c.l.b16 %v4205
        %v4302 = vunpack.c.l.b16 %v4206
        %v4303 = vunpack.c.l.b16 %v4207
        %v4304 = vunpack.c.l.b16 %v4208
        %v4305 = vunpack.c.l.b16 %v4209
        %v4306 = vunpack.c.l.b16 %v4210
        %v4307 = vunpack.c.l.b16 %v4211
        %v4308 = vunpack.c.l.b16 %v4212
        %v4309 = vunpack.c.l.b16 %v4213
        %v4310 = vunpack.c.l.b16 %v4214
        %v4311 = vunpack.c.l.b16 %v4215
        %v4312 = vunpack.c.l.b16 %v4216
        %v4313 = vunpack.c.l.b16 %v4217
        %v4314 = vunpack.c.l.b16 %v4218
        %v4315 = vunpack.c.l.b16 %v4219
        %v4316 = vunpack.c.l.b16 %v4220
        %v4317 = vpack.c.b16 %v4270, %v4269
        %v4318 = vpack.c.b16 %v4272, %v4271
        %v4319 = vpack.c.b16 %v4274, %v4273
        %v4320 = vpack.c.b16 %v4276, %v4275
        %v4321 = vpack.c.b16 %v4278, %v4277
        %v4322 = vpack.c.b16 %v4280, %v4279
        %v4323 = vpack.c.b16 %v4282, %v4281
        %v4324 = vpack.c.b16 %v4284, %v4283
        %v4325 = vpack.c.b16 %v4286, %v4285
        %v4326 = vpack.c.b16 %v4288, %v4287
        %v4327 = vpack.c.b16 %v4290, %v4289
        %v4328 = vpack.c.b16 %v4292, %v4291
        %v4329 = vpack.c.b16 %v4294, %v4293
        %v4330 = vpack.c.b16 %v4296, %v4295
        %v4331 = vpack.c.b16 %v4298, %v4297
        %v4332 = vpack.c.b16 %v4300, %v4299
        %v4333 = vpack.c.b16 %v4302, %v4301
        %v4334 = vpack.c.b16 %v4304, %v4303
        %v4335 = vpack.c.b16 %v4306, %v4305
        %v4336 = vpack.c.b16 %v4308, %v4307
        %v4337 = vpack.c.b16 %v4310, %v4309
        %v4338 = vpack.c.b16 %v4312, %v4311
        %v4339 = vpack.c.b16 %v4314, %v4313
        %v4340 = vpack.c.b16 %v4316, %v4315
        %4365 = vmatprep.subr.bf16.mxu0 0
        %4366 = vmatpush1.bf16.msra.mxu0 %v4317
        %4367 = vmatprep.subr.bf16.mxu0 0
        %4368 = vmatpush1.bf16.msra.mxu0 %v4318
        %4369 = vmatprep.subr.bf16.mxu0 0
        %4370 = vmatpush1.bf16.msra.mxu0 %v4319
        %4371 = vmatprep.subr.bf16.mxu0 0
        %4372 = vmatpush1.bf16.msra.mxu0 %v4320
        %4373 = vmatprep.subr.bf16.mxu0 0
        %4374 = vmatpush1.bf16.msra.mxu0 %v4321
        %4375 = vmatprep.subr.bf16.mxu0 0
        %4376 = vmatpush1.bf16.msra.mxu0 %v4322
        %4377 = vmatprep.subr.bf16.mxu0 0
        %4378 = vmatpush1.bf16.msra.mxu0 %v4323
        %4379 = vmatprep.subr.bf16.mxu0 0
        %4380 = vmatpush1.bf16.msra.mxu0 %v4324
        %4381 = vmatprep.subr.bf16.mxu0 0
        %4382 = vmatpush1.bf16.msra.mxu0 %v4325
        %4383 = vmatprep.subr.bf16.mxu0 0
        %4384 = vmatpush1.bf16.msra.mxu0 %v4326
        %4385 = vmatprep.subr.bf16.mxu0 0
        %4386 = vmatpush1.bf16.msra.mxu0 %v4327
        %4387 = vmatprep.subr.bf16.mxu0 0
        %4388 = vmatpush1.bf16.msra.mxu0 %v4328
        %4389 = vmatprep.subr.bf16.mxu0 0
        %4390 = vmatpush1.bf16.msra.mxu0 %v4329
        %4391 = vmatprep.subr.bf16.mxu0 0
        %4392 = vmatpush1.bf16.msra.mxu0 %v4330
        %4393 = vmatprep.subr.bf16.mxu0 0
        %4394 = vmatpush1.bf16.msra.mxu0 %v4331
        %4395 = vmatprep.subr.bf16.mxu0 0
        %4396 = vmatpush1.bf16.msra.mxu0 %v4332
        %4397 = vmatprep.mubr.bf16.mxu0 %v4170
        %4398 = vmatmul.mubr.bf16.gmra.mrb[0].mxu0 %v4169
        %v4399 = vpop.f32.mrb[0].mxu0
        %v4400 = vadd.f32 0.0, %v4399
        %v4401 = vpop.f32.mrb[0].mxu0
        %v4402 = vpop.f32.mrb[0].mxu0
        %v4403 = vpop.f32.mrb[0].mxu0
        %4404 = vdwg.mxu0
        %4405 = vmatprep.subr.bf16.mxu0 0
        %4406 = vmatpush1.bf16.msra.mxu0 %v4333
        %4407 = vmatprep.subr.bf16.mxu0 0
        %4408 = vmatpush1.bf16.msra.mxu0 %v4334
        %4409 = vmatprep.subr.bf16.mxu0 0
        %4410 = vmatpush1.bf16.msra.mxu0 %v4335
        %4411 = vmatprep.subr.bf16.mxu0 0
        %4412 = vmatpush1.bf16.msra.mxu0 %v4336
        %4413 = vmatprep.subr.bf16.mxu0 0
        %4414 = vmatpush1.bf16.msra.mxu0 %v4337
        %4415 = vmatprep.subr.bf16.mxu0 0
        %4416 = vmatpush1.bf16.msra.mxu0 %v4338
        %4417 = vmatprep.subr.bf16.mxu0 0
        %4418 = vmatpush1.bf16.msra.mxu0 %v4339
        %4419 = vmatprep.subr.bf16.mxu0 0
        %4420 = vmatpush1.bf16.msra.mxu0 %v4340
        %4421 = vmatprep.subr.bf16.mxu0 0
        %4422 = vmatpush1.bf16.msra.mxu0 0
        %4423 = vmatprep.subr.bf16.mxu0 0
        %4424 = vmatpush1.bf16.msra.mxu0 0
        %4425 = vmatprep.subr.bf16.mxu0 0
        %4426 = vmatpush1.bf16.msra.mxu0 0
        %4427 = vmatprep.subr.bf16.mxu0 0
        %4428 = vmatpush1.bf16.msra.mxu0 0
        %4429 = vmatprep.subr.bf16.mxu0 0
        %4430 = vmatpush1.bf16.msra.mxu0 0
        %4431 = vmatprep.subr.bf16.mxu0 0
        %4432 = vmatpush1.bf16.msra.mxu0 0
        %4433 = vmatprep.subr.bf16.mxu0 0
        %4434 = vmatpush1.bf16.msra.mxu0 0
        %4435 = vmatprep.subr.bf16.mxu0 0
        %4436 = vmatpush1.bf16.msra.mxu0 0
        %4437 = vmatprep.mubr.bf16.mxu0 0
        %4438 = vmatmul.mubr.bf16.gmra.mrb[0].mxu0 %v4171
        %v4439 = vpop.f32.mrb[0].mxu0
        %v4440 = vadd.f32 %v4400, %v4439
        %v4441 = vpop.f32.mrb[0].mxu0
        %v4442 = vpop.f32.mrb[0].mxu0
        %v4443 = vpop.f32.mrb[0].mxu0
        %4444 = vdwg.mxu0
        %s4445 = scalar_lea.vmem [#allocation22], 3
        %v4446 = vld [vmem:[%s4445] sm:$0x1]
        %v4448 = vlaneseq
        %v4449 = vshrl.u32 %v4448, 7
        %v4450 = vsub.s32 0, %v4449
        %v4451 = vrot.slane %v4446, %v4450
        %v4453 = vmul.f32 %v4440, %v4451
        %s4454 = scalar_lea.vmem [#allocation23], 3
        %v4455 = vld [vmem:[%s4454] sm:$0x1]
        %v4457 = vlaneseq
        %v4458 = vshrl.u32 %v4457, 7
        %v4459 = vsub.s32 0, %v4458
        %v4460 = vrot.slane %v4455, %v4459
        %v4462 = vadd.f32 %v4453, %v4460
        %v4463 = vpack.c.bf16 %v4462, %v4462
        %v4464 = vld [vmem:[#allocation25] sm:$0xf]
        %v4465 = vld [vmem:[#allocation25 + $0x4] sm:$0xf]
        %v4466 = vld [vmem:[#allocation25 + $0x8] sm:$0xf]
        %v4467 = vld [vmem:[#allocation25 + $0xc] sm:$0xf]
        %v4468 = vld [vmem:[#allocation25 + $0x10] sm:$0xf]
        %v4469 = vld [vmem:[#allocation25 + $0x14] sm:$0xf]
        %v4470 = vld [vmem:[#allocation25 + $0x18] sm:$0xf]
        %v4471 = vld [vmem:[#allocation25 + $0x1c] sm:$0xf]
        %v4472 = vld [vmem:[#allocation25 + $0x20] sm:$0xf]
        %v4473 = vld [vmem:[#allocation25 + $0x24] sm:$0xf]
        %v4474 = vld [vmem:[#allocation25 + $0x28] sm:$0xf]
        %v4475 = vld [vmem:[#allocation25 + $0x2c] sm:$0xf]
        %v4476 = vld [vmem:[#allocation25 + $0x30] sm:$0xf]
        %v4477 = vld [vmem:[#allocation25 + $0x34] sm:$0xf]
        %v4478 = vld [vmem:[#allocation25 + $0x38] sm:$0xf]
        %v4479 = vld [vmem:[#allocation25 + $0x3c] sm:$0xf]
        %v4480 = vld [vmem:[#allocation26] sm:$0x1]
        %v4482 = vlaneseq
        %v4483 = vshrl.u32 %v4482, 7
        %v4484 = vsub.s32 0, %v4483
        %v4485 = vrot.slane %v4480, %v4484
        %v4503 = vunpack.c.l.b16 %v4464
        %v4504 = vunpack.c.l.b16 %v4465
        %v4505 = vunpack.c.l.b16 %v4466
        %v4506 = vunpack.c.l.b16 %v4467
        %v4507 = vunpack.c.l.b16 %v4468
        %v4508 = vunpack.c.l.b16 %v4469
        %v4509 = vunpack.c.l.b16 %v4470
        %v4510 = vunpack.c.l.b16 %v4471
        %v4511 = vunpack.c.l.b16 %v4472
        %v4512 = vunpack.c.l.b16 %v4473
        %v4513 = vunpack.c.l.b16 %v4474
        %v4514 = vunpack.c.l.b16 %v4475
        %v4515 = vunpack.c.l.b16 %v4476
        %v4516 = vunpack.c.l.b16 %v4477
        %v4517 = vunpack.c.l.b16 %v4478
        %v4518 = vunpack.c.l.b16 %v4479
        %v4519 = vpack.c.b16 %v4504, %v4503
        %v4520 = vpack.c.b16 %v4506, %v4505
        %v4521 = vpack.c.b16 %v4508, %v4507
        %v4522 = vpack.c.b16 %v4510, %v4509
        %v4523 = vpack.c.b16 %v4512, %v4511
        %v4524 = vpack.c.b16 %v4514, %v4513
        %v4525 = vpack.c.b16 %v4516, %v4515
        %v4526 = vpack.c.b16 %v4518, %v4517
        %4535 = vmatprep.subr.bf16.mxu0 0
        %4536 = vmatpush1.bf16.msra.mxu0 %v4519
        %4537 = vmatprep.subr.bf16.mxu0 0
        %4538 = vmatpush1.bf16.msra.mxu0 %v4520
        %4539 = vmatprep.subr.bf16.mxu0 0
        %4540 = vmatpush1.bf16.msra.mxu0 %v4521
        %4541 = vmatprep.subr.bf16.mxu0 0
        %4542 = vmatpush1.bf16.msra.mxu0 %v4522
        %4543 = vmatprep.subr.bf16.mxu0 0
        %4544 = vmatpush1.bf16.msra.mxu0 %v4523
        %4545 = vmatprep.subr.bf16.mxu0 0
        %4546 = vmatpush1.bf16.msra.mxu0 %v4524
        %4547 = vmatprep.subr.bf16.mxu0 0
        %4548 = vmatpush1.bf16.msra.mxu0 %v4525
        %4549 = vmatprep.subr.bf16.mxu0 0
        %4550 = vmatpush1.bf16.msra.mxu0 %v4526
        %4551 = vmatprep.subr.bf16.mxu0 0
        %4552 = vmatpush1.bf16.msra.mxu0 0
        %4553 = vmatprep.subr.bf16.mxu0 0
        %4554 = vmatpush1.bf16.msra.mxu0 0
        %4555 = vmatprep.subr.bf16.mxu0 0
        %4556 = vmatpush1.bf16.msra.mxu0 0
        %4557 = vmatprep.subr.bf16.mxu0 0
        %4558 = vmatpush1.bf16.msra.mxu0 0
        %4559 = vmatprep.subr.bf16.mxu0 0
        %4560 = vmatpush1.bf16.msra.mxu0 0
        %4561 = vmatprep.subr.bf16.mxu0 0
        %4562 = vmatpush1.bf16.msra.mxu0 0
        %4563 = vmatprep.subr.bf16.mxu0 0
        %4564 = vmatpush1.bf16.msra.mxu0 0
        %4565 = vmatprep.subr.bf16.mxu0 0
        %4566 = vmatpush1.bf16.msra.mxu0 0
        %4567 = vmatprep.mubr.bf16.mxu0 0
        %4568 = vmatmul.mubr.bf16.gmra.mrb[0].mxu0 %v4463
        %v4569 = vpop.f32.mrb[0].mxu0
        %v4570 = vadd.f32 %v4485, %v4569
        %v4571 = vpop.f32.mrb[0].mxu0
        %v4572 = vpop.f32.mrb[0].mxu0
        %v4573 = vpop.f32.mrb[0].mxu0
        %4574 = vdwg.mxu0
        %4575 = vst [vmem:[%s768] sm:$0xff] %v4570
        %s4576 = sand.u32 %s397, 1
        %s4577 = scalar_lea.sflag [#allocation4], %s4576
        %s4578 = sand.u32 %s397, 1
        %s4579 = smul.addr %s4578, 8
        %s4580 = scalar_lea.vmem [#allocation28], %s4579
        // Predicated region
        $region149: #{textcnn_forward.1} parent=83 // pred_check
          %p4581 = pneg %p407
        $region150: #{textcnn_forward.1} parent=83 // pred_check_branch
          %4583 = sbr.rel (%p4581) target = $region152
        $region151: #{textcnn_forward.1} parent=83 // pred_region
          %s4585 = ssub.s32 128, 128
          %4586 = vsyncadd %s4577, %s4585
          %s4587 = smul.addr %s43, 128
          %s4588 = scalar_lea.hbm %s16, %s4587
          %s4590 = sshll.u32 %s4580, 4
          %s4591 = int_to_ptr.vmem [resolvable:$true] %s4590
          %4593 = dma.vmem_to_hbm [thread:$0]  %s4591, 128, %s4588, %s4577
        $region152: #{textcnn_forward.1} parent=83 // pred_fallthru
          _
      $region84: #{textcnn_forward.1} parent=5 // pred_fallthru
        _
      %p4594 = scmp.le.s32.totalorder 2, %s38
      // Predicated region
      $region153: #{textcnn_forward.1} parent=5 // pred_check
        %p4595 = pneg %p4594
      $region154: #{textcnn_forward.1} parent=5 // pred_check_branch
        %4597 = sbr.rel (%p4595) target = $region156
      $region155: #{textcnn_forward.1} parent=5 // pred_region
        %s4598 = ssub.s32 %s38, 2
        // Predicated region
        $region157: #{textcnn_forward.1} parent=155 // pred_check
          %p4599 = pneg %p413
        $region158: #{textcnn_forward.1} parent=155 // pred_check_branch
          %4601 = sbr.rel (%p4599) target = $region160
        $region159: #{textcnn_forward.1} parent=155 // pred_region
          %s4602 = sand.u32 %s398, 1
          %s4603 = scalar_lea.sflag [#allocation4], %s4602
          %s4604 = sand.u32 %s398, 1
          %s4605 = smul.addr %s4604, 8
          %s4606 = scalar_lea.vmem [#allocation28], %s4605
          %4607 = dma.done %s4603, 128
        $region160: #{textcnn_forward.1} parent=155 // pred_fallthru
          _
      $region156: #{textcnn_forward.1} parent=5 // pred_fallthru
        _
    $region6: #{textcnn_forward.1} parent=1 // loop_footer
      %s42 = sadd.s32 1, %s38
    $region7: #{textcnn_forward.1} parent=1 // loop_footer_branch
      %37 = sbr.rel target = $region3
    $region8: #{textcnn_forward.1} parent=1 // loop_exit
      _
    %4608 = vsyncpa [#allocation3], 1
    %s4609 = scalar_lea.sflag [#allocation3], 1
    %4610 = vsyncpa %s4609, 1
    %4611 = vsyncpa [#allocation6], 1
    %s4612 = scalar_lea.sflag [#allocation6], 1
    %4613 = vsyncpa %s4612, 1
    %4614 = vsyncpa [#allocation9], 1
    %4615 = vsyncpa [#allocation12], 1
    %4616 = vsyncpa [#allocation15], 1
    %4617 = vsyncpa [#allocation18], 1
    %4618 = vsyncpa [#allocation21], 1
    %4619 = vsyncpa [#allocation24], 1
    %4620 = vsyncpa [#allocation27], 1
    %4621 = vsyncpa [#allocation4], 1
    %s4622 = scalar_lea.sflag [#allocation4], 1
    %4623 = vsyncpa %s4622, 1

</llo_original>
